<compile_context>
chip_gen: v7x
topology: tpu7x:2x2x1
jax: 0.10.0
libtpu: 0.0.40
codegen_flags: <defaults>
</compile_context>

<pallas_src>
import functools

import numpy as np
import jax
import jax.numpy as jnp
from jax import lax
from jax.experimental import pallas as pl
from jax.experimental.pallas import tpu as pltpu


def _bottleneck_kernel(x_ref, w1_ref, w2_ref, mask_ref, o_ref,
                       pad1_ref, pad2_ref, col1_ref, col2_ref,
                       *, DHW, PAD, shifts):
    """One sample, both conv+IN+LeakyReLU blocks fused.

    x_ref   : (1, C_in, DHW)        lane-dense input block (VMEM)
    w1_ref  : (C_mid, K1p)          im2col weights, K1p = roundup(27*C_in, 8)
    w2_ref  : (C_out, K2p)          im2col weights, K2p = roundup(27*C_mid, 8)
    mask_ref: (27, DHW)             per-tap source-validity masks (0/1 f32)
    o_ref   : (1, C_out, DHW)       output block (VMEM)
    pad*_ref: (C, DHW + 2*PAD)      lane-padded staging scratch (VMEM)
    col*_ref: (K*p, DHW)            im2col scratch (VMEM)
    """
    inv_n = 1.0 / float(DHW)

    def conv_in_lrelu(act, pad_ref, col_ref, w_ref):
        c = act.shape[0]
        kp = col_ref.shape[0]

        # Stage the activation once into the lane-padded scratch.  No zero fill:
        # every element read from the pad stripes is discarded by the select
        # below (keep it a select, never a multiply).
        pad_ref[:, pl.ds(PAD, DHW)] = act

        # Build the im2col matrix: row block t holds the (masked) tap-t shifted
        # slice.  The mask implements Conv3d's zero padding=1 and also kills any
        # flat overflow into the pad stripes.
        for t in range(27):
            src = pad_ref[:, pl.ds(PAD + shifts[t], DHW)]          # (c, DHW)
            m = mask_ref[pl.ds(t, 1), :] > 0.0                      # (1, DHW)
            col_ref[pl.ds(t * c, c), :] = jnp.where(m, src, 0.0)

        # Zero the K-padding rows once so the MXU contraction over kp is exact.
        kpad = kp - 27 * c
        if kpad:
            col_ref[pl.ds(27 * c, kpad), :] = jnp.zeros((kpad, DHW), jnp.float32)

        # Single MXU matmul per block: (c_out, kp) @ (kp, DHW), f32 accumulation.
        y = jnp.dot(w_ref[...], col_ref[...],
                    preferred_element_type=jnp.float32)

        # InstanceNorm3d (affine=False, eps=1e-5): one-pass per-channel stats
        # over the spatial (lane) axis; conv bias is omitted because it cancels
        # here exactly.
        mean = jnp.sum(y, axis=1, keepdims=True) * inv_n
        ex2 = jnp.sum(y * y, axis=1, keepdims=True) * inv_n
        var = ex2 - mean * mean
        yn = (y - mean) * lax.rsqrt(var + 1e-5)
        # LeakyReLU(negative_slope=0.01)
        return jnp.where(yn >= 0.0, yn, 0.01 * yn)

    h1 = conv_in_lrelu(x_ref[0], pad1_ref, col1_ref, w1_ref)       # block 1
    y = conv_in_lrelu(h1, pad2_ref, col2_ref, w2_ref)              # block 2
    o_ref[0] = y.astype(o_ref.dtype)


def bottleneck_forward(x_ncdhw, params):
    """Matches BottleNeck.forward. x in PyTorch NCDHW; weights in OIDHW."""
    w1, b1, w2, b2 = params        # b1/b2 unused: they cancel in InstanceNorm3d
    del b1, b2
    N, C_in, D, H, W = x_ncdhw.shape
    C_mid = w1.shape[0]
    C_out = w2.shape[0]
    DHW = D * H * W
    HW = H * W
    # Lane padding must cover the largest flat tap offset (H*W + W + 1) and stay
    # a multiple of 128 so the center staging store is lane-aligned.
    pad = max(128, -(-(HW + W + 1) // 128) * 128)

    # Free reshapes only — spatial is already innermost in NCDHW.
    x2d = x_ncdhw.reshape(N, C_in, DHW)

    # OIDHW -> (C_out, 27*C_in) with column index = tap*C_in + ci, tap = kd*9+kh*3+kw.
    # Round K up to a multiple of 8 (zero columns) to match the im2col scratch.
    def _w2d(w):
        co, ci = w.shape[0], w.shape[1]
        k = 27 * ci
        kp = -(-k // 8) * 8
        wk = jnp.transpose(w, (0, 2, 3, 4, 1)).reshape(co, k)
        if kp != k:
            wk = jnp.pad(wk, ((0, 0), (0, kp - k)))
        return wk, kp

    w1k, K1p = _w2d(w1)
    w2k, K2p = _w2d(w2)

    # Precompute the 27 per-tap source-validity masks (Conv3d zero padding=1)
    # and the flat lane shifts, host-side (trace-time constants).
    lane = np.arange(DHW)
    d_pos = lane // HW
    h_pos = (lane // W) % H
    w_pos = lane % W
    offs = (-1, 0, 1)
    mask_rows, shifts = [], []
    for a in offs:
        for b in offs:
            for c in offs:
                ok = ((d_pos + a >= 0) & (d_pos + a < D) &
                      (h_pos + b >= 0) & (h_pos + b < H) &
                      (w_pos + c >= 0) & (w_pos + c < W))
                mask_rows.append(ok)
                shifts.append(a * HW + b * W + c)
    mask = jnp.asarray(np.stack(mask_rows), dtype=jnp.float32)       # (27, DHW)

    kernel = functools.partial(_bottleneck_kernel, DHW=DHW, PAD=pad,
                               shifts=tuple(shifts))

    out2d = pl.pallas_call(
        kernel,
        out_shape=jax.ShapeDtypeStruct((N, C_out, DHW), jnp.float32),
        grid_spec=pltpu.PrefetchScalarGridSpec(
            num_scalar_prefetch=0,
            grid=(N,),
            in_specs=[
                pl.BlockSpec((1, C_in, DHW), lambda n: (n, 0, 0)),
                pl.BlockSpec((C_mid, K1p), lambda n: (0, 0)),
                pl.BlockSpec((C_out, K2p), lambda n: (0, 0)),
                pl.BlockSpec((27, DHW), lambda n: (0, 0)),
            ],
            out_specs=pl.BlockSpec((1, C_out, DHW), lambda n: (n, 0, 0)),
            scratch_shapes=[
                pltpu.VMEM((C_in, DHW + 2 * pad), jnp.float32),   # pad scratch 1
                pltpu.VMEM((C_mid, DHW + 2 * pad), jnp.float32),  # pad scratch 2
                pltpu.VMEM((K1p, DHW), jnp.float32),              # im2col 1
                pltpu.VMEM((K2p, DHW), jnp.float32),              # im2col 2
            ],
        ),
        compiler_params=pltpu.CompilerParams(
            dimension_semantics=("parallel",)),
    )(x2d, w1k, w2k, mask)

    return out2d.reshape(N, C_out, D, H, W)


# ---------------- pure-JAX reference (for correctness check) ----------------
def _ref_block(x, w, b):
    # x: (N, C_in, D, H, W); w: (C_out, C_in, 3, 3, 3) (PyTorch OIDHW); b: (C_out,)
    y = lax.conv_general_dilated(
        x, w, window_strides=(1, 1, 1), padding='SAME',
        dimension_numbers=('NCDHW', 'OIDHW', 'NCDHW'))
    y = y + b[None, :, None, None, None]          # bias kept here; cancels in IN
    mean = jnp.mean(y, axis=(2, 3, 4), keepdims=True)
    var = jnp.mean((y - mean) ** 2, axis=(2, 3, 4), keepdims=True)
    y = (y - mean) * lax.rsqrt(var + 1e-5)
    return jnp.where(y >= 0.0, y, 0.01 * y)


def _ref_forward(x_ncdhw, params):
    w1, b1, w2, b2 = params
    h = _ref_block(x_ncdhw, w1, b1)
    return _ref_block(h, w2, b2)


if __name__ == "__main__":
    key = jax.random.PRNGKey(0)
    k_x, k_w1, k_b1, k_w2, k_b2 = jax.random.split(key, 5)

    N, C_in, C_mid, C_out = 2, 4, 8, 4
    D = H = W = 8

    # Input in PyTorch NCDHW layout; weights in PyTorch Conv3d OIDHW layout.
    x = jax.random.normal(k_x, (N, C_in, D, H, W), dtype=jnp.float32)
    w1 = 0.1 * jax.random.normal(k_w1, (C_mid, C_in, 3, 3, 3), dtype=jnp.float32)
    b1 = 0.1 * jax.random.normal(k_b1, (C_mid,), dtype=jnp.float32)
    w2 = 0.1 * jax.random.normal(k_w2, (C_out, C_mid, 3, 3, 3), dtype=jnp.float32)
    b2 = 0.1 * jax.random.normal(k_b2, (C_out,), dtype=jnp.float32)
    params = (w1, b1, w2, b2)

    out = jax.block_until_ready(jax.jit(bottleneck_forward)(x, params))
    ref = jax.block_until_ready(_ref_forward(x, params))

    assert out.shape == (N, C_out, D, H, W)
    max_err = float(jnp.max(jnp.abs(out - ref)))
    assert max_err < 1e-3, f"mismatch vs reference: {max_err}"

    print("KERNEL_OK")
</pallas_src>

<mosaic_0001>
module attributes {stable_mosaic.version = 11 : i64} {
  func.func @_bottleneck_kernel(%arg0: i32, %arg1: memref<1x4x512xf32, #tpu.memory_space<vmem>>, %arg2: memref<8x112xf32, #tpu.memory_space<vmem>>, %arg3: memref<4x216xf32, #tpu.memory_space<vmem>>, %arg4: memref<27x512xf32, #tpu.memory_space<vmem>>, %arg5: memref<1x4x512xf32, #tpu.memory_space<vmem>>, %arg6: memref<4x768xf32, #tpu.memory_space<vmem>>, %arg7: memref<8x768xf32, #tpu.memory_space<vmem>>, %arg8: memref<112x512xf32, #tpu.memory_space<vmem>>, %arg9: memref<216x512xf32, #tpu.memory_space<vmem>>) attributes {dimension_semantics = [#tpu.dimension_semantics<parallel>], iteration_bounds = array<i64: 2>, scalar_prefetch = 0 : i64, scratch_operands = 4 : i64, tpu.core_type = #tpu.core_type<tc>, window_params = [{transform_indices = @transform_0, window_bounds = array<i64: 1, 4, 512>}, {pipeline_mode = #tpu.pipeline_mode<synchronous>, transform_indices = @transform_1, window_bounds = array<i64: 8, 112>}, {pipeline_mode = #tpu.pipeline_mode<synchronous>, transform_indices = @transform_2, window_bounds = array<i64: 4, 216>}, {pipeline_mode = #tpu.pipeline_mode<synchronous>, transform_indices = @transform_3, window_bounds = array<i64: 27, 512>}, {transform_indices = @transform_4, window_bounds = array<i64: 1, 4, 512>}]} {
    %c0 = arith.constant 0 : index
    %c0_0 = arith.constant 0 : index
    %c0_1 = arith.constant 0 : index
    %0 = vector.load %arg1[%c0, %c0_0, %c0_1] : memref<1x4x512xf32, #tpu.memory_space<vmem>>, vector<1x4x512xf32>
    %1 = vector.shape_cast %0 : vector<1x4x512xf32> to vector<4x512xf32>
    %c0_2 = arith.constant 0 : index
    %c128 = arith.constant 128 : index
    %2 = vector.load %arg6[%c0_2, %c128] : memref<4x768xf32, #tpu.memory_space<vmem>>, vector<4x512xf32>
    tpu.vector_store %arg6[%c0_2, %c128], %1 {strides = array<i32>} : memref<4x768xf32, #tpu.memory_space<vmem>>, vector<4x512xf32>,
    %c0_3 = arith.constant 0 : index
    %c55 = arith.constant 55 : index
    %3 = vector.load %arg6[%c0_3, %c55] : memref<4x768xf32, #tpu.memory_space<vmem>>, vector<4x512xf32>
    %c0_4 = arith.constant 0 : index
    %c0_5 = arith.constant 0 : index
    %4 = vector.load %arg4[%c0_4, %c0_5] : memref<27x512xf32, #tpu.memory_space<vmem>>, vector<1x512xf32>
    %cst = arith.constant 0.000000e+00 : f32
    %5 = vector.broadcast %cst : f32 to vector<1x512xf32>
    %6 = arith.cmpf ogt, %4, %5 : vector<1x512xf32>
    %cst_6 = arith.constant 0.000000e+00 : f32
    %7 = vector.shape_cast %6 : vector<1x512xi1> to vector<1x512xi1>
    %8 = vector.broadcast %7 : vector<1x512xi1> to vector<4x512xi1>
    %9 = vector.broadcast %cst_6 : f32 to vector<4x512xf32>
    %10 = arith.select %8, %3, %9 : vector<4x512xi1>, vector<4x512xf32>
    %c0_7 = arith.constant 0 : index
    %c0_8 = arith.constant 0 : index
    %11 = vector.load %arg8[%c0_7, %c0_8] : memref<112x512xf32, #tpu.memory_space<vmem>>, vector<4x512xf32>
    tpu.vector_store %arg8[%c0_7, %c0_8], %10 {strides = array<i32>} : memref<112x512xf32, #tpu.memory_space<vmem>>, vector<4x512xf32>,
    %c0_9 = arith.constant 0 : index
    %c56 = arith.constant 56 : index
    %12 = vector.load %arg6[%c0_9, %c56] : memref<4x768xf32, #tpu.memory_space<vmem>>, vector<4x512xf32>
    %c1 = arith.constant 1 : index
    %c0_10 = arith.constant 0 : index
    %13 = vector.load %arg4[%c1, %c0_10] : memref<27x512xf32, #tpu.memory_space<vmem>>, vector<1x512xf32>
    %cst_11 = arith.constant 0.000000e+00 : f32
    %14 = vector.broadcast %cst_11 : f32 to vector<1x512xf32>
    %15 = arith.cmpf ogt, %13, %14 : vector<1x512xf32>
    %cst_12 = arith.constant 0.000000e+00 : f32
    %16 = vector.shape_cast %15 : vector<1x512xi1> to vector<1x512xi1>
    %17 = vector.broadcast %16 : vector<1x512xi1> to vector<4x512xi1>
    %18 = vector.broadcast %cst_12 : f32 to vector<4x512xf32>
    %19 = arith.select %17, %12, %18 : vector<4x512xi1>, vector<4x512xf32>
    %c4 = arith.constant 4 : index
    %c0_13 = arith.constant 0 : index
    %20 = vector.load %arg8[%c4, %c0_13] : memref<112x512xf32, #tpu.memory_space<vmem>>, vector<4x512xf32>
    tpu.vector_store %arg8[%c4, %c0_13], %19 {strides = array<i32>} : memref<112x512xf32, #tpu.memory_space<vmem>>, vector<4x512xf32>,
    %c0_14 = arith.constant 0 : index
    %c57 = arith.constant 57 : index
    %21 = vector.load %arg6[%c0_14, %c57] : memref<4x768xf32, #tpu.memory_space<vmem>>, vector<4x512xf32>
    %c2 = arith.constant 2 : index
    %c0_15 = arith.constant 0 : index
    %22 = vector.load %arg4[%c2, %c0_15] : memref<27x512xf32, #tpu.memory_space<vmem>>, vector<1x512xf32>
    %cst_16 = arith.constant 0.000000e+00 : f32
    %23 = vector.broadcast %cst_16 : f32 to vector<1x512xf32>
    %24 = arith.cmpf ogt, %22, %23 : vector<1x512xf32>
    %cst_17 = arith.constant 0.000000e+00 : f32
    %25 = vector.shape_cast %24 : vector<1x512xi1> to vector<1x512xi1>
    %26 = vector.broadcast %25 : vector<1x512xi1> to vector<4x512xi1>
    %27 = vector.broadcast %cst_17 : f32 to vector<4x512xf32>
    %28 = arith.select %26, %21, %27 : vector<4x512xi1>, vector<4x512xf32>
    %c8 = arith.constant 8 : index
    %c0_18 = arith.constant 0 : index
    %29 = vector.load %arg8[%c8, %c0_18] : memref<112x512xf32, #tpu.memory_space<vmem>>, vector<4x512xf32>
    tpu.vector_store %arg8[%c8, %c0_18], %28 {strides = array<i32>} : memref<112x512xf32, #tpu.memory_space<vmem>>, vector<4x512xf32>,
    %c0_19 = arith.constant 0 : index
    %c63 = arith.constant 63 : index
    %30 = vector.load %arg6[%c0_19, %c63] : memref<4x768xf32, #tpu.memory_space<vmem>>, vector<4x512xf32>
    %c3 = arith.constant 3 : index
    %c0_20 = arith.constant 0 : index
    %31 = vector.load %arg4[%c3, %c0_20] : memref<27x512xf32, #tpu.memory_space<vmem>>, vector<1x512xf32>
    %cst_21 = arith.constant 0.000000e+00 : f32
    %32 = vector.broadcast %cst_21 : f32 to vector<1x512xf32>
    %33 = arith.cmpf ogt, %31, %32 : vector<1x512xf32>
    %cst_22 = arith.constant 0.000000e+00 : f32
    %34 = vector.shape_cast %33 : vector<1x512xi1> to vector<1x512xi1>
    %35 = vector.broadcast %34 : vector<1x512xi1> to vector<4x512xi1>
    %36 = vector.broadcast %cst_22 : f32 to vector<4x512xf32>
    %37 = arith.select %35, %30, %36 : vector<4x512xi1>, vector<4x512xf32>
    %c12 = arith.constant 12 : index
    %c0_23 = arith.constant 0 : index
    %38 = vector.load %arg8[%c12, %c0_23] : memref<112x512xf32, #tpu.memory_space<vmem>>, vector<4x512xf32>
    tpu.vector_store %arg8[%c12, %c0_23], %37 {strides = array<i32>} : memref<112x512xf32, #tpu.memory_space<vmem>>, vector<4x512xf32>,
    %c0_24 = arith.constant 0 : index
    %c64 = arith.constant 64 : index
    %39 = vector.load %arg6[%c0_24, %c64] : memref<4x768xf32, #tpu.memory_space<vmem>>, vector<4x512xf32>
    %c4_25 = arith.constant 4 : index
    %c0_26 = arith.constant 0 : index
    %40 = vector.load %arg4[%c4_25, %c0_26] : memref<27x512xf32, #tpu.memory_space<vmem>>, vector<1x512xf32>
    %cst_27 = arith.constant 0.000000e+00 : f32
    %41 = vector.broadcast %cst_27 : f32 to vector<1x512xf32>
    %42 = arith.cmpf ogt, %40, %41 : vector<1x512xf32>
    %cst_28 = arith.constant 0.000000e+00 : f32
    %43 = vector.shape_cast %42 : vector<1x512xi1> to vector<1x512xi1>
    %44 = vector.broadcast %43 : vector<1x512xi1> to vector<4x512xi1>
    %45 = vector.broadcast %cst_28 : f32 to vector<4x512xf32>
    %46 = arith.select %44, %39, %45 : vector<4x512xi1>, vector<4x512xf32>
    %c16 = arith.constant 16 : index
    %c0_29 = arith.constant 0 : index
    %47 = vector.load %arg8[%c16, %c0_29] : memref<112x512xf32, #tpu.memory_space<vmem>>, vector<4x512xf32>
    tpu.vector_store %arg8[%c16, %c0_29], %46 {strides = array<i32>} : memref<112x512xf32, #tpu.memory_space<vmem>>, vector<4x512xf32>,
    %c0_30 = arith.constant 0 : index
    %c65 = arith.constant 65 : index
    %48 = vector.load %arg6[%c0_30, %c65] : memref<4x768xf32, #tpu.memory_space<vmem>>, vector<4x512xf32>
    %c5 = arith.constant 5 : index
    %c0_31 = arith.constant 0 : index
    %49 = vector.load %arg4[%c5, %c0_31] : memref<27x512xf32, #tpu.memory_space<vmem>>, vector<1x512xf32>
    %cst_32 = arith.constant 0.000000e+00 : f32
    %50 = vector.broadcast %cst_32 : f32 to vector<1x512xf32>
    %51 = arith.cmpf ogt, %49, %50 : vector<1x512xf32>
    %cst_33 = arith.constant 0.000000e+00 : f32
    %52 = vector.shape_cast %51 : vector<1x512xi1> to vector<1x512xi1>
    %53 = vector.broadcast %52 : vector<1x512xi1> to vector<4x512xi1>
    %54 = vector.broadcast %cst_33 : f32 to vector<4x512xf32>
    %55 = arith.select %53, %48, %54 : vector<4x512xi1>, vector<4x512xf32>
    %c20 = arith.constant 20 : index
    %c0_34 = arith.constant 0 : index
    %56 = vector.load %arg8[%c20, %c0_34] : memref<112x512xf32, #tpu.memory_space<vmem>>, vector<4x512xf32>
    tpu.vector_store %arg8[%c20, %c0_34], %55 {strides = array<i32>} : memref<112x512xf32, #tpu.memory_space<vmem>>, vector<4x512xf32>,
    %c0_35 = arith.constant 0 : index
    %c71 = arith.constant 71 : index
    %57 = vector.load %arg6[%c0_35, %c71] : memref<4x768xf32, #tpu.memory_space<vmem>>, vector<4x512xf32>
    %c6 = arith.constant 6 : index
    %c0_36 = arith.constant 0 : index
    %58 = vector.load %arg4[%c6, %c0_36] : memref<27x512xf32, #tpu.memory_space<vmem>>, vector<1x512xf32>
    %cst_37 = arith.constant 0.000000e+00 : f32
    %59 = vector.broadcast %cst_37 : f32 to vector<1x512xf32>
    %60 = arith.cmpf ogt, %58, %59 : vector<1x512xf32>
    %cst_38 = arith.constant 0.000000e+00 : f32
    %61 = vector.shape_cast %60 : vector<1x512xi1> to vector<1x512xi1>
    %62 = vector.broadcast %61 : vector<1x512xi1> to vector<4x512xi1>
    %63 = vector.broadcast %cst_38 : f32 to vector<4x512xf32>
    %64 = arith.select %62, %57, %63 : vector<4x512xi1>, vector<4x512xf32>
    %c24 = arith.constant 24 : index
    %c0_39 = arith.constant 0 : index
    %65 = vector.load %arg8[%c24, %c0_39] : memref<112x512xf32, #tpu.memory_space<vmem>>, vector<4x512xf32>
    tpu.vector_store %arg8[%c24, %c0_39], %64 {strides = array<i32>} : memref<112x512xf32, #tpu.memory_space<vmem>>, vector<4x512xf32>,
    %c0_40 = arith.constant 0 : index
    %c72 = arith.constant 72 : index
    %66 = vector.load %arg6[%c0_40, %c72] : memref<4x768xf32, #tpu.memory_space<vmem>>, vector<4x512xf32>
    %c7 = arith.constant 7 : index
    %c0_41 = arith.constant 0 : index
    %67 = vector.load %arg4[%c7, %c0_41] : memref<27x512xf32, #tpu.memory_space<vmem>>, vector<1x512xf32>
    %cst_42 = arith.constant 0.000000e+00 : f32
    %68 = vector.broadcast %cst_42 : f32 to vector<1x512xf32>
    %69 = arith.cmpf ogt, %67, %68 : vector<1x512xf32>
    %cst_43 = arith.constant 0.000000e+00 : f32
    %70 = vector.shape_cast %69 : vector<1x512xi1> to vector<1x512xi1>
    %71 = vector.broadcast %70 : vector<1x512xi1> to vector<4x512xi1>
    %72 = vector.broadcast %cst_43 : f32 to vector<4x512xf32>
    %73 = arith.select %71, %66, %72 : vector<4x512xi1>, vector<4x512xf32>
    %c28 = arith.constant 28 : index
    %c0_44 = arith.constant 0 : index
    %74 = vector.load %arg8[%c28, %c0_44] : memref<112x512xf32, #tpu.memory_space<vmem>>, vector<4x512xf32>
    tpu.vector_store %arg8[%c28, %c0_44], %73 {strides = array<i32>} : memref<112x512xf32, #tpu.memory_space<vmem>>, vector<4x512xf32>,
    %c0_45 = arith.constant 0 : index
    %c73 = arith.constant 73 : index
    %75 = vector.load %arg6[%c0_45, %c73] : memref<4x768xf32, #tpu.memory_space<vmem>>, vector<4x512xf32>
    %c8_46 = arith.constant 8 : index
    %c0_47 = arith.constant 0 : index
    %76 = vector.load %arg4[%c8_46, %c0_47] : memref<27x512xf32, #tpu.memory_space<vmem>>, vector<1x512xf32>
    %cst_48 = arith.constant 0.000000e+00 : f32
    %77 = vector.broadcast %cst_48 : f32 to vector<1x512xf32>
    %78 = arith.cmpf ogt, %76, %77 : vector<1x512xf32>
    %cst_49 = arith.constant 0.000000e+00 : f32
    %79 = vector.shape_cast %78 : vector<1x512xi1> to vector<1x512xi1>
    %80 = vector.broadcast %79 : vector<1x512xi1> to vector<4x512xi1>
    %81 = vector.broadcast %cst_49 : f32 to vector<4x512xf32>
    %82 = arith.select %80, %75, %81 : vector<4x512xi1>, vector<4x512xf32>
    %c32 = arith.constant 32 : index
    %c0_50 = arith.constant 0 : index
    %83 = vector.load %arg8[%c32, %c0_50] : memref<112x512xf32, #tpu.memory_space<vmem>>, vector<4x512xf32>
    tpu.vector_store %arg8[%c32, %c0_50], %82 {strides = array<i32>} : memref<112x512xf32, #tpu.memory_space<vmem>>, vector<4x512xf32>,
    %c0_51 = arith.constant 0 : index
    %c119 = arith.constant 119 : index
    %84 = vector.load %arg6[%c0_51, %c119] : memref<4x768xf32, #tpu.memory_space<vmem>>, vector<4x512xf32>
    %c9 = arith.constant 9 : index
    %c0_52 = arith.constant 0 : index
    %85 = vector.load %arg4[%c9, %c0_52] : memref<27x512xf32, #tpu.memory_space<vmem>>, vector<1x512xf32>
    %cst_53 = arith.constant 0.000000e+00 : f32
    %86 = vector.broadcast %cst_53 : f32 to vector<1x512xf32>
    %87 = arith.cmpf ogt, %85, %86 : vector<1x512xf32>
    %cst_54 = arith.constant 0.000000e+00 : f32
    %88 = vector.shape_cast %87 : vector<1x512xi1> to vector<1x512xi1>
    %89 = vector.broadcast %88 : vector<1x512xi1> to vector<4x512xi1>
    %90 = vector.broadcast %cst_54 : f32 to vector<4x512xf32>
    %91 = arith.select %89, %84, %90 : vector<4x512xi1>, vector<4x512xf32>
    %c36 = arith.constant 36 : index
    %c0_55 = arith.constant 0 : index
    %92 = vector.load %arg8[%c36, %c0_55] : memref<112x512xf32, #tpu.memory_space<vmem>>, vector<4x512xf32>
    tpu.vector_store %arg8[%c36, %c0_55], %91 {strides = array<i32>} : memref<112x512xf32, #tpu.memory_space<vmem>>, vector<4x512xf32>,
    %c0_56 = arith.constant 0 : index
    %c120 = arith.constant 120 : index
    %93 = vector.load %arg6[%c0_56, %c120] : memref<4x768xf32, #tpu.memory_space<vmem>>, vector<4x512xf32>
    %c10 = arith.constant 10 : index
    %c0_57 = arith.constant 0 : index
    %94 = vector.load %arg4[%c10, %c0_57] : memref<27x512xf32, #tpu.memory_space<vmem>>, vector<1x512xf32>
    %cst_58 = arith.constant 0.000000e+00 : f32
    %95 = vector.broadcast %cst_58 : f32 to vector<1x512xf32>
    %96 = arith.cmpf ogt, %94, %95 : vector<1x512xf32>
    %cst_59 = arith.constant 0.000000e+00 : f32
    %97 = vector.shape_cast %96 : vector<1x512xi1> to vector<1x512xi1>
    %98 = vector.broadcast %97 : vector<1x512xi1> to vector<4x512xi1>
    %99 = vector.broadcast %cst_59 : f32 to vector<4x512xf32>
    %100 = arith.select %98, %93, %99 : vector<4x512xi1>, vector<4x512xf32>
    %c40 = arith.constant 40 : index
    %c0_60 = arith.constant 0 : index
    %101 = vector.load %arg8[%c40, %c0_60] : memref<112x512xf32, #tpu.memory_space<vmem>>, vector<4x512xf32>
    tpu.vector_store %arg8[%c40, %c0_60], %100 {strides = array<i32>} : memref<112x512xf32, #tpu.memory_space<vmem>>, vector<4x512xf32>,
    %c0_61 = arith.constant 0 : index
    %c121 = arith.constant 121 : index
    %102 = vector.load %arg6[%c0_61, %c121] : memref<4x768xf32, #tpu.memory_space<vmem>>, vector<4x512xf32>
    %c11 = arith.constant 11 : index
    %c0_62 = arith.constant 0 : index
    %103 = vector.load %arg4[%c11, %c0_62] : memref<27x512xf32, #tpu.memory_space<vmem>>, vector<1x512xf32>
    %cst_63 = arith.constant 0.000000e+00 : f32
    %104 = vector.broadcast %cst_63 : f32 to vector<1x512xf32>
    %105 = arith.cmpf ogt, %103, %104 : vector<1x512xf32>
    %cst_64 = arith.constant 0.000000e+00 : f32
    %106 = vector.shape_cast %105 : vector<1x512xi1> to vector<1x512xi1>
    %107 = vector.broadcast %106 : vector<1x512xi1> to vector<4x512xi1>
    %108 = vector.broadcast %cst_64 : f32 to vector<4x512xf32>
    %109 = arith.select %107, %102, %108 : vector<4x512xi1>, vector<4x512xf32>
    %c44 = arith.constant 44 : index
    %c0_65 = arith.constant 0 : index
    %110 = vector.load %arg8[%c44, %c0_65] : memref<112x512xf32, #tpu.memory_space<vmem>>, vector<4x512xf32>
    tpu.vector_store %arg8[%c44, %c0_65], %109 {strides = array<i32>} : memref<112x512xf32, #tpu.memory_space<vmem>>, vector<4x512xf32>,
    %c0_66 = arith.constant 0 : index
    %c127 = arith.constant 127 : index
    %111 = vector.load %arg6[%c0_66, %c127] : memref<4x768xf32, #tpu.memory_space<vmem>>, vector<4x512xf32>
    %c12_67 = arith.constant 12 : index
    %c0_68 = arith.constant 0 : index
    %112 = vector.load %arg4[%c12_67, %c0_68] : memref<27x512xf32, #tpu.memory_space<vmem>>, vector<1x512xf32>
    %cst_69 = arith.constant 0.000000e+00 : f32
    %113 = vector.broadcast %cst_69 : f32 to vector<1x512xf32>
    %114 = arith.cmpf ogt, %112, %113 : vector<1x512xf32>
    %cst_70 = arith.constant 0.000000e+00 : f32
    %115 = vector.shape_cast %114 : vector<1x512xi1> to vector<1x512xi1>
    %116 = vector.broadcast %115 : vector<1x512xi1> to vector<4x512xi1>
    %117 = vector.broadcast %cst_70 : f32 to vector<4x512xf32>
    %118 = arith.select %116, %111, %117 : vector<4x512xi1>, vector<4x512xf32>
    %c48 = arith.constant 48 : index
    %c0_71 = arith.constant 0 : index
    %119 = vector.load %arg8[%c48, %c0_71] : memref<112x512xf32, #tpu.memory_space<vmem>>, vector<4x512xf32>
    tpu.vector_store %arg8[%c48, %c0_71], %118 {strides = array<i32>} : memref<112x512xf32, #tpu.memory_space<vmem>>, vector<4x512xf32>,
    %c0_72 = arith.constant 0 : index
    %c128_73 = arith.constant 128 : index
    %120 = vector.load %arg6[%c0_72, %c128_73] : memref<4x768xf32, #tpu.memory_space<vmem>>, vector<4x512xf32>
    %c13 = arith.constant 13 : index
    %c0_74 = arith.constant 0 : index
    %121 = vector.load %arg4[%c13, %c0_74] : memref<27x512xf32, #tpu.memory_space<vmem>>, vector<1x512xf32>
    %cst_75 = arith.constant 0.000000e+00 : f32
    %122 = vector.broadcast %cst_75 : f32 to vector<1x512xf32>
    %123 = arith.cmpf ogt, %121, %122 : vector<1x512xf32>
    %cst_76 = arith.constant 0.000000e+00 : f32
    %124 = vector.shape_cast %123 : vector<1x512xi1> to vector<1x512xi1>
    %125 = vector.broadcast %124 : vector<1x512xi1> to vector<4x512xi1>
    %126 = vector.broadcast %cst_76 : f32 to vector<4x512xf32>
    %127 = arith.select %125, %120, %126 : vector<4x512xi1>, vector<4x512xf32>
    %c52 = arith.constant 52 : index
    %c0_77 = arith.constant 0 : index
    %128 = vector.load %arg8[%c52, %c0_77] : memref<112x512xf32, #tpu.memory_space<vmem>>, vector<4x512xf32>
    tpu.vector_store %arg8[%c52, %c0_77], %127 {strides = array<i32>} : memref<112x512xf32, #tpu.memory_space<vmem>>, vector<4x512xf32>,
    %c0_78 = arith.constant 0 : index
    %c129 = arith.constant 129 : index
    %129 = vector.load %arg6[%c0_78, %c129] : memref<4x768xf32, #tpu.memory_space<vmem>>, vector<4x512xf32>
    %c14 = arith.constant 14 : index
    %c0_79 = arith.constant 0 : index
    %130 = vector.load %arg4[%c14, %c0_79] : memref<27x512xf32, #tpu.memory_space<vmem>>, vector<1x512xf32>
    %cst_80 = arith.constant 0.000000e+00 : f32
    %131 = vector.broadcast %cst_80 : f32 to vector<1x512xf32>
    %132 = arith.cmpf ogt, %130, %131 : vector<1x512xf32>
    %cst_81 = arith.constant 0.000000e+00 : f32
    %133 = vector.shape_cast %132 : vector<1x512xi1> to vector<1x512xi1>
    %134 = vector.broadcast %133 : vector<1x512xi1> to vector<4x512xi1>
    %135 = vector.broadcast %cst_81 : f32 to vector<4x512xf32>
    %136 = arith.select %134, %129, %135 : vector<4x512xi1>, vector<4x512xf32>
    %c56_82 = arith.constant 56 : index
    %c0_83 = arith.constant 0 : index
    %137 = vector.load %arg8[%c56_82, %c0_83] : memref<112x512xf32, #tpu.memory_space<vmem>>, vector<4x512xf32>
    tpu.vector_store %arg8[%c56_82, %c0_83], %136 {strides = array<i32>} : memref<112x512xf32, #tpu.memory_space<vmem>>, vector<4x512xf32>,
    %c0_84 = arith.constant 0 : index
    %c135 = arith.constant 135 : index
    %138 = vector.load %arg6[%c0_84, %c135] : memref<4x768xf32, #tpu.memory_space<vmem>>, vector<4x512xf32>
    %c15 = arith.constant 15 : index
    %c0_85 = arith.constant 0 : index
    %139 = vector.load %arg4[%c15, %c0_85] : memref<27x512xf32, #tpu.memory_space<vmem>>, vector<1x512xf32>
    %cst_86 = arith.constant 0.000000e+00 : f32
    %140 = vector.broadcast %cst_86 : f32 to vector<1x512xf32>
    %141 = arith.cmpf ogt, %139, %140 : vector<1x512xf32>
    %cst_87 = arith.constant 0.000000e+00 : f32
    %142 = vector.shape_cast %141 : vector<1x512xi1> to vector<1x512xi1>
    %143 = vector.broadcast %142 : vector<1x512xi1> to vector<4x512xi1>
    %144 = vector.broadcast %cst_87 : f32 to vector<4x512xf32>
    %145 = arith.select %143, %138, %144 : vector<4x512xi1>, vector<4x512xf32>
    %c60 = arith.constant 60 : index
    %c0_88 = arith.constant 0 : index
    %146 = vector.load %arg8[%c60, %c0_88] : memref<112x512xf32, #tpu.memory_space<vmem>>, vector<4x512xf32>
    tpu.vector_store %arg8[%c60, %c0_88], %145 {strides = array<i32>} : memref<112x512xf32, #tpu.memory_space<vmem>>, vector<4x512xf32>,
    %c0_89 = arith.constant 0 : index
    %c136 = arith.constant 136 : index
    %147 = vector.load %arg6[%c0_89, %c136] : memref<4x768xf32, #tpu.memory_space<vmem>>, vector<4x512xf32>
    %c16_90 = arith.constant 16 : index
    %c0_91 = arith.constant 0 : index
    %148 = vector.load %arg4[%c16_90, %c0_91] : memref<27x512xf32, #tpu.memory_space<vmem>>, vector<1x512xf32>
    %cst_92 = arith.constant 0.000000e+00 : f32
    %149 = vector.broadcast %cst_92 : f32 to vector<1x512xf32>
    %150 = arith.cmpf ogt, %148, %149 : vector<1x512xf32>
    %cst_93 = arith.constant 0.000000e+00 : f32
    %151 = vector.shape_cast %150 : vector<1x512xi1> to vector<1x512xi1>
    %152 = vector.broadcast %151 : vector<1x512xi1> to vector<4x512xi1>
    %153 = vector.broadcast %cst_93 : f32 to vector<4x512xf32>
    %154 = arith.select %152, %147, %153 : vector<4x512xi1>, vector<4x512xf32>
    %c64_94 = arith.constant 64 : index
    %c0_95 = arith.constant 0 : index
    %155 = vector.load %arg8[%c64_94, %c0_95] : memref<112x512xf32, #tpu.memory_space<vmem>>, vector<4x512xf32>
    tpu.vector_store %arg8[%c64_94, %c0_95], %154 {strides = array<i32>} : memref<112x512xf32, #tpu.memory_space<vmem>>, vector<4x512xf32>,
    %c0_96 = arith.constant 0 : index
    %c137 = arith.constant 137 : index
    %156 = vector.load %arg6[%c0_96, %c137] : memref<4x768xf32, #tpu.memory_space<vmem>>, vector<4x512xf32>
    %c17 = arith.constant 17 : index
    %c0_97 = arith.constant 0 : index
    %157 = vector.load %arg4[%c17, %c0_97] : memref<27x512xf32, #tpu.memory_space<vmem>>, vector<1x512xf32>
    %cst_98 = arith.constant 0.000000e+00 : f32
    %158 = vector.broadcast %cst_98 : f32 to vector<1x512xf32>
    %159 = arith.cmpf ogt, %157, %158 : vector<1x512xf32>
    %cst_99 = arith.constant 0.000000e+00 : f32
    %160 = vector.shape_cast %159 : vector<1x512xi1> to vector<1x512xi1>
    %161 = vector.broadcast %160 : vector<1x512xi1> to vector<4x512xi1>
    %162 = vector.broadcast %cst_99 : f32 to vector<4x512xf32>
    %163 = arith.select %161, %156, %162 : vector<4x512xi1>, vector<4x512xf32>
    %c68 = arith.constant 68 : index
    %c0_100 = arith.constant 0 : index
    %164 = vector.load %arg8[%c68, %c0_100] : memref<112x512xf32, #tpu.memory_space<vmem>>, vector<4x512xf32>
    tpu.vector_store %arg8[%c68, %c0_100], %163 {strides = array<i32>} : memref<112x512xf32, #tpu.memory_space<vmem>>, vector<4x512xf32>,
    %c0_101 = arith.constant 0 : index
    %c183 = arith.constant 183 : index
    %165 = vector.load %arg6[%c0_101, %c183] : memref<4x768xf32, #tpu.memory_space<vmem>>, vector<4x512xf32>
    %c18 = arith.constant 18 : index
    %c0_102 = arith.constant 0 : index
    %166 = vector.load %arg4[%c18, %c0_102] : memref<27x512xf32, #tpu.memory_space<vmem>>, vector<1x512xf32>
    %cst_103 = arith.constant 0.000000e+00 : f32
    %167 = vector.broadcast %cst_103 : f32 to vector<1x512xf32>
    %168 = arith.cmpf ogt, %166, %167 : vector<1x512xf32>
    %cst_104 = arith.constant 0.000000e+00 : f32
    %169 = vector.shape_cast %168 : vector<1x512xi1> to vector<1x512xi1>
    %170 = vector.broadcast %169 : vector<1x512xi1> to vector<4x512xi1>
    %171 = vector.broadcast %cst_104 : f32 to vector<4x512xf32>
    %172 = arith.select %170, %165, %171 : vector<4x512xi1>, vector<4x512xf32>
    %c72_105 = arith.constant 72 : index
    %c0_106 = arith.constant 0 : index
    %173 = vector.load %arg8[%c72_105, %c0_106] : memref<112x512xf32, #tpu.memory_space<vmem>>, vector<4x512xf32>
    tpu.vector_store %arg8[%c72_105, %c0_106], %172 {strides = array<i32>} : memref<112x512xf32, #tpu.memory_space<vmem>>, vector<4x512xf32>,
    %c0_107 = arith.constant 0 : index
    %c184 = arith.constant 184 : index
    %174 = vector.load %arg6[%c0_107, %c184] : memref<4x768xf32, #tpu.memory_space<vmem>>, vector<4x512xf32>
    %c19 = arith.constant 19 : index
    %c0_108 = arith.constant 0 : index
    %175 = vector.load %arg4[%c19, %c0_108] : memref<27x512xf32, #tpu.memory_space<vmem>>, vector<1x512xf32>
    %cst_109 = arith.constant 0.000000e+00 : f32
    %176 = vector.broadcast %cst_109 : f32 to vector<1x512xf32>
    %177 = arith.cmpf ogt, %175, %176 : vector<1x512xf32>
    %cst_110 = arith.constant 0.000000e+00 : f32
    %178 = vector.shape_cast %177 : vector<1x512xi1> to vector<1x512xi1>
    %179 = vector.broadcast %178 : vector<1x512xi1> to vector<4x512xi1>
    %180 = vector.broadcast %cst_110 : f32 to vector<4x512xf32>
    %181 = arith.select %179, %174, %180 : vector<4x512xi1>, vector<4x512xf32>
    %c76 = arith.constant 76 : index
    %c0_111 = arith.constant 0 : index
    %182 = vector.load %arg8[%c76, %c0_111] : memref<112x512xf32, #tpu.memory_space<vmem>>, vector<4x512xf32>
    tpu.vector_store %arg8[%c76, %c0_111], %181 {strides = array<i32>} : memref<112x512xf32, #tpu.memory_space<vmem>>, vector<4x512xf32>,
    %c0_112 = arith.constant 0 : index
    %c185 = arith.constant 185 : index
    %183 = vector.load %arg6[%c0_112, %c185] : memref<4x768xf32, #tpu.memory_space<vmem>>, vector<4x512xf32>
    %c20_113 = arith.constant 20 : index
    %c0_114 = arith.constant 0 : index
    %184 = vector.load %arg4[%c20_113, %c0_114] : memref<27x512xf32, #tpu.memory_space<vmem>>, vector<1x512xf32>
    %cst_115 = arith.constant 0.000000e+00 : f32
    %185 = vector.broadcast %cst_115 : f32 to vector<1x512xf32>
    %186 = arith.cmpf ogt, %184, %185 : vector<1x512xf32>
    %cst_116 = arith.constant 0.000000e+00 : f32
    %187 = vector.shape_cast %186 : vector<1x512xi1> to vector<1x512xi1>
    %188 = vector.broadcast %187 : vector<1x512xi1> to vector<4x512xi1>
    %189 = vector.broadcast %cst_116 : f32 to vector<4x512xf32>
    %190 = arith.select %188, %183, %189 : vector<4x512xi1>, vector<4x512xf32>
    %c80 = arith.constant 80 : index
    %c0_117 = arith.constant 0 : index
    %191 = vector.load %arg8[%c80, %c0_117] : memref<112x512xf32, #tpu.memory_space<vmem>>, vector<4x512xf32>
    tpu.vector_store %arg8[%c80, %c0_117], %190 {strides = array<i32>} : memref<112x512xf32, #tpu.memory_space<vmem>>, vector<4x512xf32>,
    %c0_118 = arith.constant 0 : index
    %c191 = arith.constant 191 : index
    %192 = vector.load %arg6[%c0_118, %c191] : memref<4x768xf32, #tpu.memory_space<vmem>>, vector<4x512xf32>
    %c21 = arith.constant 21 : index
    %c0_119 = arith.constant 0 : index
    %193 = vector.load %arg4[%c21, %c0_119] : memref<27x512xf32, #tpu.memory_space<vmem>>, vector<1x512xf32>
    %cst_120 = arith.constant 0.000000e+00 : f32
    %194 = vector.broadcast %cst_120 : f32 to vector<1x512xf32>
    %195 = arith.cmpf ogt, %193, %194 : vector<1x512xf32>
    %cst_121 = arith.constant 0.000000e+00 : f32
    %196 = vector.shape_cast %195 : vector<1x512xi1> to vector<1x512xi1>
    %197 = vector.broadcast %196 : vector<1x512xi1> to vector<4x512xi1>
    %198 = vector.broadcast %cst_121 : f32 to vector<4x512xf32>
    %199 = arith.select %197, %192, %198 : vector<4x512xi1>, vector<4x512xf32>
    %c84 = arith.constant 84 : index
    %c0_122 = arith.constant 0 : index
    %200 = vector.load %arg8[%c84, %c0_122] : memref<112x512xf32, #tpu.memory_space<vmem>>, vector<4x512xf32>
    tpu.vector_store %arg8[%c84, %c0_122], %199 {strides = array<i32>} : memref<112x512xf32, #tpu.memory_space<vmem>>, vector<4x512xf32>,
    %c0_123 = arith.constant 0 : index
    %c192 = arith.constant 192 : index
    %201 = vector.load %arg6[%c0_123, %c192] : memref<4x768xf32, #tpu.memory_space<vmem>>, vector<4x512xf32>
    %c22 = arith.constant 22 : index
    %c0_124 = arith.constant 0 : index
    %202 = vector.load %arg4[%c22, %c0_124] : memref<27x512xf32, #tpu.memory_space<vmem>>, vector<1x512xf32>
    %cst_125 = arith.constant 0.000000e+00 : f32
    %203 = vector.broadcast %cst_125 : f32 to vector<1x512xf32>
    %204 = arith.cmpf ogt, %202, %203 : vector<1x512xf32>
    %cst_126 = arith.constant 0.000000e+00 : f32
    %205 = vector.shape_cast %204 : vector<1x512xi1> to vector<1x512xi1>
    %206 = vector.broadcast %205 : vector<1x512xi1> to vector<4x512xi1>
    %207 = vector.broadcast %cst_126 : f32 to vector<4x512xf32>
    %208 = arith.select %206, %201, %207 : vector<4x512xi1>, vector<4x512xf32>
    %c88 = arith.constant 88 : index
    %c0_127 = arith.constant 0 : index
    %209 = vector.load %arg8[%c88, %c0_127] : memref<112x512xf32, #tpu.memory_space<vmem>>, vector<4x512xf32>
    tpu.vector_store %arg8[%c88, %c0_127], %208 {strides = array<i32>} : memref<112x512xf32, #tpu.memory_space<vmem>>, vector<4x512xf32>,
    %c0_128 = arith.constant 0 : index
    %c193 = arith.constant 193 : index
    %210 = vector.load %arg6[%c0_128, %c193] : memref<4x768xf32, #tpu.memory_space<vmem>>, vector<4x512xf32>
    %c23 = arith.constant 23 : index
    %c0_129 = arith.constant 0 : index
    %211 = vector.load %arg4[%c23, %c0_129] : memref<27x512xf32, #tpu.memory_space<vmem>>, vector<1x512xf32>
    %cst_130 = arith.constant 0.000000e+00 : f32
    %212 = vector.broadcast %cst_130 : f32 to vector<1x512xf32>
    %213 = arith.cmpf ogt, %211, %212 : vector<1x512xf32>
    %cst_131 = arith.constant 0.000000e+00 : f32
    %214 = vector.shape_cast %213 : vector<1x512xi1> to vector<1x512xi1>
    %215 = vector.broadcast %214 : vector<1x512xi1> to vector<4x512xi1>
    %216 = vector.broadcast %cst_131 : f32 to vector<4x512xf32>
    %217 = arith.select %215, %210, %216 : vector<4x512xi1>, vector<4x512xf32>
    %c92 = arith.constant 92 : index
    %c0_132 = arith.constant 0 : index
    %218 = vector.load %arg8[%c92, %c0_132] : memref<112x512xf32, #tpu.memory_space<vmem>>, vector<4x512xf32>
    tpu.vector_store %arg8[%c92, %c0_132], %217 {strides = array<i32>} : memref<112x512xf32, #tpu.memory_space<vmem>>, vector<4x512xf32>,
    %c0_133 = arith.constant 0 : index
    %c199 = arith.constant 199 : index
    %219 = vector.load %arg6[%c0_133, %c199] : memref<4x768xf32, #tpu.memory_space<vmem>>, vector<4x512xf32>
    %c24_134 = arith.constant 24 : index
    %c0_135 = arith.constant 0 : index
    %220 = vector.load %arg4[%c24_134, %c0_135] : memref<27x512xf32, #tpu.memory_space<vmem>>, vector<1x512xf32>
    %cst_136 = arith.constant 0.000000e+00 : f32
    %221 = vector.broadcast %cst_136 : f32 to vector<1x512xf32>
    %222 = arith.cmpf ogt, %220, %221 : vector<1x512xf32>
    %cst_137 = arith.constant 0.000000e+00 : f32
    %223 = vector.shape_cast %222 : vector<1x512xi1> to vector<1x512xi1>
    %224 = vector.broadcast %223 : vector<1x512xi1> to vector<4x512xi1>
    %225 = vector.broadcast %cst_137 : f32 to vector<4x512xf32>
    %226 = arith.select %224, %219, %225 : vector<4x512xi1>, vector<4x512xf32>
    %c96 = arith.constant 96 : index
    %c0_138 = arith.constant 0 : index
    %227 = vector.load %arg8[%c96, %c0_138] : memref<112x512xf32, #tpu.memory_space<vmem>>, vector<4x512xf32>
    tpu.vector_store %arg8[%c96, %c0_138], %226 {strides = array<i32>} : memref<112x512xf32, #tpu.memory_space<vmem>>, vector<4x512xf32>,
    %c0_139 = arith.constant 0 : index
    %c200 = arith.constant 200 : index
    %228 = vector.load %arg6[%c0_139, %c200] : memref<4x768xf32, #tpu.memory_space<vmem>>, vector<4x512xf32>
    %c25 = arith.constant 25 : index
    %c0_140 = arith.constant 0 : index
    %229 = vector.load %arg4[%c25, %c0_140] : memref<27x512xf32, #tpu.memory_space<vmem>>, vector<1x512xf32>
    %cst_141 = arith.constant 0.000000e+00 : f32
    %230 = vector.broadcast %cst_141 : f32 to vector<1x512xf32>
    %231 = arith.cmpf ogt, %229, %230 : vector<1x512xf32>
    %cst_142 = arith.constant 0.000000e+00 : f32
    %232 = vector.shape_cast %231 : vector<1x512xi1> to vector<1x512xi1>
    %233 = vector.broadcast %232 : vector<1x512xi1> to vector<4x512xi1>
    %234 = vector.broadcast %cst_142 : f32 to vector<4x512xf32>
    %235 = arith.select %233, %228, %234 : vector<4x512xi1>, vector<4x512xf32>
    %c100 = arith.constant 100 : index
    %c0_143 = arith.constant 0 : index
    %236 = vector.load %arg8[%c100, %c0_143] : memref<112x512xf32, #tpu.memory_space<vmem>>, vector<4x512xf32>
    tpu.vector_store %arg8[%c100, %c0_143], %235 {strides = array<i32>} : memref<112x512xf32, #tpu.memory_space<vmem>>, vector<4x512xf32>,
    %c0_144 = arith.constant 0 : index
    %c201 = arith.constant 201 : index
    %237 = vector.load %arg6[%c0_144, %c201] : memref<4x768xf32, #tpu.memory_space<vmem>>, vector<4x512xf32>
    %c26 = arith.constant 26 : index
    %c0_145 = arith.constant 0 : index
    %238 = vector.load %arg4[%c26, %c0_145] : memref<27x512xf32, #tpu.memory_space<vmem>>, vector<1x512xf32>
    %cst_146 = arith.constant 0.000000e+00 : f32
    %239 = vector.broadcast %cst_146 : f32 to vector<1x512xf32>
    %240 = arith.cmpf ogt, %238, %239 : vector<1x512xf32>
    %cst_147 = arith.constant 0.000000e+00 : f32
    %241 = vector.shape_cast %240 : vector<1x512xi1> to vector<1x512xi1>
    %242 = vector.broadcast %241 : vector<1x512xi1> to vector<4x512xi1>
    %243 = vector.broadcast %cst_147 : f32 to vector<4x512xf32>
    %244 = arith.select %242, %237, %243 : vector<4x512xi1>, vector<4x512xf32>
    %c104 = arith.constant 104 : index
    %c0_148 = arith.constant 0 : index
    %245 = vector.load %arg8[%c104, %c0_148] : memref<112x512xf32, #tpu.memory_space<vmem>>, vector<4x512xf32>
    tpu.vector_store %arg8[%c104, %c0_148], %244 {strides = array<i32>} : memref<112x512xf32, #tpu.memory_space<vmem>>, vector<4x512xf32>,
    %cst_149 = arith.constant 0.000000e+00 : f32
    %246 = vector.broadcast %cst_149 : f32 to vector<4x512xf32>
    %c108 = arith.constant 108 : index
    %c0_150 = arith.constant 0 : index
    %247 = vector.load %arg8[%c108, %c0_150] : memref<112x512xf32, #tpu.memory_space<vmem>>, vector<4x512xf32>
    tpu.vector_store %arg8[%c108, %c0_150], %246 {strides = array<i32>} : memref<112x512xf32, #tpu.memory_space<vmem>>, vector<4x512xf32>,
    %c0_151 = arith.constant 0 : index
    %c0_152 = arith.constant 0 : index
    %248 = vector.load %arg2[%c0_151, %c0_152] : memref<8x112xf32, #tpu.memory_space<vmem>>, vector<8x112xf32>
    %c0_153 = arith.constant 0 : index
    %c0_154 = arith.constant 0 : index
    %249 = vector.load %arg8[%c0_153, %c0_154] : memref<112x512xf32, #tpu.memory_space<vmem>>, vector<112x512xf32>
    %cst_155 = arith.constant dense<0.000000e+00> : vector<8x512xf32>
    %250 = tpu.matmul %248, %249, %cst_155 {dimension_numbers = #tpu.dot_dimension_numbers<[1], [0], [0], [1], [0, 0, 1, 1], [], []>} : vector<8x112xf32>, vector<112x512xf32>, vector<8x512xf32> -> vector<8x512xf32>
    %cst_156 = arith.constant dense<0.000000e+00> : vector<8xf32>
    %251 = vector.multi_reduction <add>, %250, %cst_156 [1] : vector<8x512xf32> to vector<8xf32>
    %252 = vector.shape_cast %251 : vector<8xf32> to vector<8x1xf32>
    %cst_157 = arith.constant 0.001953125 : f32
    %253 = vector.broadcast %cst_157 : f32 to vector<8x1xf32>
    %254 = arith.mulf %252, %253 : vector<8x1xf32>
    %255 = arith.mulf %250, %250 : vector<8x512xf32>
    %cst_158 = arith.constant dense<0.000000e+00> : vector<8xf32>
    %256 = vector.multi_reduction <add>, %255, %cst_158 [1] : vector<8x512xf32> to vector<8xf32>
    %257 = vector.shape_cast %256 : vector<8xf32> to vector<8x1xf32>
    %cst_159 = arith.constant 0.001953125 : f32
    %258 = vector.broadcast %cst_159 : f32 to vector<8x1xf32>
    %259 = arith.mulf %257, %258 : vector<8x1xf32>
    %260 = arith.mulf %254, %254 : vector<8x1xf32>
    %261 = arith.subf %259, %260 : vector<8x1xf32>
    %262 = vector.broadcast %254 : vector<8x1xf32> to vector<8x512xf32>
    %263 = arith.subf %250, %262 : vector<8x512xf32>
    %cst_160 = arith.constant 9.99999974E-6 : f32
    %264 = vector.broadcast %cst_160 : f32 to vector<8x1xf32>
    %265 = arith.addf %261, %264 : vector<8x1xf32>
    %266 = math.rsqrt %265 : vector<8x1xf32>
    %267 = vector.broadcast %266 : vector<8x1xf32> to vector<8x512xf32>
    %268 = arith.mulf %263, %267 : vector<8x512xf32>
    %cst_161 = arith.constant 0.000000e+00 : f32
    %269 = vector.broadcast %cst_161 : f32 to vector<8x512xf32>
    %270 = arith.cmpf oge, %268, %269 : vector<8x512xf32>
    %cst_162 = arith.constant 0.00999999977 : f32
    %271 = vector.broadcast %cst_162 : f32 to vector<8x512xf32>
    %272 = arith.mulf %271, %268 : vector<8x512xf32>
    %273 = arith.select %270, %268, %272 : vector<8x512xi1>, vector<8x512xf32>
    %c0_163 = arith.constant 0 : index
    %c128_164 = arith.constant 128 : index
    %274 = vector.load %arg7[%c0_163, %c128_164] : memref<8x768xf32, #tpu.memory_space<vmem>>, vector<8x512xf32>
    tpu.vector_store %arg7[%c0_163, %c128_164], %273 {strides = array<i32>} : memref<8x768xf32, #tpu.memory_space<vmem>>, vector<8x512xf32>,
    %c0_165 = arith.constant 0 : index
    %c55_166 = arith.constant 55 : index
    %275 = vector.load %arg7[%c0_165, %c55_166] : memref<8x768xf32, #tpu.memory_space<vmem>>, vector<8x512xf32>
    %c0_167 = arith.constant 0 : index
    %c0_168 = arith.constant 0 : index
    %276 = vector.load %arg4[%c0_167, %c0_168] : memref<27x512xf32, #tpu.memory_space<vmem>>, vector<1x512xf32>
    %cst_169 = arith.constant 0.000000e+00 : f32
    %277 = vector.broadcast %cst_169 : f32 to vector<1x512xf32>
    %278 = arith.cmpf ogt, %276, %277 : vector<1x512xf32>
    %cst_170 = arith.constant 0.000000e+00 : f32
    %279 = vector.shape_cast %278 : vector<1x512xi1> to vector<1x512xi1>
    %280 = vector.broadcast %279 : vector<1x512xi1> to vector<8x512xi1>
    %281 = vector.broadcast %cst_170 : f32 to vector<8x512xf32>
    %282 = arith.select %280, %275, %281 : vector<8x512xi1>, vector<8x512xf32>
    %c0_171 = arith.constant 0 : index
    %c0_172 = arith.constant 0 : index
    %283 = vector.load %arg9[%c0_171, %c0_172] : memref<216x512xf32, #tpu.memory_space<vmem>>, vector<8x512xf32>
    tpu.vector_store %arg9[%c0_171, %c0_172], %282 {strides = array<i32>} : memref<216x512xf32, #tpu.memory_space<vmem>>, vector<8x512xf32>,
    %c0_173 = arith.constant 0 : index
    %c56_174 = arith.constant 56 : index
    %284 = vector.load %arg7[%c0_173, %c56_174] : memref<8x768xf32, #tpu.memory_space<vmem>>, vector<8x512xf32>
    %c1_175 = arith.constant 1 : index
    %c0_176 = arith.constant 0 : index
    %285 = vector.load %arg4[%c1_175, %c0_176] : memref<27x512xf32, #tpu.memory_space<vmem>>, vector<1x512xf32>
    %cst_177 = arith.constant 0.000000e+00 : f32
    %286 = vector.broadcast %cst_177 : f32 to vector<1x512xf32>
    %287 = arith.cmpf ogt, %285, %286 : vector<1x512xf32>
    %cst_178 = arith.constant 0.000000e+00 : f32
    %288 = vector.shape_cast %287 : vector<1x512xi1> to vector<1x512xi1>
    %289 = vector.broadcast %288 : vector<1x512xi1> to vector<8x512xi1>
    %290 = vector.broadcast %cst_178 : f32 to vector<8x512xf32>
    %291 = arith.select %289, %284, %290 : vector<8x512xi1>, vector<8x512xf32>
    %c8_179 = arith.constant 8 : index
    %c0_180 = arith.constant 0 : index
    %292 = vector.load %arg9[%c8_179, %c0_180] : memref<216x512xf32, #tpu.memory_space<vmem>>, vector<8x512xf32>
    tpu.vector_store %arg9[%c8_179, %c0_180], %291 {strides = array<i32>} : memref<216x512xf32, #tpu.memory_space<vmem>>, vector<8x512xf32>,
    %c0_181 = arith.constant 0 : index
    %c57_182 = arith.constant 57 : index
    %293 = vector.load %arg7[%c0_181, %c57_182] : memref<8x768xf32, #tpu.memory_space<vmem>>, vector<8x512xf32>
    %c2_183 = arith.constant 2 : index
    %c0_184 = arith.constant 0 : index
    %294 = vector.load %arg4[%c2_183, %c0_184] : memref<27x512xf32, #tpu.memory_space<vmem>>, vector<1x512xf32>
    %cst_185 = arith.constant 0.000000e+00 : f32
    %295 = vector.broadcast %cst_185 : f32 to vector<1x512xf32>
    %296 = arith.cmpf ogt, %294, %295 : vector<1x512xf32>
    %cst_186 = arith.constant 0.000000e+00 : f32
    %297 = vector.shape_cast %296 : vector<1x512xi1> to vector<1x512xi1>
    %298 = vector.broadcast %297 : vector<1x512xi1> to vector<8x512xi1>
    %299 = vector.broadcast %cst_186 : f32 to vector<8x512xf32>
    %300 = arith.select %298, %293, %299 : vector<8x512xi1>, vector<8x512xf32>
    %c16_187 = arith.constant 16 : index
    %c0_188 = arith.constant 0 : index
    %301 = vector.load %arg9[%c16_187, %c0_188] : memref<216x512xf32, #tpu.memory_space<vmem>>, vector<8x512xf32>
    tpu.vector_store %arg9[%c16_187, %c0_188], %300 {strides = array<i32>} : memref<216x512xf32, #tpu.memory_space<vmem>>, vector<8x512xf32>,
    %c0_189 = arith.constant 0 : index
    %c63_190 = arith.constant 63 : index
    %302 = vector.load %arg7[%c0_189, %c63_190] : memref<8x768xf32, #tpu.memory_space<vmem>>, vector<8x512xf32>
    %c3_191 = arith.constant 3 : index
    %c0_192 = arith.constant 0 : index
    %303 = vector.load %arg4[%c3_191, %c0_192] : memref<27x512xf32, #tpu.memory_space<vmem>>, vector<1x512xf32>
    %cst_193 = arith.constant 0.000000e+00 : f32
    %304 = vector.broadcast %cst_193 : f32 to vector<1x512xf32>
    %305 = arith.cmpf ogt, %303, %304 : vector<1x512xf32>
    %cst_194 = arith.constant 0.000000e+00 : f32
    %306 = vector.shape_cast %305 : vector<1x512xi1> to vector<1x512xi1>
    %307 = vector.broadcast %306 : vector<1x512xi1> to vector<8x512xi1>
    %308 = vector.broadcast %cst_194 : f32 to vector<8x512xf32>
    %309 = arith.select %307, %302, %308 : vector<8x512xi1>, vector<8x512xf32>
    %c24_195 = arith.constant 24 : index
    %c0_196 = arith.constant 0 : index
    %310 = vector.load %arg9[%c24_195, %c0_196] : memref<216x512xf32, #tpu.memory_space<vmem>>, vector<8x512xf32>
    tpu.vector_store %arg9[%c24_195, %c0_196], %309 {strides = array<i32>} : memref<216x512xf32, #tpu.memory_space<vmem>>, vector<8x512xf32>,
    %c0_197 = arith.constant 0 : index
    %c64_198 = arith.constant 64 : index
    %311 = vector.load %arg7[%c0_197, %c64_198] : memref<8x768xf32, #tpu.memory_space<vmem>>, vector<8x512xf32>
    %c4_199 = arith.constant 4 : index
    %c0_200 = arith.constant 0 : index
    %312 = vector.load %arg4[%c4_199, %c0_200] : memref<27x512xf32, #tpu.memory_space<vmem>>, vector<1x512xf32>
    %cst_201 = arith.constant 0.000000e+00 : f32
    %313 = vector.broadcast %cst_201 : f32 to vector<1x512xf32>
    %314 = arith.cmpf ogt, %312, %313 : vector<1x512xf32>
    %cst_202 = arith.constant 0.000000e+00 : f32
    %315 = vector.shape_cast %314 : vector<1x512xi1> to vector<1x512xi1>
    %316 = vector.broadcast %315 : vector<1x512xi1> to vector<8x512xi1>
    %317 = vector.broadcast %cst_202 : f32 to vector<8x512xf32>
    %318 = arith.select %316, %311, %317 : vector<8x512xi1>, vector<8x512xf32>
    %c32_203 = arith.constant 32 : index
    %c0_204 = arith.constant 0 : index
    %319 = vector.load %arg9[%c32_203, %c0_204] : memref<216x512xf32, #tpu.memory_space<vmem>>, vector<8x512xf32>
    tpu.vector_store %arg9[%c32_203, %c0_204], %318 {strides = array<i32>} : memref<216x512xf32, #tpu.memory_space<vmem>>, vector<8x512xf32>,
    %c0_205 = arith.constant 0 : index
    %c65_206 = arith.constant 65 : index
    %320 = vector.load %arg7[%c0_205, %c65_206] : memref<8x768xf32, #tpu.memory_space<vmem>>, vector<8x512xf32>
    %c5_207 = arith.constant 5 : index
    %c0_208 = arith.constant 0 : index
    %321 = vector.load %arg4[%c5_207, %c0_208] : memref<27x512xf32, #tpu.memory_space<vmem>>, vector<1x512xf32>
    %cst_209 = arith.constant 0.000000e+00 : f32
    %322 = vector.broadcast %cst_209 : f32 to vector<1x512xf32>
    %323 = arith.cmpf ogt, %321, %322 : vector<1x512xf32>
    %cst_210 = arith.constant 0.000000e+00 : f32
    %324 = vector.shape_cast %323 : vector<1x512xi1> to vector<1x512xi1>
    %325 = vector.broadcast %324 : vector<1x512xi1> to vector<8x512xi1>
    %326 = vector.broadcast %cst_210 : f32 to vector<8x512xf32>
    %327 = arith.select %325, %320, %326 : vector<8x512xi1>, vector<8x512xf32>
    %c40_211 = arith.constant 40 : index
    %c0_212 = arith.constant 0 : index
    %328 = vector.load %arg9[%c40_211, %c0_212] : memref<216x512xf32, #tpu.memory_space<vmem>>, vector<8x512xf32>
    tpu.vector_store %arg9[%c40_211, %c0_212], %327 {strides = array<i32>} : memref<216x512xf32, #tpu.memory_space<vmem>>, vector<8x512xf32>,
    %c0_213 = arith.constant 0 : index
    %c71_214 = arith.constant 71 : index
    %329 = vector.load %arg7[%c0_213, %c71_214] : memref<8x768xf32, #tpu.memory_space<vmem>>, vector<8x512xf32>
    %c6_215 = arith.constant 6 : index
    %c0_216 = arith.constant 0 : index
    %330 = vector.load %arg4[%c6_215, %c0_216] : memref<27x512xf32, #tpu.memory_space<vmem>>, vector<1x512xf32>
    %cst_217 = arith.constant 0.000000e+00 : f32
    %331 = vector.broadcast %cst_217 : f32 to vector<1x512xf32>
    %332 = arith.cmpf ogt, %330, %331 : vector<1x512xf32>
    %cst_218 = arith.constant 0.000000e+00 : f32
    %333 = vector.shape_cast %332 : vector<1x512xi1> to vector<1x512xi1>
    %334 = vector.broadcast %333 : vector<1x512xi1> to vector<8x512xi1>
    %335 = vector.broadcast %cst_218 : f32 to vector<8x512xf32>
    %336 = arith.select %334, %329, %335 : vector<8x512xi1>, vector<8x512xf32>
    %c48_219 = arith.constant 48 : index
    %c0_220 = arith.constant 0 : index
    %337 = vector.load %arg9[%c48_219, %c0_220] : memref<216x512xf32, #tpu.memory_space<vmem>>, vector<8x512xf32>
    tpu.vector_store %arg9[%c48_219, %c0_220], %336 {strides = array<i32>} : memref<216x512xf32, #tpu.memory_space<vmem>>, vector<8x512xf32>,
    %c0_221 = arith.constant 0 : index
    %c72_222 = arith.constant 72 : index
    %338 = vector.load %arg7[%c0_221, %c72_222] : memref<8x768xf32, #tpu.memory_space<vmem>>, vector<8x512xf32>
    %c7_223 = arith.constant 7 : index
    %c0_224 = arith.constant 0 : index
    %339 = vector.load %arg4[%c7_223, %c0_224] : memref<27x512xf32, #tpu.memory_space<vmem>>, vector<1x512xf32>
    %cst_225 = arith.constant 0.000000e+00 : f32
    %340 = vector.broadcast %cst_225 : f32 to vector<1x512xf32>
    %341 = arith.cmpf ogt, %339, %340 : vector<1x512xf32>
    %cst_226 = arith.constant 0.000000e+00 : f32
    %342 = vector.shape_cast %341 : vector<1x512xi1> to vector<1x512xi1>
    %343 = vector.broadcast %342 : vector<1x512xi1> to vector<8x512xi1>
    %344 = vector.broadcast %cst_226 : f32 to vector<8x512xf32>
    %345 = arith.select %343, %338, %344 : vector<8x512xi1>, vector<8x512xf32>
    %c56_227 = arith.constant 56 : index
    %c0_228 = arith.constant 0 : index
    %346 = vector.load %arg9[%c56_227, %c0_228] : memref<216x512xf32, #tpu.memory_space<vmem>>, vector<8x512xf32>
    tpu.vector_store %arg9[%c56_227, %c0_228], %345 {strides = array<i32>} : memref<216x512xf32, #tpu.memory_space<vmem>>, vector<8x512xf32>,
    %c0_229 = arith.constant 0 : index
    %c73_230 = arith.constant 73 : index
    %347 = vector.load %arg7[%c0_229, %c73_230] : memref<8x768xf32, #tpu.memory_space<vmem>>, vector<8x512xf32>
    %c8_231 = arith.constant 8 : index
    %c0_232 = arith.constant 0 : index
    %348 = vector.load %arg4[%c8_231, %c0_232] : memref<27x512xf32, #tpu.memory_space<vmem>>, vector<1x512xf32>
    %cst_233 = arith.constant 0.000000e+00 : f32
    %349 = vector.broadcast %cst_233 : f32 to vector<1x512xf32>
    %350 = arith.cmpf ogt, %348, %349 : vector<1x512xf32>
    %cst_234 = arith.constant 0.000000e+00 : f32
    %351 = vector.shape_cast %350 : vector<1x512xi1> to vector<1x512xi1>
    %352 = vector.broadcast %351 : vector<1x512xi1> to vector<8x512xi1>
    %353 = vector.broadcast %cst_234 : f32 to vector<8x512xf32>
    %354 = arith.select %352, %347, %353 : vector<8x512xi1>, vector<8x512xf32>
    %c64_235 = arith.constant 64 : index
    %c0_236 = arith.constant 0 : index
    %355 = vector.load %arg9[%c64_235, %c0_236] : memref<216x512xf32, #tpu.memory_space<vmem>>, vector<8x512xf32>
    tpu.vector_store %arg9[%c64_235, %c0_236], %354 {strides = array<i32>} : memref<216x512xf32, #tpu.memory_space<vmem>>, vector<8x512xf32>,
    %c0_237 = arith.constant 0 : index
    %c119_238 = arith.constant 119 : index
    %356 = vector.load %arg7[%c0_237, %c119_238] : memref<8x768xf32, #tpu.memory_space<vmem>>, vector<8x512xf32>
    %c9_239 = arith.constant 9 : index
    %c0_240 = arith.constant 0 : index
    %357 = vector.load %arg4[%c9_239, %c0_240] : memref<27x512xf32, #tpu.memory_space<vmem>>, vector<1x512xf32>
    %cst_241 = arith.constant 0.000000e+00 : f32
    %358 = vector.broadcast %cst_241 : f32 to vector<1x512xf32>
    %359 = arith.cmpf ogt, %357, %358 : vector<1x512xf32>
    %cst_242 = arith.constant 0.000000e+00 : f32
    %360 = vector.shape_cast %359 : vector<1x512xi1> to vector<1x512xi1>
    %361 = vector.broadcast %360 : vector<1x512xi1> to vector<8x512xi1>
    %362 = vector.broadcast %cst_242 : f32 to vector<8x512xf32>
    %363 = arith.select %361, %356, %362 : vector<8x512xi1>, vector<8x512xf32>
    %c72_243 = arith.constant 72 : index
    %c0_244 = arith.constant 0 : index
    %364 = vector.load %arg9[%c72_243, %c0_244] : memref<216x512xf32, #tpu.memory_space<vmem>>, vector<8x512xf32>
    tpu.vector_store %arg9[%c72_243, %c0_244], %363 {strides = array<i32>} : memref<216x512xf32, #tpu.memory_space<vmem>>, vector<8x512xf32>,
    %c0_245 = arith.constant 0 : index
    %c120_246 = arith.constant 120 : index
    %365 = vector.load %arg7[%c0_245, %c120_246] : memref<8x768xf32, #tpu.memory_space<vmem>>, vector<8x512xf32>
    %c10_247 = arith.constant 10 : index
    %c0_248 = arith.constant 0 : index
    %366 = vector.load %arg4[%c10_247, %c0_248] : memref<27x512xf32, #tpu.memory_space<vmem>>, vector<1x512xf32>
    %cst_249 = arith.constant 0.000000e+00 : f32
    %367 = vector.broadcast %cst_249 : f32 to vector<1x512xf32>
    %368 = arith.cmpf ogt, %366, %367 : vector<1x512xf32>
    %cst_250 = arith.constant 0.000000e+00 : f32
    %369 = vector.shape_cast %368 : vector<1x512xi1> to vector<1x512xi1>
    %370 = vector.broadcast %369 : vector<1x512xi1> to vector<8x512xi1>
    %371 = vector.broadcast %cst_250 : f32 to vector<8x512xf32>
    %372 = arith.select %370, %365, %371 : vector<8x512xi1>, vector<8x512xf32>
    %c80_251 = arith.constant 80 : index
    %c0_252 = arith.constant 0 : index
    %373 = vector.load %arg9[%c80_251, %c0_252] : memref<216x512xf32, #tpu.memory_space<vmem>>, vector<8x512xf32>
    tpu.vector_store %arg9[%c80_251, %c0_252], %372 {strides = array<i32>} : memref<216x512xf32, #tpu.memory_space<vmem>>, vector<8x512xf32>,
    %c0_253 = arith.constant 0 : index
    %c121_254 = arith.constant 121 : index
    %374 = vector.load %arg7[%c0_253, %c121_254] : memref<8x768xf32, #tpu.memory_space<vmem>>, vector<8x512xf32>
    %c11_255 = arith.constant 11 : index
    %c0_256 = arith.constant 0 : index
    %375 = vector.load %arg4[%c11_255, %c0_256] : memref<27x512xf32, #tpu.memory_space<vmem>>, vector<1x512xf32>
    %cst_257 = arith.constant 0.000000e+00 : f32
    %376 = vector.broadcast %cst_257 : f32 to vector<1x512xf32>
    %377 = arith.cmpf ogt, %375, %376 : vector<1x512xf32>
    %cst_258 = arith.constant 0.000000e+00 : f32
    %378 = vector.shape_cast %377 : vector<1x512xi1> to vector<1x512xi1>
    %379 = vector.broadcast %378 : vector<1x512xi1> to vector<8x512xi1>
    %380 = vector.broadcast %cst_258 : f32 to vector<8x512xf32>
    %381 = arith.select %379, %374, %380 : vector<8x512xi1>, vector<8x512xf32>
    %c88_259 = arith.constant 88 : index
    %c0_260 = arith.constant 0 : index
    %382 = vector.load %arg9[%c88_259, %c0_260] : memref<216x512xf32, #tpu.memory_space<vmem>>, vector<8x512xf32>
    tpu.vector_store %arg9[%c88_259, %c0_260], %381 {strides = array<i32>} : memref<216x512xf32, #tpu.memory_space<vmem>>, vector<8x512xf32>,
    %c0_261 = arith.constant 0 : index
    %c127_262 = arith.constant 127 : index
    %383 = vector.load %arg7[%c0_261, %c127_262] : memref<8x768xf32, #tpu.memory_space<vmem>>, vector<8x512xf32>
    %c12_263 = arith.constant 12 : index
    %c0_264 = arith.constant 0 : index
    %384 = vector.load %arg4[%c12_263, %c0_264] : memref<27x512xf32, #tpu.memory_space<vmem>>, vector<1x512xf32>
    %cst_265 = arith.constant 0.000000e+00 : f32
    %385 = vector.broadcast %cst_265 : f32 to vector<1x512xf32>
    %386 = arith.cmpf ogt, %384, %385 : vector<1x512xf32>
    %cst_266 = arith.constant 0.000000e+00 : f32
    %387 = vector.shape_cast %386 : vector<1x512xi1> to vector<1x512xi1>
    %388 = vector.broadcast %387 : vector<1x512xi1> to vector<8x512xi1>
    %389 = vector.broadcast %cst_266 : f32 to vector<8x512xf32>
    %390 = arith.select %388, %383, %389 : vector<8x512xi1>, vector<8x512xf32>
    %c96_267 = arith.constant 96 : index
    %c0_268 = arith.constant 0 : index
    %391 = vector.load %arg9[%c96_267, %c0_268] : memref<216x512xf32, #tpu.memory_space<vmem>>, vector<8x512xf32>
    tpu.vector_store %arg9[%c96_267, %c0_268], %390 {strides = array<i32>} : memref<216x512xf32, #tpu.memory_space<vmem>>, vector<8x512xf32>,
    %c0_269 = arith.constant 0 : index
    %c128_270 = arith.constant 128 : index
    %392 = vector.load %arg7[%c0_269, %c128_270] : memref<8x768xf32, #tpu.memory_space<vmem>>, vector<8x512xf32>
    %c13_271 = arith.constant 13 : index
    %c0_272 = arith.constant 0 : index
    %393 = vector.load %arg4[%c13_271, %c0_272] : memref<27x512xf32, #tpu.memory_space<vmem>>, vector<1x512xf32>
    %cst_273 = arith.constant 0.000000e+00 : f32
    %394 = vector.broadcast %cst_273 : f32 to vector<1x512xf32>
    %395 = arith.cmpf ogt, %393, %394 : vector<1x512xf32>
    %cst_274 = arith.constant 0.000000e+00 : f32
    %396 = vector.shape_cast %395 : vector<1x512xi1> to vector<1x512xi1>
    %397 = vector.broadcast %396 : vector<1x512xi1> to vector<8x512xi1>
    %398 = vector.broadcast %cst_274 : f32 to vector<8x512xf32>
    %399 = arith.select %397, %392, %398 : vector<8x512xi1>, vector<8x512xf32>
    %c104_275 = arith.constant 104 : index
    %c0_276 = arith.constant 0 : index
    %400 = vector.load %arg9[%c104_275, %c0_276] : memref<216x512xf32, #tpu.memory_space<vmem>>, vector<8x512xf32>
    tpu.vector_store %arg9[%c104_275, %c0_276], %399 {strides = array<i32>} : memref<216x512xf32, #tpu.memory_space<vmem>>, vector<8x512xf32>,
    %c0_277 = arith.constant 0 : index
    %c129_278 = arith.constant 129 : index
    %401 = vector.load %arg7[%c0_277, %c129_278] : memref<8x768xf32, #tpu.memory_space<vmem>>, vector<8x512xf32>
    %c14_279 = arith.constant 14 : index
    %c0_280 = arith.constant 0 : index
    %402 = vector.load %arg4[%c14_279, %c0_280] : memref<27x512xf32, #tpu.memory_space<vmem>>, vector<1x512xf32>
    %cst_281 = arith.constant 0.000000e+00 : f32
    %403 = vector.broadcast %cst_281 : f32 to vector<1x512xf32>
    %404 = arith.cmpf ogt, %402, %403 : vector<1x512xf32>
    %cst_282 = arith.constant 0.000000e+00 : f32
    %405 = vector.shape_cast %404 : vector<1x512xi1> to vector<1x512xi1>
    %406 = vector.broadcast %405 : vector<1x512xi1> to vector<8x512xi1>
    %407 = vector.broadcast %cst_282 : f32 to vector<8x512xf32>
    %408 = arith.select %406, %401, %407 : vector<8x512xi1>, vector<8x512xf32>
    %c112 = arith.constant 112 : index
    %c0_283 = arith.constant 0 : index
    %409 = vector.load %arg9[%c112, %c0_283] : memref<216x512xf32, #tpu.memory_space<vmem>>, vector<8x512xf32>
    tpu.vector_store %arg9[%c112, %c0_283], %408 {strides = array<i32>} : memref<216x512xf32, #tpu.memory_space<vmem>>, vector<8x512xf32>,
    %c0_284 = arith.constant 0 : index
    %c135_285 = arith.constant 135 : index
    %410 = vector.load %arg7[%c0_284, %c135_285] : memref<8x768xf32, #tpu.memory_space<vmem>>, vector<8x512xf32>
    %c15_286 = arith.constant 15 : index
    %c0_287 = arith.constant 0 : index
    %411 = vector.load %arg4[%c15_286, %c0_287] : memref<27x512xf32, #tpu.memory_space<vmem>>, vector<1x512xf32>
    %cst_288 = arith.constant 0.000000e+00 : f32
    %412 = vector.broadcast %cst_288 : f32 to vector<1x512xf32>
    %413 = arith.cmpf ogt, %411, %412 : vector<1x512xf32>
    %cst_289 = arith.constant 0.000000e+00 : f32
    %414 = vector.shape_cast %413 : vector<1x512xi1> to vector<1x512xi1>
    %415 = vector.broadcast %414 : vector<1x512xi1> to vector<8x512xi1>
    %416 = vector.broadcast %cst_289 : f32 to vector<8x512xf32>
    %417 = arith.select %415, %410, %416 : vector<8x512xi1>, vector<8x512xf32>
    %c120_290 = arith.constant 120 : index
    %c0_291 = arith.constant 0 : index
    %418 = vector.load %arg9[%c120_290, %c0_291] : memref<216x512xf32, #tpu.memory_space<vmem>>, vector<8x512xf32>
    tpu.vector_store %arg9[%c120_290, %c0_291], %417 {strides = array<i32>} : memref<216x512xf32, #tpu.memory_space<vmem>>, vector<8x512xf32>,
    %c0_292 = arith.constant 0 : index
    %c136_293 = arith.constant 136 : index
    %419 = vector.load %arg7[%c0_292, %c136_293] : memref<8x768xf32, #tpu.memory_space<vmem>>, vector<8x512xf32>
    %c16_294 = arith.constant 16 : index
    %c0_295 = arith.constant 0 : index
    %420 = vector.load %arg4[%c16_294, %c0_295] : memref<27x512xf32, #tpu.memory_space<vmem>>, vector<1x512xf32>
    %cst_296 = arith.constant 0.000000e+00 : f32
    %421 = vector.broadcast %cst_296 : f32 to vector<1x512xf32>
    %422 = arith.cmpf ogt, %420, %421 : vector<1x512xf32>
    %cst_297 = arith.constant 0.000000e+00 : f32
    %423 = vector.shape_cast %422 : vector<1x512xi1> to vector<1x512xi1>
    %424 = vector.broadcast %423 : vector<1x512xi1> to vector<8x512xi1>
    %425 = vector.broadcast %cst_297 : f32 to vector<8x512xf32>
    %426 = arith.select %424, %419, %425 : vector<8x512xi1>, vector<8x512xf32>
    %c128_298 = arith.constant 128 : index
    %c0_299 = arith.constant 0 : index
    %427 = vector.load %arg9[%c128_298, %c0_299] : memref<216x512xf32, #tpu.memory_space<vmem>>, vector<8x512xf32>
    tpu.vector_store %arg9[%c128_298, %c0_299], %426 {strides = array<i32>} : memref<216x512xf32, #tpu.memory_space<vmem>>, vector<8x512xf32>,
    %c0_300 = arith.constant 0 : index
    %c137_301 = arith.constant 137 : index
    %428 = vector.load %arg7[%c0_300, %c137_301] : memref<8x768xf32, #tpu.memory_space<vmem>>, vector<8x512xf32>
    %c17_302 = arith.constant 17 : index
    %c0_303 = arith.constant 0 : index
    %429 = vector.load %arg4[%c17_302, %c0_303] : memref<27x512xf32, #tpu.memory_space<vmem>>, vector<1x512xf32>
    %cst_304 = arith.constant 0.000000e+00 : f32
    %430 = vector.broadcast %cst_304 : f32 to vector<1x512xf32>
    %431 = arith.cmpf ogt, %429, %430 : vector<1x512xf32>
    %cst_305 = arith.constant 0.000000e+00 : f32
    %432 = vector.shape_cast %431 : vector<1x512xi1> to vector<1x512xi1>
    %433 = vector.broadcast %432 : vector<1x512xi1> to vector<8x512xi1>
    %434 = vector.broadcast %cst_305 : f32 to vector<8x512xf32>
    %435 = arith.select %433, %428, %434 : vector<8x512xi1>, vector<8x512xf32>
    %c136_306 = arith.constant 136 : index
    %c0_307 = arith.constant 0 : index
    %436 = vector.load %arg9[%c136_306, %c0_307] : memref<216x512xf32, #tpu.memory_space<vmem>>, vector<8x512xf32>
    tpu.vector_store %arg9[%c136_306, %c0_307], %435 {strides = array<i32>} : memref<216x512xf32, #tpu.memory_space<vmem>>, vector<8x512xf32>,
    %c0_308 = arith.constant 0 : index
    %c183_309 = arith.constant 183 : index
    %437 = vector.load %arg7[%c0_308, %c183_309] : memref<8x768xf32, #tpu.memory_space<vmem>>, vector<8x512xf32>
    %c18_310 = arith.constant 18 : index
    %c0_311 = arith.constant 0 : index
    %438 = vector.load %arg4[%c18_310, %c0_311] : memref<27x512xf32, #tpu.memory_space<vmem>>, vector<1x512xf32>
    %cst_312 = arith.constant 0.000000e+00 : f32
    %439 = vector.broadcast %cst_312 : f32 to vector<1x512xf32>
    %440 = arith.cmpf ogt, %438, %439 : vector<1x512xf32>
    %cst_313 = arith.constant 0.000000e+00 : f32
    %441 = vector.shape_cast %440 : vector<1x512xi1> to vector<1x512xi1>
    %442 = vector.broadcast %441 : vector<1x512xi1> to vector<8x512xi1>
    %443 = vector.broadcast %cst_313 : f32 to vector<8x512xf32>
    %444 = arith.select %442, %437, %443 : vector<8x512xi1>, vector<8x512xf32>
    %c144 = arith.constant 144 : index
    %c0_314 = arith.constant 0 : index
    %445 = vector.load %arg9[%c144, %c0_314] : memref<216x512xf32, #tpu.memory_space<vmem>>, vector<8x512xf32>
    tpu.vector_store %arg9[%c144, %c0_314], %444 {strides = array<i32>} : memref<216x512xf32, #tpu.memory_space<vmem>>, vector<8x512xf32>,
    %c0_315 = arith.constant 0 : index
    %c184_316 = arith.constant 184 : index
    %446 = vector.load %arg7[%c0_315, %c184_316] : memref<8x768xf32, #tpu.memory_space<vmem>>, vector<8x512xf32>
    %c19_317 = arith.constant 19 : index
    %c0_318 = arith.constant 0 : index
    %447 = vector.load %arg4[%c19_317, %c0_318] : memref<27x512xf32, #tpu.memory_space<vmem>>, vector<1x512xf32>
    %cst_319 = arith.constant 0.000000e+00 : f32
    %448 = vector.broadcast %cst_319 : f32 to vector<1x512xf32>
    %449 = arith.cmpf ogt, %447, %448 : vector<1x512xf32>
    %cst_320 = arith.constant 0.000000e+00 : f32
    %450 = vector.shape_cast %449 : vector<1x512xi1> to vector<1x512xi1>
    %451 = vector.broadcast %450 : vector<1x512xi1> to vector<8x512xi1>
    %452 = vector.broadcast %cst_320 : f32 to vector<8x512xf32>
    %453 = arith.select %451, %446, %452 : vector<8x512xi1>, vector<8x512xf32>
    %c152 = arith.constant 152 : index
    %c0_321 = arith.constant 0 : index
    %454 = vector.load %arg9[%c152, %c0_321] : memref<216x512xf32, #tpu.memory_space<vmem>>, vector<8x512xf32>
    tpu.vector_store %arg9[%c152, %c0_321], %453 {strides = array<i32>} : memref<216x512xf32, #tpu.memory_space<vmem>>, vector<8x512xf32>,
    %c0_322 = arith.constant 0 : index
    %c185_323 = arith.constant 185 : index
    %455 = vector.load %arg7[%c0_322, %c185_323] : memref<8x768xf32, #tpu.memory_space<vmem>>, vector<8x512xf32>
    %c20_324 = arith.constant 20 : index
    %c0_325 = arith.constant 0 : index
    %456 = vector.load %arg4[%c20_324, %c0_325] : memref<27x512xf32, #tpu.memory_space<vmem>>, vector<1x512xf32>
    %cst_326 = arith.constant 0.000000e+00 : f32
    %457 = vector.broadcast %cst_326 : f32 to vector<1x512xf32>
    %458 = arith.cmpf ogt, %456, %457 : vector<1x512xf32>
    %cst_327 = arith.constant 0.000000e+00 : f32
    %459 = vector.shape_cast %458 : vector<1x512xi1> to vector<1x512xi1>
    %460 = vector.broadcast %459 : vector<1x512xi1> to vector<8x512xi1>
    %461 = vector.broadcast %cst_327 : f32 to vector<8x512xf32>
    %462 = arith.select %460, %455, %461 : vector<8x512xi1>, vector<8x512xf32>
    %c160 = arith.constant 160 : index
    %c0_328 = arith.constant 0 : index
    %463 = vector.load %arg9[%c160, %c0_328] : memref<216x512xf32, #tpu.memory_space<vmem>>, vector<8x512xf32>
    tpu.vector_store %arg9[%c160, %c0_328], %462 {strides = array<i32>} : memref<216x512xf32, #tpu.memory_space<vmem>>, vector<8x512xf32>,
    %c0_329 = arith.constant 0 : index
    %c191_330 = arith.constant 191 : index
    %464 = vector.load %arg7[%c0_329, %c191_330] : memref<8x768xf32, #tpu.memory_space<vmem>>, vector<8x512xf32>
    %c21_331 = arith.constant 21 : index
    %c0_332 = arith.constant 0 : index
    %465 = vector.load %arg4[%c21_331, %c0_332] : memref<27x512xf32, #tpu.memory_space<vmem>>, vector<1x512xf32>
    %cst_333 = arith.constant 0.000000e+00 : f32
    %466 = vector.broadcast %cst_333 : f32 to vector<1x512xf32>
    %467 = arith.cmpf ogt, %465, %466 : vector<1x512xf32>
    %cst_334 = arith.constant 0.000000e+00 : f32
    %468 = vector.shape_cast %467 : vector<1x512xi1> to vector<1x512xi1>
    %469 = vector.broadcast %468 : vector<1x512xi1> to vector<8x512xi1>
    %470 = vector.broadcast %cst_334 : f32 to vector<8x512xf32>
    %471 = arith.select %469, %464, %470 : vector<8x512xi1>, vector<8x512xf32>
    %c168 = arith.constant 168 : index
    %c0_335 = arith.constant 0 : index
    %472 = vector.load %arg9[%c168, %c0_335] : memref<216x512xf32, #tpu.memory_space<vmem>>, vector<8x512xf32>
    tpu.vector_store %arg9[%c168, %c0_335], %471 {strides = array<i32>} : memref<216x512xf32, #tpu.memory_space<vmem>>, vector<8x512xf32>,
    %c0_336 = arith.constant 0 : index
    %c192_337 = arith.constant 192 : index
    %473 = vector.load %arg7[%c0_336, %c192_337] : memref<8x768xf32, #tpu.memory_space<vmem>>, vector<8x512xf32>
    %c22_338 = arith.constant 22 : index
    %c0_339 = arith.constant 0 : index
    %474 = vector.load %arg4[%c22_338, %c0_339] : memref<27x512xf32, #tpu.memory_space<vmem>>, vector<1x512xf32>
    %cst_340 = arith.constant 0.000000e+00 : f32
    %475 = vector.broadcast %cst_340 : f32 to vector<1x512xf32>
    %476 = arith.cmpf ogt, %474, %475 : vector<1x512xf32>
    %cst_341 = arith.constant 0.000000e+00 : f32
    %477 = vector.shape_cast %476 : vector<1x512xi1> to vector<1x512xi1>
    %478 = vector.broadcast %477 : vector<1x512xi1> to vector<8x512xi1>
    %479 = vector.broadcast %cst_341 : f32 to vector<8x512xf32>
    %480 = arith.select %478, %473, %479 : vector<8x512xi1>, vector<8x512xf32>
    %c176 = arith.constant 176 : index
    %c0_342 = arith.constant 0 : index
    %481 = vector.load %arg9[%c176, %c0_342] : memref<216x512xf32, #tpu.memory_space<vmem>>, vector<8x512xf32>
    tpu.vector_store %arg9[%c176, %c0_342], %480 {strides = array<i32>} : memref<216x512xf32, #tpu.memory_space<vmem>>, vector<8x512xf32>,
    %c0_343 = arith.constant 0 : index
    %c193_344 = arith.constant 193 : index
    %482 = vector.load %arg7[%c0_343, %c193_344] : memref<8x768xf32, #tpu.memory_space<vmem>>, vector<8x512xf32>
    %c23_345 = arith.constant 23 : index
    %c0_346 = arith.constant 0 : index
    %483 = vector.load %arg4[%c23_345, %c0_346] : memref<27x512xf32, #tpu.memory_space<vmem>>, vector<1x512xf32>
    %cst_347 = arith.constant 0.000000e+00 : f32
    %484 = vector.broadcast %cst_347 : f32 to vector<1x512xf32>
    %485 = arith.cmpf ogt, %483, %484 : vector<1x512xf32>
    %cst_348 = arith.constant 0.000000e+00 : f32
    %486 = vector.shape_cast %485 : vector<1x512xi1> to vector<1x512xi1>
    %487 = vector.broadcast %486 : vector<1x512xi1> to vector<8x512xi1>
    %488 = vector.broadcast %cst_348 : f32 to vector<8x512xf32>
    %489 = arith.select %487, %482, %488 : vector<8x512xi1>, vector<8x512xf32>
    %c184_349 = arith.constant 184 : index
    %c0_350 = arith.constant 0 : index
    %490 = vector.load %arg9[%c184_349, %c0_350] : memref<216x512xf32, #tpu.memory_space<vmem>>, vector<8x512xf32>
    tpu.vector_store %arg9[%c184_349, %c0_350], %489 {strides = array<i32>} : memref<216x512xf32, #tpu.memory_space<vmem>>, vector<8x512xf32>,
    %c0_351 = arith.constant 0 : index
    %c199_352 = arith.constant 199 : index
    %491 = vector.load %arg7[%c0_351, %c199_352] : memref<8x768xf32, #tpu.memory_space<vmem>>, vector<8x512xf32>
    %c24_353 = arith.constant 24 : index
    %c0_354 = arith.constant 0 : index
    %492 = vector.load %arg4[%c24_353, %c0_354] : memref<27x512xf32, #tpu.memory_space<vmem>>, vector<1x512xf32>
    %cst_355 = arith.constant 0.000000e+00 : f32
    %493 = vector.broadcast %cst_355 : f32 to vector<1x512xf32>
    %494 = arith.cmpf ogt, %492, %493 : vector<1x512xf32>
    %cst_356 = arith.constant 0.000000e+00 : f32
    %495 = vector.shape_cast %494 : vector<1x512xi1> to vector<1x512xi1>
    %496 = vector.broadcast %495 : vector<1x512xi1> to vector<8x512xi1>
    %497 = vector.broadcast %cst_356 : f32 to vector<8x512xf32>
    %498 = arith.select %496, %491, %497 : vector<8x512xi1>, vector<8x512xf32>
    %c192_357 = arith.constant 192 : index
    %c0_358 = arith.constant 0 : index
    %499 = vector.load %arg9[%c192_357, %c0_358] : memref<216x512xf32, #tpu.memory_space<vmem>>, vector<8x512xf32>
    tpu.vector_store %arg9[%c192_357, %c0_358], %498 {strides = array<i32>} : memref<216x512xf32, #tpu.memory_space<vmem>>, vector<8x512xf32>,
    %c0_359 = arith.constant 0 : index
    %c200_360 = arith.constant 200 : index
    %500 = vector.load %arg7[%c0_359, %c200_360] : memref<8x768xf32, #tpu.memory_space<vmem>>, vector<8x512xf32>
    %c25_361 = arith.constant 25 : index
    %c0_362 = arith.constant 0 : index
    %501 = vector.load %arg4[%c25_361, %c0_362] : memref<27x512xf32, #tpu.memory_space<vmem>>, vector<1x512xf32>
    %cst_363 = arith.constant 0.000000e+00 : f32
    %502 = vector.broadcast %cst_363 : f32 to vector<1x512xf32>
    %503 = arith.cmpf ogt, %501, %502 : vector<1x512xf32>
    %cst_364 = arith.constant 0.000000e+00 : f32
    %504 = vector.shape_cast %503 : vector<1x512xi1> to vector<1x512xi1>
    %505 = vector.broadcast %504 : vector<1x512xi1> to vector<8x512xi1>
    %506 = vector.broadcast %cst_364 : f32 to vector<8x512xf32>
    %507 = arith.select %505, %500, %506 : vector<8x512xi1>, vector<8x512xf32>
    %c200_365 = arith.constant 200 : index
    %c0_366 = arith.constant 0 : index
    %508 = vector.load %arg9[%c200_365, %c0_366] : memref<216x512xf32, #tpu.memory_space<vmem>>, vector<8x512xf32>
    tpu.vector_store %arg9[%c200_365, %c0_366], %507 {strides = array<i32>} : memref<216x512xf32, #tpu.memory_space<vmem>>, vector<8x512xf32>,
    %c0_367 = arith.constant 0 : index
    %c201_368 = arith.constant 201 : index
    %509 = vector.load %arg7[%c0_367, %c201_368] : memref<8x768xf32, #tpu.memory_space<vmem>>, vector<8x512xf32>
    %c26_369 = arith.constant 26 : index
    %c0_370 = arith.constant 0 : index
    %510 = vector.load %arg4[%c26_369, %c0_370] : memref<27x512xf32, #tpu.memory_space<vmem>>, vector<1x512xf32>
    %cst_371 = arith.constant 0.000000e+00 : f32
    %511 = vector.broadcast %cst_371 : f32 to vector<1x512xf32>
    %512 = arith.cmpf ogt, %510, %511 : vector<1x512xf32>
    %cst_372 = arith.constant 0.000000e+00 : f32
    %513 = vector.shape_cast %512 : vector<1x512xi1> to vector<1x512xi1>
    %514 = vector.broadcast %513 : vector<1x512xi1> to vector<8x512xi1>
    %515 = vector.broadcast %cst_372 : f32 to vector<8x512xf32>
    %516 = arith.select %514, %509, %515 : vector<8x512xi1>, vector<8x512xf32>
    %c208 = arith.constant 208 : index
    %c0_373 = arith.constant 0 : index
    %517 = vector.load %arg9[%c208, %c0_373] : memref<216x512xf32, #tpu.memory_space<vmem>>, vector<8x512xf32>
    tpu.vector_store %arg9[%c208, %c0_373], %516 {strides = array<i32>} : memref<216x512xf32, #tpu.memory_space<vmem>>, vector<8x512xf32>,
    %c0_374 = arith.constant 0 : index
    %c0_375 = arith.constant 0 : index
    %518 = vector.load %arg3[%c0_374, %c0_375] : memref<4x216xf32, #tpu.memory_space<vmem>>, vector<4x216xf32>
    %c0_376 = arith.constant 0 : index
    %c0_377 = arith.constant 0 : index
    %519 = vector.load %arg9[%c0_376, %c0_377] : memref<216x512xf32, #tpu.memory_space<vmem>>, vector<216x512xf32>
    %cst_378 = arith.constant dense<0.000000e+00> : vector<4x512xf32>
    %520 = tpu.matmul %518, %519, %cst_378 {dimension_numbers = #tpu.dot_dimension_numbers<[1], [0], [0], [1], [0, 0, 1, 1], [], []>} : vector<4x216xf32>, vector<216x512xf32>, vector<4x512xf32> -> vector<4x512xf32>
    %cst_379 = arith.constant dense<0.000000e+00> : vector<4xf32>
    %521 = vector.multi_reduction <add>, %520, %cst_379 [1] : vector<4x512xf32> to vector<4xf32>
    %522 = vector.shape_cast %521 : vector<4xf32> to vector<4x1xf32>
    %cst_380 = arith.constant 0.001953125 : f32
    %523 = vector.broadcast %cst_380 : f32 to vector<4x1xf32>
    %524 = arith.mulf %522, %523 : vector<4x1xf32>
    %525 = arith.mulf %520, %520 : vector<4x512xf32>
    %cst_381 = arith.constant dense<0.000000e+00> : vector<4xf32>
    %526 = vector.multi_reduction <add>, %525, %cst_381 [1] : vector<4x512xf32> to vector<4xf32>
    %527 = vector.shape_cast %526 : vector<4xf32> to vector<4x1xf32>
    %cst_382 = arith.constant 0.001953125 : f32
    %528 = vector.broadcast %cst_382 : f32 to vector<4x1xf32>
    %529 = arith.mulf %527, %528 : vector<4x1xf32>
    %530 = arith.mulf %524, %524 : vector<4x1xf32>
    %531 = arith.subf %529, %530 : vector<4x1xf32>
    %532 = vector.broadcast %524 : vector<4x1xf32> to vector<4x512xf32>
    %533 = arith.subf %520, %532 : vector<4x512xf32>
    %cst_383 = arith.constant 9.99999974E-6 : f32
    %534 = vector.broadcast %cst_383 : f32 to vector<4x1xf32>
    %535 = arith.addf %531, %534 : vector<4x1xf32>
    %536 = math.rsqrt %535 : vector<4x1xf32>
    %537 = vector.broadcast %536 : vector<4x1xf32> to vector<4x512xf32>
    %538 = arith.mulf %533, %537 : vector<4x512xf32>
    %cst_384 = arith.constant 0.000000e+00 : f32
    %539 = vector.broadcast %cst_384 : f32 to vector<4x512xf32>
    %540 = arith.cmpf oge, %538, %539 : vector<4x512xf32>
    %cst_385 = arith.constant 0.00999999977 : f32
    %541 = vector.broadcast %cst_385 : f32 to vector<4x512xf32>
    %542 = arith.mulf %541, %538 : vector<4x512xf32>
    %543 = arith.select %540, %538, %542 : vector<4x512xi1>, vector<4x512xf32>
    %c0_386 = arith.constant 0 : index
    %c0_387 = arith.constant 0 : index
    %c0_388 = arith.constant 0 : index
    %544 = vector.load %arg5[%c0_386, %c0_387, %c0_388] : memref<1x4x512xf32, #tpu.memory_space<vmem>>, vector<1x4x512xf32>
    %545 = vector.shape_cast %544 : vector<1x4x512xf32> to vector<4x512xf32>
    %546 = vector.shape_cast %543 : vector<4x512xf32> to vector<1x4x512xf32>
    tpu.vector_store %arg5[%c0_386, %c0_387, %c0_388], %546 {strides = array<i32>} : memref<1x4x512xf32, #tpu.memory_space<vmem>>, vector<1x4x512xf32>,
    return
  }
  func.func @transform_0(%arg0: i32) -> (i32, i32, i32) {
    %c0_i32 = arith.constant 0 : i32
    %c0_i32_0 = arith.constant 0 : i32
    %c0_i32_1 = arith.constant 0 : i32
    return %arg0, %c0_i32, %c0_i32_0 : i32, i32, i32
  }
  func.func @transform_1(%arg0: i32) -> (i32, i32) {
    %c0_i32 = arith.constant 0 : i32
    %c0_i32_0 = arith.constant 0 : i32
    %c0_i32_1 = arith.constant 0 : i32
    return %c0_i32, %c0_i32_0 : i32, i32
  }
  func.func @transform_2(%arg0: i32) -> (i32, i32) {
    %c0_i32 = arith.constant 0 : i32
    %c0_i32_0 = arith.constant 0 : i32
    %c0_i32_1 = arith.constant 0 : i32
    return %c0_i32, %c0_i32_0 : i32, i32
  }
  func.func @transform_3(%arg0: i32) -> (i32, i32) {
    %c0_i32 = arith.constant 0 : i32
    %c0_i32_0 = arith.constant 0 : i32
    %c0_i32_1 = arith.constant 0 : i32
    return %c0_i32, %c0_i32_0 : i32, i32
  }
  func.func @transform_4(%arg0: i32) -> (i32, i32, i32) {
    %c0_i32 = arith.constant 0 : i32
    %c0_i32_0 = arith.constant 0 : i32
    %c0_i32_1 = arith.constant 0 : i32
    return %arg0, %c0_i32, %c0_i32_0 : i32, i32, i32
  }
}

</mosaic_0001>

<llo_original>
// kernel: bottleneck_forward.1
$region0: #{bottleneck_forward.1}
  #allocation0 [shape = 'u32[]', space=smem, size = 0x4, offset = 0x4, fixed_abs, tag = 'smem constant byte address 0x4 - core index']
  #allocation1 [shape = 'u32[144,128]{1,0:T(1,128)}', space=vmem, size = 0x12000, scoped, tag = 'internal scratch']
  #allocation2 [shape = 'f32[4,768]{1,0:T(4,128)}', space=vmem, size = 0x3000, scoped, tag = 'scratch operand']
  #allocation3 [shape = 'f32[8,768]{1,0:T(8,128)}', space=vmem, size = 0x6000, scoped, tag = 'scratch operand']
  #allocation4 [shape = 'f32[112,512]{1,0:T(8,128)}', space=vmem, size = 0x38000, scoped, tag = 'scratch operand']
  #allocation5 [shape = 'f32[216,512]{1,0:T(8,128)}', space=vmem, size = 0x6c000, scoped, tag = 'scratch operand']
  %s0 = inlined_call_operand.vmem [shape: f32[2,4,512], index: 0, kind: input, shape index: {}]
  %s1 = inlined_call_operand.vmem [shape: f32[8,112], index: 1, kind: input, shape index: {}]
  %s2 = inlined_call_operand.vmem [shape: f32[4,216], index: 2, kind: input, shape index: {}]
  %s3 = inlined_call_operand.vmem [shape: f32[27,512], index: 3, kind: input, shape index: {}]
  %s4 = inlined_call_operand.vmem [shape: f32[2,4,512], index: 4, kind: output, shape index: {}]
  %s5 = sld [smem:[#allocation0]]
  $region49: #{bottleneck_forward.1} parent=0
    _
  %s7 = ssub.s32 1, %s5
  %s8 = scalar_select 0, %s7, %s5
  loop: start=0, step=1, limit=4
  $region2: #{bottleneck_forward.1} parent=0 // loop_pre_header
    _
  $region3: #{bottleneck_forward.1} parent=0 // loop_header
    %s10 = sphi 0, %s14
    %p11 = scmp.ge.s32.totalorder %s10, 4
    %s20 = sphi 0, %s22
    %s23 = sphi 0, %s20
    %s24 = sphi 0, %s23
    %s40 = sphi 0, %s24
    %s44 = sphi 0, %s44
    %s46 = sphi 0, %s44
    %s47 = sphi 0, %s46
    %s61 = sphi 0, %s47
    %s65 = sphi 0, %s65
    %s67 = sphi 0, %s65
    %s68 = sphi 0, %s67
    %s82 = sphi 0, %s68
    %s86 = sphi 0, %s86
    %s88 = sphi 0, %s86
    %s89 = sphi 0, %s88
    %s103 = sphi 0, %s89
    %s109 = sphi 0, %s111
    %s112 = sphi 0, %s109
    %s113 = sphi 0, %s112
    %s129 = sphi 0, %s113
  $region4: #{bottleneck_forward.1} parent=0 // loop_header_branch
    %13 = sbr.rel (%p11) target = $region8
  $region5: #{bottleneck_forward.1} parent=0 // loop_body
    %s15 = ssub.s32 %s10, 1
    %s16 = ssub.s32 %s10, 2
    %s17 = sadd.s32 %s10, 1
    %s18 = ssub.s32 %s10, %s17
    %p19 = scmp.eq.s32.totalorder %s18, 0
    %s21 = sadd.s32 %s20, 1
    %s22 = scalar_select %p19, %s20, %s21
    %p25 = pneg %p19
    %p26 = scmp.eq.s32.totalorder %s10, 1
    %p27 = por %p25, %p26
    %p28 = scmp.ne.s32.totalorder %s20, %s23
    %p29 = scmp.eq.s32.totalorder %s10, 0
    %p30 = por %p28, %p29
    %p31 = scmp.ne.s32.totalorder %s20, %s23
    %p32 = scmp.eq.s32.totalorder %s15, 1
    %p33 = por %p31, %p32
    %p34 = scmp.ne.s32.totalorder %s23, %s24
    %p35 = scmp.eq.s32.totalorder %s15, 0
    %p36 = por %p34, %p35
    %p37 = scmp.ne.s32.totalorder %s23, %s24
    %p38 = scmp.eq.s32.totalorder %s16, 1
    %p39 = por %p37, %p38
    %p41 = scmp.ne.s32.totalorder %s24, %s40
    %p42 = scmp.eq.s32.totalorder %s16, 0
    %p43 = por %p41, %p42
    %s45 = sadd.s32 %s44, 1
    %p48 = scmp.eq.s32.totalorder %s10, 1
    %p49 = scmp.ne.s32.totalorder %s44, %s46
    %p50 = scmp.eq.s32.totalorder %s10, 0
    %p51 = por %p49, %p50
    %p52 = scmp.ne.s32.totalorder %s44, %s46
    %p53 = scmp.eq.s32.totalorder %s15, 1
    %p54 = por %p52, %p53
    %p55 = scmp.ne.s32.totalorder %s46, %s47
    %p56 = scmp.eq.s32.totalorder %s15, 0
    %p57 = por %p55, %p56
    %p58 = scmp.ne.s32.totalorder %s46, %s47
    %p59 = scmp.eq.s32.totalorder %s16, 1
    %p60 = por %p58, %p59
    %p62 = scmp.ne.s32.totalorder %s47, %s61
    %p63 = scmp.eq.s32.totalorder %s16, 0
    %p64 = por %p62, %p63
    %s66 = sadd.s32 %s65, 1
    %p69 = scmp.eq.s32.totalorder %s10, 1
    %p70 = scmp.ne.s32.totalorder %s65, %s67
    %p71 = scmp.eq.s32.totalorder %s10, 0
    %p72 = por %p70, %p71
    %p73 = scmp.ne.s32.totalorder %s65, %s67
    %p74 = scmp.eq.s32.totalorder %s15, 1
    %p75 = por %p73, %p74
    %p76 = scmp.ne.s32.totalorder %s67, %s68
    %p77 = scmp.eq.s32.totalorder %s15, 0
    %p78 = por %p76, %p77
    %p79 = scmp.ne.s32.totalorder %s67, %s68
    %p80 = scmp.eq.s32.totalorder %s16, 1
    %p81 = por %p79, %p80
    %p83 = scmp.ne.s32.totalorder %s68, %s82
    %p84 = scmp.eq.s32.totalorder %s16, 0
    %p85 = por %p83, %p84
    %s87 = sadd.s32 %s86, 1
    %p90 = scmp.eq.s32.totalorder %s10, 1
    %p91 = scmp.ne.s32.totalorder %s86, %s88
    %p92 = scmp.eq.s32.totalorder %s10, 0
    %p93 = por %p91, %p92
    %p94 = scmp.ne.s32.totalorder %s86, %s88
    %p95 = scmp.eq.s32.totalorder %s15, 1
    %p96 = por %p94, %p95
    %p97 = scmp.ne.s32.totalorder %s88, %s89
    %p98 = scmp.eq.s32.totalorder %s15, 0
    %p99 = por %p97, %p98
    %p100 = scmp.ne.s32.totalorder %s88, %s89
    %p101 = scmp.eq.s32.totalorder %s16, 1
    %p102 = por %p100, %p101
    %p104 = scmp.ne.s32.totalorder %s89, %s103
    %p105 = scmp.eq.s32.totalorder %s16, 0
    %p106 = por %p104, %p105
    %s107 = ssub.s32 %s10, %s17
    %p108 = scmp.eq.s32.totalorder %s107, 0
    %s110 = sadd.s32 %s109, 1
    %s111 = scalar_select %p108, %s109, %s110
    %p114 = pneg %p108
    %p115 = scmp.eq.s32.totalorder %s10, 1
    %p116 = por %p114, %p115
    %p117 = scmp.ne.s32.totalorder %s109, %s112
    %p118 = scmp.eq.s32.totalorder %s10, 0
    %p119 = por %p117, %p118
    %p120 = scmp.ne.s32.totalorder %s109, %s112
    %p121 = scmp.eq.s32.totalorder %s15, 1
    %p122 = por %p120, %p121
    %p123 = scmp.ne.s32.totalorder %s112, %s113
    %p124 = scmp.eq.s32.totalorder %s15, 0
    %p125 = por %p123, %p124
    %p126 = scmp.ne.s32.totalorder %s112, %s113
    %p127 = scmp.eq.s32.totalorder %s16, 1
    %p128 = por %p126, %p127
    %p130 = scmp.ne.s32.totalorder %s113, %s129
    %p131 = scmp.eq.s32.totalorder %s16, 0
    %p132 = por %p130, %p131
    %p133 = scmp.le.s32.totalorder 1, %s10
    %p134 = scmp.lt.s32.totalorder %s10, 3
    %p135 = pnand %p133, %p134
    %p136 = pneg %p135
    // Predicated region
    $region9: #{bottleneck_forward.1} parent=5 // pred_check
      _
    $region10: #{bottleneck_forward.1} parent=5 // pred_check_branch
      %138 = sbr.rel (%p135) target = $region12
    $region11: #{bottleneck_forward.1} parent=5 // pred_region
      %s139 = ssub.s32 %s10, 1
      // Predicated region
      $region13: #{bottleneck_forward.1} parent=11 // pred_check
        %p140 = pneg %p57
      $region14: #{bottleneck_forward.1} parent=11 // pred_check_branch
        %142 = sbr.rel (%p140) target = $region16
      $region15: #{bottleneck_forward.1} parent=11 // pred_region
        _
      $region16: #{bottleneck_forward.1} parent=11 // pred_fallthru
        _
      // Predicated region
      $region17: #{bottleneck_forward.1} parent=11 // pred_check
        %p143 = pneg %p78
      $region18: #{bottleneck_forward.1} parent=11 // pred_check_branch
        %145 = sbr.rel (%p143) target = $region20
      $region19: #{bottleneck_forward.1} parent=11 // pred_region
        _
      $region20: #{bottleneck_forward.1} parent=11 // pred_fallthru
        _
      // Predicated region
      $region21: #{bottleneck_forward.1} parent=11 // pred_check
        %p146 = pneg %p99
      $region22: #{bottleneck_forward.1} parent=11 // pred_check_branch
        %148 = sbr.rel (%p146) target = $region24
      $region23: #{bottleneck_forward.1} parent=11 // pred_region
        _
      $region24: #{bottleneck_forward.1} parent=11 // pred_fallthru
        _
    $region12: #{bottleneck_forward.1} parent=5 // pred_fallthru
      _
    %p149 = scmp.lt.s32.totalorder %s10, 2
    // Predicated region
    $region25: #{bottleneck_forward.1} parent=5 // pred_check
      %p150 = pneg %p149
    $region26: #{bottleneck_forward.1} parent=5 // pred_check_branch
      %152 = sbr.rel (%p150) target = $region28
    $region27: #{bottleneck_forward.1} parent=5 // pred_region
      // Predicated region
      $region29: #{bottleneck_forward.1} parent=27 // pred_check
        %p153 = pneg %p30
      $region30: #{bottleneck_forward.1} parent=27 // pred_check_branch
        %155 = sbr.rel (%p153) target = $region32
      $region31: #{bottleneck_forward.1} parent=27 // pred_region
        %p156 = scmp.lt.s32.totalorder %s10, 1
        %s157 = scalar_select %p156, %s10, 1
        %s158 = smul.addr %s157, 4
        %s159 = smul.addr %s158, 4
        %s160 = scalar_lea.vmem %s0, %s159
      $region32: #{bottleneck_forward.1} parent=27 // pred_fallthru
        _
    $region28: #{bottleneck_forward.1} parent=5 // pred_fallthru
      _
    %p161 = scmp.le.s32.totalorder 1, %s10
    %p162 = scmp.lt.s32.totalorder %s10, 3
    %p163 = pnand %p161, %p162
    %p164 = pneg %p163
    // Predicated region
    $region33: #{bottleneck_forward.1} parent=5 // pred_check
      _
    $region34: #{bottleneck_forward.1} parent=5 // pred_check_branch
      %166 = sbr.rel (%p163) target = $region36
    $region35: #{bottleneck_forward.1} parent=5 // pred_region
      %s167 = ssub.s32 %s10, 1
      %p168 = scmp.lt.s32.totalorder %s15, 1
      %s169 = scalar_select %p168, %s15, 1
      %s170 = smul.addr %s169, 4
      %s171 = smul.addr %s170, 4
      %s172 = scalar_lea.vmem %s0, %s171
      %p173 = pneg %p36
      %p174 = pneg %p33
      %p175 = pneg %p57
      %p176 = pneg %p54
      %p177 = pneg %p78
      %p178 = pneg %p75
      %p179 = pneg %p99
      %p180 = pneg %p96
      %p181 = pneg %p125
      %p182 = pneg %p122
      %p183 = scmp.lt.s32.totalorder %s15, 1
      %s184 = scalar_select %p183, %s15, 1
      %s185 = smul.addr %s184, 4
      %s186 = smul.addr %s185, 4
      %s187 = scalar_lea.vmem %s4, %s186
      %p188 = scmp.lt.s32.totalorder %s15, 1
      %s189 = scalar_select %p188, %s15, 1
      %s190 = smul.addr %s189, 4
      %s191 = smul.addr %s190, 4
      %s192 = scalar_lea.vmem %s0, %s191
      %p193 = scmp.lt.s32.totalorder %s15, 1
      %s194 = scalar_select %p193, %s15, 1
      %s195 = smul.addr %s194, 4
      %s196 = smul.addr %s195, 4
      %s197 = scalar_lea.vmem %s4, %s196
      %v198 = vld [vmem:[%s192] sm:$0xff]
      %v199 = vld [vmem:[%s192 + $0x8] sm:$0xff]
      %200 = vst [vmem:[#allocation2 + $0x4] sm:$0xff] %v198
      %201 = vst [vmem:[#allocation2 + $0xc] sm:$0xff] %v199
      %v202 = vld [vmem:[#allocation2] sm:$0xff]
      %v203 = vld [vmem:[#allocation2 + $0x8] sm:$0xff]
      %v204 = vld [vmem:[#allocation2 + $0x10] sm:$0xf]
      %v205 = vld [vmem:[%s3] ss:$8 sm:$0xf]
      %vm206 = vcmp.gt.f32.partialorder %v205, 0.0
      %v207 = vsel %vm206, 1, 0
      %v208 = vlaneseq
      %v209 = vshrl.u32 %v208, 7
      %v210 = vsub.s32 0, %v209
      %v211 = vrot.slane %v207, %v210
      %v212 = vlaneseq
      %v213 = vshrl.u32 %v212, 7
      %v214 = vsub.s32 1, %v213
      %v215 = vrot.slane %v207, %v214
      %v216 = vlaneseq
      %v217 = vshrl.u32 %v216, 7
      %v218 = vsub.s32 2, %v217
      %v219 = vrot.slane %v207, %v218
      %v220 = vlaneseq
      %v221 = vshrl.u32 %v220, 7
      %v222 = vsub.s32 3, %v221
      %v223 = vrot.slane %v207, %v222
      %vm224 = vcmp.eq.s32.totalorder %v211, 1
      %vm225 = vcmp.eq.s32.totalorder %v215, 1
      %vm226 = vcmp.eq.s32.totalorder %v219, 1
      %vm227 = vcmp.eq.s32.totalorder %v223, 1
      %v231 = vcombine.high %v202, %v202
      %v232 = vcombine.high %v203, %v203
      %233 = vrot.lane.b32.xlu0 %v202, 73
      %v234 = vpop.permute.xlu0 %233
      %235 = vrot.lane.b32.xlu0 %v231, 73
      %v236 = vpop.permute.xlu0 %235
      %237 = vrot.lane.b32.xlu0 %v203, 73
      %v238 = vpop.permute.xlu0 %237
      %239 = vrot.lane.b32.xlu0 %v232, 73
      %v240 = vpop.permute.xlu0 %239
      %241 = vrot.lane.b32.xlu0 %v204, 73
      %v242 = vpop.permute.xlu0 %241
      %vm243 = vcmask 596992
      %v244 = vsel %vm243, %v234, %v236
      %v245 = vsel %vm243, %v236, %v238
      %v246 = vsel %vm243, %v238, %v240
      %v247 = vsel %vm243, %v240, %v242
      %v252 = vsel %vm224, %v244, 0.0
      %v253 = vsel %vm225, %v245, 0.0
      %v254 = vsel %vm226, %v246, 0.0
      %v255 = vsel %vm227, %v247, 0.0
      %256 = vst [vmem:[#allocation4] sm:$0xf] %v252
      %257 = vst [vmem:[#allocation4 + $0x8] sm:$0xf] %v253
      %258 = vst [vmem:[#allocation4 + $0x10] sm:$0xf] %v254
      %259 = vst [vmem:[#allocation4 + $0x18] sm:$0xf] %v255
      %v260 = vld [vmem:[#allocation2] sm:$0xff]
      %v261 = vld [vmem:[#allocation2 + $0x8] sm:$0xff]
      %v262 = vld [vmem:[#allocation2 + $0x10] sm:$0xf]
      %s263 = scalar_lea.vmem %s3, 1
      %v264 = vld [vmem:[%s263] ss:$8 sm:$0xf]
      %vm265 = vcmp.gt.f32.partialorder %v264, 0.0
      %v266 = vsel %vm265, 1, 0
      %v267 = vlaneseq
      %v268 = vshrl.u32 %v267, 7
      %v269 = vsub.s32 0, %v268
      %v270 = vrot.slane %v266, %v269
      %v271 = vlaneseq
      %v272 = vshrl.u32 %v271, 7
      %v273 = vsub.s32 1, %v272
      %v274 = vrot.slane %v266, %v273
      %v275 = vlaneseq
      %v276 = vshrl.u32 %v275, 7
      %v277 = vsub.s32 2, %v276
      %v278 = vrot.slane %v266, %v277
      %v279 = vlaneseq
      %v280 = vshrl.u32 %v279, 7
      %v281 = vsub.s32 3, %v280
      %v282 = vrot.slane %v266, %v281
      %vm283 = vcmp.eq.s32.totalorder %v270, 1
      %vm284 = vcmp.eq.s32.totalorder %v274, 1
      %vm285 = vcmp.eq.s32.totalorder %v278, 1
      %vm286 = vcmp.eq.s32.totalorder %v282, 1
      %v290 = vcombine.high %v260, %v260
      %v291 = vcombine.high %v261, %v261
      %292 = vrot.lane.b32.xlu0 %v260, 72
      %v293 = vpop.permute.xlu0 %292
      %294 = vrot.lane.b32.xlu0 %v290, 72
      %v295 = vpop.permute.xlu0 %294
      %296 = vrot.lane.b32.xlu0 %v261, 72
      %v297 = vpop.permute.xlu0 %296
      %298 = vrot.lane.b32.xlu0 %v291, 72
      %v299 = vpop.permute.xlu0 %298
      %300 = vrot.lane.b32.xlu0 %v262, 72
      %v301 = vpop.permute.xlu0 %300
      %vm302 = vcmask 588800
      %v303 = vsel %vm302, %v293, %v295
      %v304 = vsel %vm302, %v295, %v297
      %v305 = vsel %vm302, %v297, %v299
      %v306 = vsel %vm302, %v299, %v301
      %v311 = vsel %vm283, %v303, 0.0
      %v312 = vsel %vm284, %v304, 0.0
      %v313 = vsel %vm285, %v305, 0.0
      %v314 = vsel %vm286, %v306, 0.0
      %v319 = vrot.slane %v311, 4
      %v320 = vrot.slane %v312, 4
      %v321 = vrot.slane %v313, 4
      %v322 = vrot.slane %v314, 4
      %327 = vst [vmem:[#allocation4] sm:$0xf0] %v319
      %328 = vst [vmem:[#allocation4 + $0x8] sm:$0xf0] %v320
      %329 = vst [vmem:[#allocation4 + $0x10] sm:$0xf0] %v321
      %330 = vst [vmem:[#allocation4 + $0x18] sm:$0xf0] %v322
      %v331 = vld [vmem:[#allocation2] sm:$0xff]
      %v332 = vld [vmem:[#allocation2 + $0x8] sm:$0xff]
      %v333 = vld [vmem:[#allocation2 + $0x10] sm:$0xf]
      %s334 = scalar_lea.vmem %s3, 2
      %v335 = vld [vmem:[%s334] ss:$8 sm:$0xf]
      %vm336 = vcmp.gt.f32.partialorder %v335, 0.0
      %v337 = vsel %vm336, 1, 0
      %v338 = vlaneseq
      %v339 = vshrl.u32 %v338, 7
      %v340 = vsub.s32 0, %v339
      %v341 = vrot.slane %v337, %v340
      %v342 = vlaneseq
      %v343 = vshrl.u32 %v342, 7
      %v344 = vsub.s32 1, %v343
      %v345 = vrot.slane %v337, %v344
      %v346 = vlaneseq
      %v347 = vshrl.u32 %v346, 7
      %v348 = vsub.s32 2, %v347
      %v349 = vrot.slane %v337, %v348
      %v350 = vlaneseq
      %v351 = vshrl.u32 %v350, 7
      %v352 = vsub.s32 3, %v351
      %v353 = vrot.slane %v337, %v352
      %vm354 = vcmp.eq.s32.totalorder %v341, 1
      %vm355 = vcmp.eq.s32.totalorder %v345, 1
      %vm356 = vcmp.eq.s32.totalorder %v349, 1
      %vm357 = vcmp.eq.s32.totalorder %v353, 1
      %v361 = vcombine.high %v331, %v331
      %v362 = vcombine.high %v332, %v332
      %363 = vrot.lane.b32.xlu0 %v331, 71
      %v364 = vpop.permute.xlu0 %363
      %365 = vrot.lane.b32.xlu0 %v361, 71
      %v366 = vpop.permute.xlu0 %365
      %367 = vrot.lane.b32.xlu0 %v332, 71
      %v368 = vpop.permute.xlu0 %367
      %369 = vrot.lane.b32.xlu0 %v362, 71
      %v370 = vpop.permute.xlu0 %369
      %371 = vrot.lane.b32.xlu0 %v333, 71
      %v372 = vpop.permute.xlu0 %371
      %vm373 = vcmask 580608
      %v374 = vsel %vm373, %v364, %v366
      %v375 = vsel %vm373, %v366, %v368
      %v376 = vsel %vm373, %v368, %v370
      %v377 = vsel %vm373, %v370, %v372
      %v382 = vsel %vm354, %v374, 0.0
      %v383 = vsel %vm355, %v375, 0.0
      %v384 = vsel %vm356, %v376, 0.0
      %v385 = vsel %vm357, %v377, 0.0
      %386 = vst [vmem:[#allocation4 + $0x20] sm:$0xf] %v382
      %387 = vst [vmem:[#allocation4 + $0x28] sm:$0xf] %v383
      %388 = vst [vmem:[#allocation4 + $0x30] sm:$0xf] %v384
      %389 = vst [vmem:[#allocation4 + $0x38] sm:$0xf] %v385
      %v390 = vld [vmem:[#allocation2] sm:$0xff]
      %v391 = vld [vmem:[#allocation2 + $0x8] sm:$0xff]
      %v392 = vld [vmem:[#allocation2 + $0x10] sm:$0xf]
      %s393 = scalar_lea.vmem %s3, 3
      %v394 = vld [vmem:[%s393] ss:$8 sm:$0xf]
      %vm395 = vcmp.gt.f32.partialorder %v394, 0.0
      %v396 = vsel %vm395, 1, 0
      %v397 = vlaneseq
      %v398 = vshrl.u32 %v397, 7
      %v399 = vsub.s32 0, %v398
      %v400 = vrot.slane %v396, %v399
      %v401 = vlaneseq
      %v402 = vshrl.u32 %v401, 7
      %v403 = vsub.s32 1, %v402
      %v404 = vrot.slane %v396, %v403
      %v405 = vlaneseq
      %v406 = vshrl.u32 %v405, 7
      %v407 = vsub.s32 2, %v406
      %v408 = vrot.slane %v396, %v407
      %v409 = vlaneseq
      %v410 = vshrl.u32 %v409, 7
      %v411 = vsub.s32 3, %v410
      %v412 = vrot.slane %v396, %v411
      %vm413 = vcmp.eq.s32.totalorder %v400, 1
      %vm414 = vcmp.eq.s32.totalorder %v404, 1
      %vm415 = vcmp.eq.s32.totalorder %v408, 1
      %vm416 = vcmp.eq.s32.totalorder %v412, 1
      %v420 = vcombine.high %v390, %v390
      %v421 = vcombine.high %v391, %v391
      %422 = vrot.lane.b32.xlu0 %v390, 65
      %v423 = vpop.permute.xlu0 %422
      %424 = vrot.lane.b32.xlu0 %v420, 65
      %v425 = vpop.permute.xlu0 %424
      %426 = vrot.lane.b32.xlu0 %v391, 65
      %v427 = vpop.permute.xlu0 %426
      %428 = vrot.lane.b32.xlu0 %v421, 65
      %v429 = vpop.permute.xlu0 %428
      %430 = vrot.lane.b32.xlu0 %v392, 65
      %v431 = vpop.permute.xlu0 %430
      %vm432 = vcmask 531456
      %v433 = vsel %vm432, %v423, %v425
      %v434 = vsel %vm432, %v425, %v427
      %v435 = vsel %vm432, %v427, %v429
      %v436 = vsel %vm432, %v429, %v431
      %v441 = vsel %vm413, %v433, 0.0
      %v442 = vsel %vm414, %v434, 0.0
      %v443 = vsel %vm415, %v435, 0.0
      %v444 = vsel %vm416, %v436, 0.0
      %v449 = vrot.slane %v441, 4
      %v450 = vrot.slane %v442, 4
      %v451 = vrot.slane %v443, 4
      %v452 = vrot.slane %v444, 4
      %457 = vst [vmem:[#allocation4 + $0x20] sm:$0xf0] %v449
      %458 = vst [vmem:[#allocation4 + $0x28] sm:$0xf0] %v450
      %459 = vst [vmem:[#allocation4 + $0x30] sm:$0xf0] %v451
      %460 = vst [vmem:[#allocation4 + $0x38] sm:$0xf0] %v452
      %v461 = vld [vmem:[#allocation2] sm:$0xff]
      %v462 = vld [vmem:[#allocation2 + $0x8] sm:$0xff]
      %v463 = vld [vmem:[#allocation2 + $0x10] sm:$0xf]
      %s464 = scalar_lea.vmem %s3, 4
      %v465 = vld [vmem:[%s464] ss:$8 sm:$0xf]
      %vm466 = vcmp.gt.f32.partialorder %v465, 0.0
      %v467 = vsel %vm466, 1, 0
      %v468 = vlaneseq
      %v469 = vshrl.u32 %v468, 7
      %v470 = vsub.s32 0, %v469
      %v471 = vrot.slane %v467, %v470
      %v472 = vlaneseq
      %v473 = vshrl.u32 %v472, 7
      %v474 = vsub.s32 1, %v473
      %v475 = vrot.slane %v467, %v474
      %v476 = vlaneseq
      %v477 = vshrl.u32 %v476, 7
      %v478 = vsub.s32 2, %v477
      %v479 = vrot.slane %v467, %v478
      %v480 = vlaneseq
      %v481 = vshrl.u32 %v480, 7
      %v482 = vsub.s32 3, %v481
      %v483 = vrot.slane %v467, %v482
      %vm484 = vcmp.eq.s32.totalorder %v471, 1
      %vm485 = vcmp.eq.s32.totalorder %v475, 1
      %vm486 = vcmp.eq.s32.totalorder %v479, 1
      %vm487 = vcmp.eq.s32.totalorder %v483, 1
      %v491 = vcombine.high %v461, %v461
      %v492 = vcombine.high %v462, %v462
      %493 = vrot.lane.b32.xlu0 %v461, 64
      %v494 = vpop.permute.xlu0 %493
      %495 = vrot.lane.b32.xlu0 %v491, 64
      %v496 = vpop.permute.xlu0 %495
      %497 = vrot.lane.b32.xlu0 %v462, 64
      %v498 = vpop.permute.xlu0 %497
      %499 = vrot.lane.b32.xlu0 %v492, 64
      %v500 = vpop.permute.xlu0 %499
      %501 = vrot.lane.b32.xlu0 %v463, 64
      %v502 = vpop.permute.xlu0 %501
      %vm503 = vcmask 523264
      %v504 = vsel %vm503, %v494, %v496
      %v505 = vsel %vm503, %v496, %v498
      %v506 = vsel %vm503, %v498, %v500
      %v507 = vsel %vm503, %v500, %v502
      %v512 = vsel %vm484, %v504, 0.0
      %v513 = vsel %vm485, %v505, 0.0
      %v514 = vsel %vm486, %v506, 0.0
      %v515 = vsel %vm487, %v507, 0.0
      %516 = vst [vmem:[#allocation4 + $0x40] sm:$0xf] %v512
      %517 = vst [vmem:[#allocation4 + $0x48] sm:$0xf] %v513
      %518 = vst [vmem:[#allocation4 + $0x50] sm:$0xf] %v514
      %519 = vst [vmem:[#allocation4 + $0x58] sm:$0xf] %v515
      %v520 = vld [vmem:[#allocation2] sm:$0xff]
      %v521 = vld [vmem:[#allocation2 + $0x8] sm:$0xff]
      %v522 = vld [vmem:[#allocation2 + $0x10] sm:$0xf]
      %s523 = scalar_lea.vmem %s3, 5
      %v524 = vld [vmem:[%s523] ss:$8 sm:$0xf]
      %vm525 = vcmp.gt.f32.partialorder %v524, 0.0
      %v526 = vsel %vm525, 1, 0
      %v527 = vlaneseq
      %v528 = vshrl.u32 %v527, 7
      %v529 = vsub.s32 0, %v528
      %v530 = vrot.slane %v526, %v529
      %v531 = vlaneseq
      %v532 = vshrl.u32 %v531, 7
      %v533 = vsub.s32 1, %v532
      %v534 = vrot.slane %v526, %v533
      %v535 = vlaneseq
      %v536 = vshrl.u32 %v535, 7
      %v537 = vsub.s32 2, %v536
      %v538 = vrot.slane %v526, %v537
      %v539 = vlaneseq
      %v540 = vshrl.u32 %v539, 7
      %v541 = vsub.s32 3, %v540
      %v542 = vrot.slane %v526, %v541
      %vm543 = vcmp.eq.s32.totalorder %v530, 1
      %vm544 = vcmp.eq.s32.totalorder %v534, 1
      %vm545 = vcmp.eq.s32.totalorder %v538, 1
      %vm546 = vcmp.eq.s32.totalorder %v542, 1
      %v550 = vcombine.high %v520, %v520
      %v551 = vcombine.high %v521, %v521
      %552 = vrot.lane.b32.xlu0 %v520, 63
      %v553 = vpop.permute.xlu0 %552
      %554 = vrot.lane.b32.xlu0 %v550, 63
      %v555 = vpop.permute.xlu0 %554
      %556 = vrot.lane.b32.xlu0 %v521, 63
      %v557 = vpop.permute.xlu0 %556
      %558 = vrot.lane.b32.xlu0 %v551, 63
      %v559 = vpop.permute.xlu0 %558
      %560 = vrot.lane.b32.xlu0 %v522, 63
      %v561 = vpop.permute.xlu0 %560
      %vm562 = vcmask 515072
      %v563 = vsel %vm562, %v553, %v555
      %v564 = vsel %vm562, %v555, %v557
      %v565 = vsel %vm562, %v557, %v559
      %v566 = vsel %vm562, %v559, %v561
      %v571 = vsel %vm543, %v563, 0.0
      %v572 = vsel %vm544, %v564, 0.0
      %v573 = vsel %vm545, %v565, 0.0
      %v574 = vsel %vm546, %v566, 0.0
      %v579 = vrot.slane %v571, 4
      %v580 = vrot.slane %v572, 4
      %v581 = vrot.slane %v573, 4
      %v582 = vrot.slane %v574, 4
      %587 = vst [vmem:[#allocation4 + $0x40] sm:$0xf0] %v579
      %588 = vst [vmem:[#allocation4 + $0x48] sm:$0xf0] %v580
      %589 = vst [vmem:[#allocation4 + $0x50] sm:$0xf0] %v581
      %590 = vst [vmem:[#allocation4 + $0x58] sm:$0xf0] %v582
      %v591 = vld [vmem:[#allocation2] sm:$0xff]
      %v592 = vld [vmem:[#allocation2 + $0x8] sm:$0xff]
      %v593 = vld [vmem:[#allocation2 + $0x10] sm:$0xf]
      %s594 = scalar_lea.vmem %s3, 6
      %v595 = vld [vmem:[%s594] ss:$8 sm:$0xf]
      %vm596 = vcmp.gt.f32.partialorder %v595, 0.0
      %v597 = vsel %vm596, 1, 0
      %v598 = vlaneseq
      %v599 = vshrl.u32 %v598, 7
      %v600 = vsub.s32 0, %v599
      %v601 = vrot.slane %v597, %v600
      %v602 = vlaneseq
      %v603 = vshrl.u32 %v602, 7
      %v604 = vsub.s32 1, %v603
      %v605 = vrot.slane %v597, %v604
      %v606 = vlaneseq
      %v607 = vshrl.u32 %v606, 7
      %v608 = vsub.s32 2, %v607
      %v609 = vrot.slane %v597, %v608
      %v610 = vlaneseq
      %v611 = vshrl.u32 %v610, 7
      %v612 = vsub.s32 3, %v611
      %v613 = vrot.slane %v597, %v612
      %vm614 = vcmp.eq.s32.totalorder %v601, 1
      %vm615 = vcmp.eq.s32.totalorder %v605, 1
      %vm616 = vcmp.eq.s32.totalorder %v609, 1
      %vm617 = vcmp.eq.s32.totalorder %v613, 1
      %v621 = vcombine.high %v591, %v591
      %v622 = vcombine.high %v592, %v592
      %623 = vrot.lane.b32.xlu0 %v591, 57
      %v624 = vpop.permute.xlu0 %623
      %625 = vrot.lane.b32.xlu0 %v621, 57
      %v626 = vpop.permute.xlu0 %625
      %627 = vrot.lane.b32.xlu0 %v592, 57
      %v628 = vpop.permute.xlu0 %627
      %629 = vrot.lane.b32.xlu0 %v622, 57
      %v630 = vpop.permute.xlu0 %629
      %631 = vrot.lane.b32.xlu0 %v593, 57
      %v632 = vpop.permute.xlu0 %631
      %vm633 = vcmask 465920
      %v634 = vsel %vm633, %v624, %v626
      %v635 = vsel %vm633, %v626, %v628
      %v636 = vsel %vm633, %v628, %v630
      %v637 = vsel %vm633, %v630, %v632
      %v642 = vsel %vm614, %v634, 0.0
      %v643 = vsel %vm615, %v635, 0.0
      %v644 = vsel %vm616, %v636, 0.0
      %v645 = vsel %vm617, %v637, 0.0
      %646 = vst [vmem:[#allocation4 + $0x60] sm:$0xf] %v642
      %647 = vst [vmem:[#allocation4 + $0x68] sm:$0xf] %v643
      %648 = vst [vmem:[#allocation4 + $0x70] sm:$0xf] %v644
      %649 = vst [vmem:[#allocation4 + $0x78] sm:$0xf] %v645
      %v650 = vld [vmem:[#allocation2] sm:$0xff]
      %v651 = vld [vmem:[#allocation2 + $0x8] sm:$0xff]
      %v652 = vld [vmem:[#allocation2 + $0x10] sm:$0xf]
      %s653 = scalar_lea.vmem %s3, 7
      %v654 = vld [vmem:[%s653] ss:$8 sm:$0xf]
      %vm655 = vcmp.gt.f32.partialorder %v654, 0.0
      %v656 = vsel %vm655, 1, 0
      %v657 = vlaneseq
      %v658 = vshrl.u32 %v657, 7
      %v659 = vsub.s32 0, %v658
      %v660 = vrot.slane %v656, %v659
      %v661 = vlaneseq
      %v662 = vshrl.u32 %v661, 7
      %v663 = vsub.s32 1, %v662
      %v664 = vrot.slane %v656, %v663
      %v665 = vlaneseq
      %v666 = vshrl.u32 %v665, 7
      %v667 = vsub.s32 2, %v666
      %v668 = vrot.slane %v656, %v667
      %v669 = vlaneseq
      %v670 = vshrl.u32 %v669, 7
      %v671 = vsub.s32 3, %v670
      %v672 = vrot.slane %v656, %v671
      %vm673 = vcmp.eq.s32.totalorder %v660, 1
      %vm674 = vcmp.eq.s32.totalorder %v664, 1
      %vm675 = vcmp.eq.s32.totalorder %v668, 1
      %vm676 = vcmp.eq.s32.totalorder %v672, 1
      %v680 = vcombine.high %v650, %v650
      %v681 = vcombine.high %v651, %v651
      %682 = vrot.lane.b32.xlu0 %v650, 56
      %v683 = vpop.permute.xlu0 %682
      %684 = vrot.lane.b32.xlu0 %v680, 56
      %v685 = vpop.permute.xlu0 %684
      %686 = vrot.lane.b32.xlu0 %v651, 56
      %v687 = vpop.permute.xlu0 %686
      %688 = vrot.lane.b32.xlu0 %v681, 56
      %v689 = vpop.permute.xlu0 %688
      %690 = vrot.lane.b32.xlu0 %v652, 56
      %v691 = vpop.permute.xlu0 %690
      %vm692 = vcmask 457728
      %v693 = vsel %vm692, %v683, %v685
      %v694 = vsel %vm692, %v685, %v687
      %v695 = vsel %vm692, %v687, %v689
      %v696 = vsel %vm692, %v689, %v691
      %v701 = vsel %vm673, %v693, 0.0
      %v702 = vsel %vm674, %v694, 0.0
      %v703 = vsel %vm675, %v695, 0.0
      %v704 = vsel %vm676, %v696, 0.0
      %v709 = vrot.slane %v701, 4
      %v710 = vrot.slane %v702, 4
      %v711 = vrot.slane %v703, 4
      %v712 = vrot.slane %v704, 4
      %717 = vst [vmem:[#allocation4 + $0x60] sm:$0xf0] %v709
      %718 = vst [vmem:[#allocation4 + $0x68] sm:$0xf0] %v710
      %719 = vst [vmem:[#allocation4 + $0x70] sm:$0xf0] %v711
      %720 = vst [vmem:[#allocation4 + $0x78] sm:$0xf0] %v712
      %v721 = vld [vmem:[#allocation2] sm:$0xff]
      %v722 = vld [vmem:[#allocation2 + $0x8] sm:$0xff]
      %v723 = vld [vmem:[#allocation2 + $0x10] sm:$0xf]
      %s724 = scalar_lea.vmem %s3, 32
      %v725 = vld [vmem:[%s724] ss:$8 sm:$0xf]
      %vm726 = vcmp.gt.f32.partialorder %v725, 0.0
      %v727 = vsel %vm726, 1, 0
      %v728 = vlaneseq
      %v729 = vshrl.u32 %v728, 7
      %v730 = vsub.s32 0, %v729
      %v731 = vrot.slane %v727, %v730
      %v732 = vlaneseq
      %v733 = vshrl.u32 %v732, 7
      %v734 = vsub.s32 1, %v733
      %v735 = vrot.slane %v727, %v734
      %v736 = vlaneseq
      %v737 = vshrl.u32 %v736, 7
      %v738 = vsub.s32 2, %v737
      %v739 = vrot.slane %v727, %v738
      %v740 = vlaneseq
      %v741 = vshrl.u32 %v740, 7
      %v742 = vsub.s32 3, %v741
      %v743 = vrot.slane %v727, %v742
      %vm744 = vcmp.eq.s32.totalorder %v731, 1
      %vm745 = vcmp.eq.s32.totalorder %v735, 1
      %vm746 = vcmp.eq.s32.totalorder %v739, 1
      %vm747 = vcmp.eq.s32.totalorder %v743, 1
      %v751 = vcombine.high %v721, %v721
      %v752 = vcombine.high %v722, %v722
      %753 = vrot.lane.b32.xlu0 %v721, 55
      %v754 = vpop.permute.xlu0 %753
      %755 = vrot.lane.b32.xlu0 %v751, 55
      %v756 = vpop.permute.xlu0 %755
      %757 = vrot.lane.b32.xlu0 %v722, 55
      %v758 = vpop.permute.xlu0 %757
      %759 = vrot.lane.b32.xlu0 %v752, 55
      %v760 = vpop.permute.xlu0 %759
      %761 = vrot.lane.b32.xlu0 %v723, 55
      %v762 = vpop.permute.xlu0 %761
      %vm763 = vcmask 449536
      %v764 = vsel %vm763, %v754, %v756
      %v765 = vsel %vm763, %v756, %v758
      %v766 = vsel %vm763, %v758, %v760
      %v767 = vsel %vm763, %v760, %v762
      %v772 = vsel %vm744, %v764, 0.0
      %v773 = vsel %vm745, %v765, 0.0
      %v774 = vsel %vm746, %v766, 0.0
      %v775 = vsel %vm747, %v767, 0.0
      %776 = vst [vmem:[#allocation4 + $0x80] sm:$0xf] %v772
      %777 = vst [vmem:[#allocation4 + $0x88] sm:$0xf] %v773
      %778 = vst [vmem:[#allocation4 + $0x90] sm:$0xf] %v774
      %779 = vst [vmem:[#allocation4 + $0x98] sm:$0xf] %v775
      %v780 = vld [vmem:[#allocation2] sm:$0xff]
      %v781 = vld [vmem:[#allocation2 + $0x8] sm:$0xff]
      %v782 = vld [vmem:[#allocation2 + $0x10] sm:$0xf]
      %s783 = scalar_lea.vmem %s3, 33
      %v784 = vld [vmem:[%s783] ss:$8 sm:$0xf]
      %vm785 = vcmp.gt.f32.partialorder %v784, 0.0
      %v786 = vsel %vm785, 1, 0
      %v787 = vlaneseq
      %v788 = vshrl.u32 %v787, 7
      %v789 = vsub.s32 0, %v788
      %v790 = vrot.slane %v786, %v789
      %v791 = vlaneseq
      %v792 = vshrl.u32 %v791, 7
      %v793 = vsub.s32 1, %v792
      %v794 = vrot.slane %v786, %v793
      %v795 = vlaneseq
      %v796 = vshrl.u32 %v795, 7
      %v797 = vsub.s32 2, %v796
      %v798 = vrot.slane %v786, %v797
      %v799 = vlaneseq
      %v800 = vshrl.u32 %v799, 7
      %v801 = vsub.s32 3, %v800
      %v802 = vrot.slane %v786, %v801
      %vm803 = vcmp.eq.s32.totalorder %v790, 1
      %vm804 = vcmp.eq.s32.totalorder %v794, 1
      %vm805 = vcmp.eq.s32.totalorder %v798, 1
      %vm806 = vcmp.eq.s32.totalorder %v802, 1
      %v810 = vcombine.high %v780, %v780
      %v811 = vcombine.high %v781, %v781
      %812 = vrot.lane.b32.xlu0 %v780, 9
      %v813 = vpop.permute.xlu0 %812
      %814 = vrot.lane.b32.xlu0 %v810, 9
      %v815 = vpop.permute.xlu0 %814
      %816 = vrot.lane.b32.xlu0 %v781, 9
      %v817 = vpop.permute.xlu0 %816
      %818 = vrot.lane.b32.xlu0 %v811, 9
      %v819 = vpop.permute.xlu0 %818
      %820 = vrot.lane.b32.xlu0 %v782, 9
      %v821 = vpop.permute.xlu0 %820
      %vm822 = vcmask 72704
      %v823 = vsel %vm822, %v813, %v815
      %v824 = vsel %vm822, %v815, %v817
      %v825 = vsel %vm822, %v817, %v819
      %v826 = vsel %vm822, %v819, %v821
      %v831 = vsel %vm803, %v823, 0.0
      %v832 = vsel %vm804, %v824, 0.0
      %v833 = vsel %vm805, %v825, 0.0
      %v834 = vsel %vm806, %v826, 0.0
      %v839 = vrot.slane %v831, 4
      %v840 = vrot.slane %v832, 4
      %v841 = vrot.slane %v833, 4
      %v842 = vrot.slane %v834, 4
      %847 = vst [vmem:[#allocation4 + $0x80] sm:$0xf0] %v839
      %848 = vst [vmem:[#allocation4 + $0x88] sm:$0xf0] %v840
      %849 = vst [vmem:[#allocation4 + $0x90] sm:$0xf0] %v841
      %850 = vst [vmem:[#allocation4 + $0x98] sm:$0xf0] %v842
      %v851 = vld [vmem:[#allocation2] sm:$0xff]
      %v852 = vld [vmem:[#allocation2 + $0x8] sm:$0xff]
      %v853 = vld [vmem:[#allocation2 + $0x10] sm:$0xf]
      %s854 = scalar_lea.vmem %s3, 34
      %v855 = vld [vmem:[%s854] ss:$8 sm:$0xf]
      %vm856 = vcmp.gt.f32.partialorder %v855, 0.0
      %v857 = vsel %vm856, 1, 0
      %v858 = vlaneseq
      %v859 = vshrl.u32 %v858, 7
      %v860 = vsub.s32 0, %v859
      %v861 = vrot.slane %v857, %v860
      %v862 = vlaneseq
      %v863 = vshrl.u32 %v862, 7
      %v864 = vsub.s32 1, %v863
      %v865 = vrot.slane %v857, %v864
      %v866 = vlaneseq
      %v867 = vshrl.u32 %v866, 7
      %v868 = vsub.s32 2, %v867
      %v869 = vrot.slane %v857, %v868
      %v870 = vlaneseq
      %v871 = vshrl.u32 %v870, 7
      %v872 = vsub.s32 3, %v871
      %v873 = vrot.slane %v857, %v872
      %vm874 = vcmp.eq.s32.totalorder %v861, 1
      %vm875 = vcmp.eq.s32.totalorder %v865, 1
      %vm876 = vcmp.eq.s32.totalorder %v869, 1
      %vm877 = vcmp.eq.s32.totalorder %v873, 1
      %v881 = vcombine.high %v851, %v851
      %v882 = vcombine.high %v852, %v852
      %883 = vrot.lane.b32.xlu0 %v851, 8
      %v884 = vpop.permute.xlu0 %883
      %885 = vrot.lane.b32.xlu0 %v881, 8
      %v886 = vpop.permute.xlu0 %885
      %887 = vrot.lane.b32.xlu0 %v852, 8
      %v888 = vpop.permute.xlu0 %887
      %889 = vrot.lane.b32.xlu0 %v882, 8
      %v890 = vpop.permute.xlu0 %889
      %891 = vrot.lane.b32.xlu0 %v853, 8
      %v892 = vpop.permute.xlu0 %891
      %vm893 = vcmask 64512
      %v894 = vsel %vm893, %v884, %v886
      %v895 = vsel %vm893, %v886, %v888
      %v896 = vsel %vm893, %v888, %v890
      %v897 = vsel %vm893, %v890, %v892
      %v902 = vsel %vm874, %v894, 0.0
      %v903 = vsel %vm875, %v895, 0.0
      %v904 = vsel %vm876, %v896, 0.0
      %v905 = vsel %vm877, %v897, 0.0
      %906 = vst [vmem:[#allocation4 + $0xa0] sm:$0xf] %v902
      %907 = vst [vmem:[#allocation4 + $0xa8] sm:$0xf] %v903
      %908 = vst [vmem:[#allocation4 + $0xb0] sm:$0xf] %v904
      %909 = vst [vmem:[#allocation4 + $0xb8] sm:$0xf] %v905
      %v910 = vld [vmem:[#allocation2] sm:$0xff]
      %v911 = vld [vmem:[#allocation2 + $0x8] sm:$0xff]
      %v912 = vld [vmem:[#allocation2 + $0x10] sm:$0xf]
      %s913 = scalar_lea.vmem %s3, 35
      %v914 = vld [vmem:[%s913] ss:$8 sm:$0xf]
      %vm915 = vcmp.gt.f32.partialorder %v914, 0.0
      %v916 = vsel %vm915, 1, 0
      %v917 = vlaneseq
      %v918 = vshrl.u32 %v917, 7
      %v919 = vsub.s32 0, %v918
      %v920 = vrot.slane %v916, %v919
      %v921 = vlaneseq
      %v922 = vshrl.u32 %v921, 7
      %v923 = vsub.s32 1, %v922
      %v924 = vrot.slane %v916, %v923
      %v925 = vlaneseq
      %v926 = vshrl.u32 %v925, 7
      %v927 = vsub.s32 2, %v926
      %v928 = vrot.slane %v916, %v927
      %v929 = vlaneseq
      %v930 = vshrl.u32 %v929, 7
      %v931 = vsub.s32 3, %v930
      %v932 = vrot.slane %v916, %v931
      %vm933 = vcmp.eq.s32.totalorder %v920, 1
      %vm934 = vcmp.eq.s32.totalorder %v924, 1
      %vm935 = vcmp.eq.s32.totalorder %v928, 1
      %vm936 = vcmp.eq.s32.totalorder %v932, 1
      %v940 = vcombine.high %v910, %v910
      %v941 = vcombine.high %v911, %v911
      %942 = vrot.lane.b32.xlu0 %v910, 7
      %v943 = vpop.permute.xlu0 %942
      %944 = vrot.lane.b32.xlu0 %v940, 7
      %v945 = vpop.permute.xlu0 %944
      %946 = vrot.lane.b32.xlu0 %v911, 7
      %v947 = vpop.permute.xlu0 %946
      %948 = vrot.lane.b32.xlu0 %v941, 7
      %v949 = vpop.permute.xlu0 %948
      %950 = vrot.lane.b32.xlu0 %v912, 7
      %v951 = vpop.permute.xlu0 %950
      %vm952 = vcmask 56320
      %v953 = vsel %vm952, %v943, %v945
      %v954 = vsel %vm952, %v945, %v947
      %v955 = vsel %vm952, %v947, %v949
      %v956 = vsel %vm952, %v949, %v951
      %v961 = vsel %vm933, %v953, 0.0
      %v962 = vsel %vm934, %v954, 0.0
      %v963 = vsel %vm935, %v955, 0.0
      %v964 = vsel %vm936, %v956, 0.0
      %v969 = vrot.slane %v961, 4
      %v970 = vrot.slane %v962, 4
      %v971 = vrot.slane %v963, 4
      %v972 = vrot.slane %v964, 4
      %977 = vst [vmem:[#allocation4 + $0xa0] sm:$0xf0] %v969
      %978 = vst [vmem:[#allocation4 + $0xa8] sm:$0xf0] %v970
      %979 = vst [vmem:[#allocation4 + $0xb0] sm:$0xf0] %v971
      %980 = vst [vmem:[#allocation4 + $0xb8] sm:$0xf0] %v972
      %v981 = vld [vmem:[#allocation2] sm:$0xff]
      %v982 = vld [vmem:[#allocation2 + $0x8] sm:$0xff]
      %v983 = vld [vmem:[#allocation2 + $0x10] sm:$0xf]
      %s984 = scalar_lea.vmem %s3, 36
      %v985 = vld [vmem:[%s984] ss:$8 sm:$0xf]
      %vm986 = vcmp.gt.f32.partialorder %v985, 0.0
      %v987 = vsel %vm986, 1, 0
      %v988 = vlaneseq
      %v989 = vshrl.u32 %v988, 7
      %v990 = vsub.s32 0, %v989
      %v991 = vrot.slane %v987, %v990
      %v992 = vlaneseq
      %v993 = vshrl.u32 %v992, 7
      %v994 = vsub.s32 1, %v993
      %v995 = vrot.slane %v987, %v994
      %v996 = vlaneseq
      %v997 = vshrl.u32 %v996, 7
      %v998 = vsub.s32 2, %v997
      %v999 = vrot.slane %v987, %v998
      %v1000 = vlaneseq
      %v1001 = vshrl.u32 %v1000, 7
      %v1002 = vsub.s32 3, %v1001
      %v1003 = vrot.slane %v987, %v1002
      %vm1004 = vcmp.eq.s32.totalorder %v991, 1
      %vm1005 = vcmp.eq.s32.totalorder %v995, 1
      %vm1006 = vcmp.eq.s32.totalorder %v999, 1
      %vm1007 = vcmp.eq.s32.totalorder %v1003, 1
      %v1011 = vcombine.high %v981, %v981
      %v1012 = vcombine.high %v982, %v982
      %1013 = vrot.lane.b32.xlu0 %v981, 1
      %v1014 = vpop.permute.xlu0 %1013
      %1015 = vrot.lane.b32.xlu0 %v1011, 1
      %v1016 = vpop.permute.xlu0 %1015
      %1017 = vrot.lane.b32.xlu0 %v982, 1
      %v1018 = vpop.permute.xlu0 %1017
      %1019 = vrot.lane.b32.xlu0 %v1012, 1
      %v1020 = vpop.permute.xlu0 %1019
      %1021 = vrot.lane.b32.xlu0 %v983, 1
      %v1022 = vpop.permute.xlu0 %1021
      %vm1023 = vcmask 7168
      %v1024 = vsel %vm1023, %v1014, %v1016
      %v1025 = vsel %vm1023, %v1016, %v1018
      %v1026 = vsel %vm1023, %v1018, %v1020
      %v1027 = vsel %vm1023, %v1020, %v1022
      %v1032 = vsel %vm1004, %v1024, 0.0
      %v1033 = vsel %vm1005, %v1025, 0.0
      %v1034 = vsel %vm1006, %v1026, 0.0
      %v1035 = vsel %vm1007, %v1027, 0.0
      %1036 = vst [vmem:[#allocation4 + $0xc0] sm:$0xf] %v1032
      %1037 = vst [vmem:[#allocation4 + $0xc8] sm:$0xf] %v1033
      %1038 = vst [vmem:[#allocation4 + $0xd0] sm:$0xf] %v1034
      %1039 = vst [vmem:[#allocation4 + $0xd8] sm:$0xf] %v1035
      %v1040 = vld [vmem:[#allocation2 + $0x4] sm:$0xff]
      %v1041 = vld [vmem:[#allocation2 + $0xc] sm:$0xff]
      %s1042 = scalar_lea.vmem %s3, 37
      %v1043 = vld [vmem:[%s1042] ss:$8 sm:$0xf]
      %vm1044 = vcmp.gt.f32.partialorder %v1043, 0.0
      %v1045 = vsel %vm1044, 1, 0
      %v1046 = vlaneseq
      %v1047 = vshrl.u32 %v1046, 7
      %v1048 = vsub.s32 0, %v1047
      %v1049 = vrot.slane %v1045, %v1048
      %v1050 = vlaneseq
      %v1051 = vshrl.u32 %v1050, 7
      %v1052 = vsub.s32 1, %v1051
      %v1053 = vrot.slane %v1045, %v1052
      %v1054 = vlaneseq
      %v1055 = vshrl.u32 %v1054, 7
      %v1056 = vsub.s32 2, %v1055
      %v1057 = vrot.slane %v1045, %v1056
      %v1058 = vlaneseq
      %v1059 = vshrl.u32 %v1058, 7
      %v1060 = vsub.s32 3, %v1059
      %v1061 = vrot.slane %v1045, %v1060
      %vm1062 = vcmp.eq.s32.totalorder %v1049, 1
      %vm1063 = vcmp.eq.s32.totalorder %v1053, 1
      %vm1064 = vcmp.eq.s32.totalorder %v1057, 1
      %vm1065 = vcmp.eq.s32.totalorder %v1061, 1
      %v1068 = vcombine.high %v1040, %v1040
      %v1069 = vcombine.high %v1041, %v1041
      %v1072 = vsel %vm1062, %v1040, 0.0
      %v1073 = vsel %vm1063, %v1068, 0.0
      %v1074 = vsel %vm1064, %v1041, 0.0
      %v1075 = vsel %vm1065, %v1069, 0.0
      %v1080 = vrot.slane %v1072, 4
      %v1081 = vrot.slane %v1073, 4
      %v1082 = vrot.slane %v1074, 4
      %v1083 = vrot.slane %v1075, 4
      %1088 = vst [vmem:[#allocation4 + $0xc0] sm:$0xf0] %v1080
      %1089 = vst [vmem:[#allocation4 + $0xc8] sm:$0xf0] %v1081
      %1090 = vst [vmem:[#allocation4 + $0xd0] sm:$0xf0] %v1082
      %1091 = vst [vmem:[#allocation4 + $0xd8] sm:$0xf0] %v1083
      %v1092 = vld [vmem:[#allocation2 + $0x4] sm:$0xff]
      %v1093 = vld [vmem:[#allocation2 + $0xc] sm:$0xff]
      %v1094 = vld [vmem:[#allocation2 + $0x14] sm:$0xf]
      %s1095 = scalar_lea.vmem %s3, 38
      %v1096 = vld [vmem:[%s1095] ss:$8 sm:$0xf]
      %vm1097 = vcmp.gt.f32.partialorder %v1096, 0.0
      %v1098 = vsel %vm1097, 1, 0
      %v1099 = vlaneseq
      %v1100 = vshrl.u32 %v1099, 7
      %v1101 = vsub.s32 0, %v1100
      %v1102 = vrot.slane %v1098, %v1101
      %v1103 = vlaneseq
      %v1104 = vshrl.u32 %v1103, 7
      %v1105 = vsub.s32 1, %v1104
      %v1106 = vrot.slane %v1098, %v1105
      %v1107 = vlaneseq
      %v1108 = vshrl.u32 %v1107, 7
      %v1109 = vsub.s32 2, %v1108
      %v1110 = vrot.slane %v1098, %v1109
      %v1111 = vlaneseq
      %v1112 = vshrl.u32 %v1111, 7
      %v1113 = vsub.s32 3, %v1112
      %v1114 = vrot.slane %v1098, %v1113
      %vm1115 = vcmp.eq.s32.totalorder %v1102, 1
      %vm1116 = vcmp.eq.s32.totalorder %v1106, 1
      %vm1117 = vcmp.eq.s32.totalorder %v1110, 1
      %vm1118 = vcmp.eq.s32.totalorder %v1114, 1
      %v1122 = vcombine.high %v1092, %v1092
      %v1123 = vcombine.high %v1093, %v1093
      %1124 = vrot.lane.b32.xlu0 %v1092, 127
      %v1125 = vpop.permute.xlu0 %1124
      %1126 = vrot.lane.b32.xlu0 %v1122, 127
      %v1127 = vpop.permute.xlu0 %1126
      %1128 = vrot.lane.b32.xlu0 %v1093, 127
      %v1129 = vpop.permute.xlu0 %1128
      %1130 = vrot.lane.b32.xlu0 %v1123, 127
      %v1131 = vpop.permute.xlu0 %1130
      %1132 = vrot.lane.b32.xlu0 %v1094, 127
      %v1133 = vpop.permute.xlu0 %1132
      %vm1134 = vcmask 1039360
      %v1135 = vsel %vm1134, %v1125, %v1127
      %v1136 = vsel %vm1134, %v1127, %v1129
      %v1137 = vsel %vm1134, %v1129, %v1131
      %v1138 = vsel %vm1134, %v1131, %v1133
      %v1143 = vsel %vm1115, %v1135, 0.0
      %v1144 = vsel %vm1116, %v1136, 0.0
      %v1145 = vsel %vm1117, %v1137, 0.0
      %v1146 = vsel %vm1118, %v1138, 0.0
      %1147 = vst [vmem:[#allocation4 + $0xe0] sm:$0xf] %v1143
      %1148 = vst [vmem:[#allocation4 + $0xe8] sm:$0xf] %v1144
      %1149 = vst [vmem:[#allocation4 + $0xf0] sm:$0xf] %v1145
      %1150 = vst [vmem:[#allocation4 + $0xf8] sm:$0xf] %v1146
      %v1151 = vld [vmem:[#allocation2 + $0x4] sm:$0xff]
      %v1152 = vld [vmem:[#allocation2 + $0xc] sm:$0xff]
      %v1153 = vld [vmem:[#allocation2 + $0x14] sm:$0xf]
      %s1154 = scalar_lea.vmem %s3, 39
      %v1155 = vld [vmem:[%s1154] ss:$8 sm:$0xf]
      %vm1156 = vcmp.gt.f32.partialorder %v1155, 0.0
      %v1157 = vsel %vm1156, 1, 0
      %v1158 = vlaneseq
      %v1159 = vshrl.u32 %v1158, 7
      %v1160 = vsub.s32 0, %v1159
      %v1161 = vrot.slane %v1157, %v1160
      %v1162 = vlaneseq
      %v1163 = vshrl.u32 %v1162, 7
      %v1164 = vsub.s32 1, %v1163
      %v1165 = vrot.slane %v1157, %v1164
      %v1166 = vlaneseq
      %v1167 = vshrl.u32 %v1166, 7
      %v1168 = vsub.s32 2, %v1167
      %v1169 = vrot.slane %v1157, %v1168
      %v1170 = vlaneseq
      %v1171 = vshrl.u32 %v1170, 7
      %v1172 = vsub.s32 3, %v1171
      %v1173 = vrot.slane %v1157, %v1172
      %vm1174 = vcmp.eq.s32.totalorder %v1161, 1
      %vm1175 = vcmp.eq.s32.totalorder %v1165, 1
      %vm1176 = vcmp.eq.s32.totalorder %v1169, 1
      %vm1177 = vcmp.eq.s32.totalorder %v1173, 1
      %v1181 = vcombine.high %v1151, %v1151
      %v1182 = vcombine.high %v1152, %v1152
      %1183 = vrot.lane.b32.xlu0 %v1151, 121
      %v1184 = vpop.permute.xlu0 %1183
      %1185 = vrot.lane.b32.xlu0 %v1181, 121
      %v1186 = vpop.permute.xlu0 %1185
      %1187 = vrot.lane.b32.xlu0 %v1152, 121
      %v1188 = vpop.permute.xlu0 %1187
      %1189 = vrot.lane.b32.xlu0 %v1182, 121
      %v1190 = vpop.permute.xlu0 %1189
      %1191 = vrot.lane.b32.xlu0 %v1153, 121
      %v1192 = vpop.permute.xlu0 %1191
      %vm1193 = vcmask 990208
      %v1194 = vsel %vm1193, %v1184, %v1186
      %v1195 = vsel %vm1193, %v1186, %v1188
      %v1196 = vsel %vm1193, %v1188, %v1190
      %v1197 = vsel %vm1193, %v1190, %v1192
      %v1202 = vsel %vm1174, %v1194, 0.0
      %v1203 = vsel %vm1175, %v1195, 0.0
      %v1204 = vsel %vm1176, %v1196, 0.0
      %v1205 = vsel %vm1177, %v1197, 0.0
      %v1210 = vrot.slane %v1202, 4
      %v1211 = vrot.slane %v1203, 4
      %v1212 = vrot.slane %v1204, 4
      %v1213 = vrot.slane %v1205, 4
      %1218 = vst [vmem:[#allocation4 + $0xe0] sm:$0xf0] %v1210
      %1219 = vst [vmem:[#allocation4 + $0xe8] sm:$0xf0] %v1211
      %1220 = vst [vmem:[#allocation4 + $0xf0] sm:$0xf0] %v1212
      %1221 = vst [vmem:[#allocation4 + $0xf8] sm:$0xf0] %v1213
      %v1222 = vld [vmem:[#allocation2 + $0x4] sm:$0xff]
      %v1223 = vld [vmem:[#allocation2 + $0xc] sm:$0xff]
      %v1224 = vld [vmem:[#allocation2 + $0x14] sm:$0xf]
      %s1225 = scalar_lea.vmem %s3, 64
      %v1226 = vld [vmem:[%s1225] ss:$8 sm:$0xf]
      %vm1227 = vcmp.gt.f32.partialorder %v1226, 0.0
      %v1228 = vsel %vm1227, 1, 0
      %v1229 = vlaneseq
      %v1230 = vshrl.u32 %v1229, 7
      %v1231 = vsub.s32 0, %v1230
      %v1232 = vrot.slane %v1228, %v1231
      %v1233 = vlaneseq
      %v1234 = vshrl.u32 %v1233, 7
      %v1235 = vsub.s32 1, %v1234
      %v1236 = vrot.slane %v1228, %v1235
      %v1237 = vlaneseq
      %v1238 = vshrl.u32 %v1237, 7
      %v1239 = vsub.s32 2, %v1238
      %v1240 = vrot.slane %v1228, %v1239
      %v1241 = vlaneseq
      %v1242 = vshrl.u32 %v1241, 7
      %v1243 = vsub.s32 3, %v1242
      %v1244 = vrot.slane %v1228, %v1243
      %vm1245 = vcmp.eq.s32.totalorder %v1232, 1
      %vm1246 = vcmp.eq.s32.totalorder %v1236, 1
      %vm1247 = vcmp.eq.s32.totalorder %v1240, 1
      %vm1248 = vcmp.eq.s32.totalorder %v1244, 1
      %v1252 = vcombine.high %v1222, %v1222
      %v1253 = vcombine.high %v1223, %v1223
      %1254 = vrot.lane.b32.xlu0 %v1222, 120
      %v1255 = vpop.permute.xlu0 %1254
      %1256 = vrot.lane.b32.xlu0 %v1252, 120
      %v1257 = vpop.permute.xlu0 %1256
      %1258 = vrot.lane.b32.xlu0 %v1223, 120
      %v1259 = vpop.permute.xlu0 %1258
      %1260 = vrot.lane.b32.xlu0 %v1253, 120
      %v1261 = vpop.permute.xlu0 %1260
      %1262 = vrot.lane.b32.xlu0 %v1224, 120
      %v1263 = vpop.permute.xlu0 %1262
      %vm1264 = vcmask 982016
      %v1265 = vsel %vm1264, %v1255, %v1257
      %v1266 = vsel %vm1264, %v1257, %v1259
      %v1267 = vsel %vm1264, %v1259, %v1261
      %v1268 = vsel %vm1264, %v1261, %v1263
      %v1273 = vsel %vm1245, %v1265, 0.0
      %v1274 = vsel %vm1246, %v1266, 0.0
      %v1275 = vsel %vm1247, %v1267, 0.0
      %v1276 = vsel %vm1248, %v1268, 0.0
      %1277 = vst [vmem:[#allocation4 + $0x100] sm:$0xf] %v1273
      %1278 = vst [vmem:[#allocation4 + $0x108] sm:$0xf] %v1274
      %1279 = vst [vmem:[#allocation4 + $0x110] sm:$0xf] %v1275
      %1280 = vst [vmem:[#allocation4 + $0x118] sm:$0xf] %v1276
      %v1281 = vld [vmem:[#allocation2 + $0x4] sm:$0xff]
      %v1282 = vld [vmem:[#allocation2 + $0xc] sm:$0xff]
      %v1283 = vld [vmem:[#allocation2 + $0x14] sm:$0xf]
      %s1284 = scalar_lea.vmem %s3, 65
      %v1285 = vld [vmem:[%s1284] ss:$8 sm:$0xf]
      %vm1286 = vcmp.gt.f32.partialorder %v1285, 0.0
      %v1287 = vsel %vm1286, 1, 0
      %v1288 = vlaneseq
      %v1289 = vshrl.u32 %v1288, 7
      %v1290 = vsub.s32 0, %v1289
      %v1291 = vrot.slane %v1287, %v1290
      %v1292 = vlaneseq
      %v1293 = vshrl.u32 %v1292, 7
      %v1294 = vsub.s32 1, %v1293
      %v1295 = vrot.slane %v1287, %v1294
      %v1296 = vlaneseq
      %v1297 = vshrl.u32 %v1296, 7
      %v1298 = vsub.s32 2, %v1297
      %v1299 = vrot.slane %v1287, %v1298
      %v1300 = vlaneseq
      %v1301 = vshrl.u32 %v1300, 7
      %v1302 = vsub.s32 3, %v1301
      %v1303 = vrot.slane %v1287, %v1302
      %vm1304 = vcmp.eq.s32.totalorder %v1291, 1
      %vm1305 = vcmp.eq.s32.totalorder %v1295, 1
      %vm1306 = vcmp.eq.s32.totalorder %v1299, 1
      %vm1307 = vcmp.eq.s32.totalorder %v1303, 1
      %v1311 = vcombine.high %v1281, %v1281
      %v1312 = vcombine.high %v1282, %v1282
      %1313 = vrot.lane.b32.xlu0 %v1281, 119
      %v1314 = vpop.permute.xlu0 %1313
      %1315 = vrot.lane.b32.xlu0 %v1311, 119
      %v1316 = vpop.permute.xlu0 %1315
      %1317 = vrot.lane.b32.xlu0 %v1282, 119
      %v1318 = vpop.permute.xlu0 %1317
      %1319 = vrot.lane.b32.xlu0 %v1312, 119
      %v1320 = vpop.permute.xlu0 %1319
      %1321 = vrot.lane.b32.xlu0 %v1283, 119
      %v1322 = vpop.permute.xlu0 %1321
      %vm1323 = vcmask 973824
      %v1324 = vsel %vm1323, %v1314, %v1316
      %v1325 = vsel %vm1323, %v1316, %v1318
      %v1326 = vsel %vm1323, %v1318, %v1320
      %v1327 = vsel %vm1323, %v1320, %v1322
      %v1332 = vsel %vm1304, %v1324, 0.0
      %v1333 = vsel %vm1305, %v1325, 0.0
      %v1334 = vsel %vm1306, %v1326, 0.0
      %v1335 = vsel %vm1307, %v1327, 0.0
      %v1340 = vrot.slane %v1332, 4
      %v1341 = vrot.slane %v1333, 4
      %v1342 = vrot.slane %v1334, 4
      %v1343 = vrot.slane %v1335, 4
      %1348 = vst [vmem:[#allocation4 + $0x100] sm:$0xf0] %v1340
      %1349 = vst [vmem:[#allocation4 + $0x108] sm:$0xf0] %v1341
      %1350 = vst [vmem:[#allocation4 + $0x110] sm:$0xf0] %v1342
      %1351 = vst [vmem:[#allocation4 + $0x118] sm:$0xf0] %v1343
      %v1352 = vld [vmem:[#allocation2 + $0x4] sm:$0xff]
      %v1353 = vld [vmem:[#allocation2 + $0xc] sm:$0xff]
      %v1354 = vld [vmem:[#allocation2 + $0x14] sm:$0xf]
      %s1355 = scalar_lea.vmem %s3, 66
      %v1356 = vld [vmem:[%s1355] ss:$8 sm:$0xf]
      %vm1357 = vcmp.gt.f32.partialorder %v1356, 0.0
      %v1358 = vsel %vm1357, 1, 0
      %v1359 = vlaneseq
      %v1360 = vshrl.u32 %v1359, 7
      %v1361 = vsub.s32 0, %v1360
      %v1362 = vrot.slane %v1358, %v1361
      %v1363 = vlaneseq
      %v1364 = vshrl.u32 %v1363, 7
      %v1365 = vsub.s32 1, %v1364
      %v1366 = vrot.slane %v1358, %v1365
      %v1367 = vlaneseq
      %v1368 = vshrl.u32 %v1367, 7
      %v1369 = vsub.s32 2, %v1368
      %v1370 = vrot.slane %v1358, %v1369
      %v1371 = vlaneseq
      %v1372 = vshrl.u32 %v1371, 7
      %v1373 = vsub.s32 3, %v1372
      %v1374 = vrot.slane %v1358, %v1373
      %vm1375 = vcmp.eq.s32.totalorder %v1362, 1
      %vm1376 = vcmp.eq.s32.totalorder %v1366, 1
      %vm1377 = vcmp.eq.s32.totalorder %v1370, 1
      %vm1378 = vcmp.eq.s32.totalorder %v1374, 1
      %v1382 = vcombine.high %v1352, %v1352
      %v1383 = vcombine.high %v1353, %v1353
      %1384 = vrot.lane.b32.xlu0 %v1352, 73
      %v1385 = vpop.permute.xlu0 %1384
      %1386 = vrot.lane.b32.xlu0 %v1382, 73
      %v1387 = vpop.permute.xlu0 %1386
      %1388 = vrot.lane.b32.xlu0 %v1353, 73
      %v1389 = vpop.permute.xlu0 %1388
      %1390 = vrot.lane.b32.xlu0 %v1383, 73
      %v1391 = vpop.permute.xlu0 %1390
      %1392 = vrot.lane.b32.xlu0 %v1354, 73
      %v1393 = vpop.permute.xlu0 %1392
      %v1394 = vsel %vm243, %v1385, %v1387
      %v1395 = vsel %vm243, %v1387, %v1389
      %v1396 = vsel %vm243, %v1389, %v1391
      %v1397 = vsel %vm243, %v1391, %v1393
      %v1402 = vsel %vm1375, %v1394, 0.0
      %v1403 = vsel %vm1376, %v1395, 0.0
      %v1404 = vsel %vm1377, %v1396, 0.0
      %v1405 = vsel %vm1378, %v1397, 0.0
      %1406 = vst [vmem:[#allocation4 + $0x120] sm:$0xf] %v1402
      %1407 = vst [vmem:[#allocation4 + $0x128] sm:$0xf] %v1403
      %1408 = vst [vmem:[#allocation4 + $0x130] sm:$0xf] %v1404
      %1409 = vst [vmem:[#allocation4 + $0x138] sm:$0xf] %v1405
      %v1410 = vld [vmem:[#allocation2 + $0x4] sm:$0xff]
      %v1411 = vld [vmem:[#allocation2 + $0xc] sm:$0xff]
      %v1412 = vld [vmem:[#allocation2 + $0x14] sm:$0xf]
      %s1413 = scalar_lea.vmem %s3, 67
      %v1414 = vld [vmem:[%s1413] ss:$8 sm:$0xf]
      %vm1415 = vcmp.gt.f32.partialorder %v1414, 0.0
      %v1416 = vsel %vm1415, 1, 0
      %v1417 = vlaneseq
      %v1418 = vshrl.u32 %v1417, 7
      %v1419 = vsub.s32 0, %v1418
      %v1420 = vrot.slane %v1416, %v1419
      %v1421 = vlaneseq
      %v1422 = vshrl.u32 %v1421, 7
      %v1423 = vsub.s32 1, %v1422
      %v1424 = vrot.slane %v1416, %v1423
      %v1425 = vlaneseq
      %v1426 = vshrl.u32 %v1425, 7
      %v1427 = vsub.s32 2, %v1426
      %v1428 = vrot.slane %v1416, %v1427
      %v1429 = vlaneseq
      %v1430 = vshrl.u32 %v1429, 7
      %v1431 = vsub.s32 3, %v1430
      %v1432 = vrot.slane %v1416, %v1431
      %vm1433 = vcmp.eq.s32.totalorder %v1420, 1
      %vm1434 = vcmp.eq.s32.totalorder %v1424, 1
      %vm1435 = vcmp.eq.s32.totalorder %v1428, 1
      %vm1436 = vcmp.eq.s32.totalorder %v1432, 1
      %v1440 = vcombine.high %v1410, %v1410
      %v1441 = vcombine.high %v1411, %v1411
      %1442 = vrot.lane.b32.xlu0 %v1410, 72
      %v1443 = vpop.permute.xlu0 %1442
      %1444 = vrot.lane.b32.xlu0 %v1440, 72
      %v1445 = vpop.permute.xlu0 %1444
      %1446 = vrot.lane.b32.xlu0 %v1411, 72
      %v1447 = vpop.permute.xlu0 %1446
      %1448 = vrot.lane.b32.xlu0 %v1441, 72
      %v1449 = vpop.permute.xlu0 %1448
      %1450 = vrot.lane.b32.xlu0 %v1412, 72
      %v1451 = vpop.permute.xlu0 %1450
      %v1452 = vsel %vm302, %v1443, %v1445
      %v1453 = vsel %vm302, %v1445, %v1447
      %v1454 = vsel %vm302, %v1447, %v1449
      %v1455 = vsel %vm302, %v1449, %v1451
      %v1460 = vsel %vm1433, %v1452, 0.0
      %v1461 = vsel %vm1434, %v1453, 0.0
      %v1462 = vsel %vm1435, %v1454, 0.0
      %v1463 = vsel %vm1436, %v1455, 0.0
      %v1468 = vrot.slane %v1460, 4
      %v1469 = vrot.slane %v1461, 4
      %v1470 = vrot.slane %v1462, 4
      %v1471 = vrot.slane %v1463, 4
      %1476 = vst [vmem:[#allocation4 + $0x120] sm:$0xf0] %v1468
      %1477 = vst [vmem:[#allocation4 + $0x128] sm:$0xf0] %v1469
      %1478 = vst [vmem:[#allocation4 + $0x130] sm:$0xf0] %v1470
      %1479 = vst [vmem:[#allocation4 + $0x138] sm:$0xf0] %v1471
      %v1480 = vld [vmem:[#allocation2 + $0x4] sm:$0xff]
      %v1481 = vld [vmem:[#allocation2 + $0xc] sm:$0xff]
      %v1482 = vld [vmem:[#allocation2 + $0x14] sm:$0xf]
      %s1483 = scalar_lea.vmem %s3, 68
      %v1484 = vld [vmem:[%s1483] ss:$8 sm:$0xf]
      %vm1485 = vcmp.gt.f32.partialorder %v1484, 0.0
      %v1486 = vsel %vm1485, 1, 0
      %v1487 = vlaneseq
      %v1488 = vshrl.u32 %v1487, 7
      %v1489 = vsub.s32 0, %v1488
      %v1490 = vrot.slane %v1486, %v1489
      %v1491 = vlaneseq
      %v1492 = vshrl.u32 %v1491, 7
      %v1493 = vsub.s32 1, %v1492
      %v1494 = vrot.slane %v1486, %v1493
      %v1495 = vlaneseq
      %v1496 = vshrl.u32 %v1495, 7
      %v1497 = vsub.s32 2, %v1496
      %v1498 = vrot.slane %v1486, %v1497
      %v1499 = vlaneseq
      %v1500 = vshrl.u32 %v1499, 7
      %v1501 = vsub.s32 3, %v1500
      %v1502 = vrot.slane %v1486, %v1501
      %vm1503 = vcmp.eq.s32.totalorder %v1490, 1
      %vm1504 = vcmp.eq.s32.totalorder %v1494, 1
      %vm1505 = vcmp.eq.s32.totalorder %v1498, 1
      %vm1506 = vcmp.eq.s32.totalorder %v1502, 1
      %v1510 = vcombine.high %v1480, %v1480
      %v1511 = vcombine.high %v1481, %v1481
      %1512 = vrot.lane.b32.xlu0 %v1480, 71
      %v1513 = vpop.permute.xlu0 %1512
      %1514 = vrot.lane.b32.xlu0 %v1510, 71
      %v1515 = vpop.permute.xlu0 %1514
      %1516 = vrot.lane.b32.xlu0 %v1481, 71
      %v1517 = vpop.permute.xlu0 %1516
      %1518 = vrot.lane.b32.xlu0 %v1511, 71
      %v1519 = vpop.permute.xlu0 %1518
      %1520 = vrot.lane.b32.xlu0 %v1482, 71
      %v1521 = vpop.permute.xlu0 %1520
      %v1522 = vsel %vm373, %v1513, %v1515
      %v1523 = vsel %vm373, %v1515, %v1517
      %v1524 = vsel %vm373, %v1517, %v1519
      %v1525 = vsel %vm373, %v1519, %v1521
      %v1530 = vsel %vm1503, %v1522, 0.0
      %v1531 = vsel %vm1504, %v1523, 0.0
      %v1532 = vsel %vm1505, %v1524, 0.0
      %v1533 = vsel %vm1506, %v1525, 0.0
      %1534 = vst [vmem:[#allocation4 + $0x140] sm:$0xf] %v1530
      %1535 = vst [vmem:[#allocation4 + $0x148] sm:$0xf] %v1531
      %1536 = vst [vmem:[#allocation4 + $0x150] sm:$0xf] %v1532
      %1537 = vst [vmem:[#allocation4 + $0x158] sm:$0xf] %v1533
      %v1538 = vld [vmem:[#allocation2 + $0x4] sm:$0xff]
      %v1539 = vld [vmem:[#allocation2 + $0xc] sm:$0xff]
      %v1540 = vld [vmem:[#allocation2 + $0x14] sm:$0xf]
      %s1541 = scalar_lea.vmem %s3, 69
      %v1542 = vld [vmem:[%s1541] ss:$8 sm:$0xf]
      %vm1543 = vcmp.gt.f32.partialorder %v1542, 0.0
      %v1544 = vsel %vm1543, 1, 0
      %v1545 = vlaneseq
      %v1546 = vshrl.u32 %v1545, 7
      %v1547 = vsub.s32 0, %v1546
      %v1548 = vrot.slane %v1544, %v1547
      %v1549 = vlaneseq
      %v1550 = vshrl.u32 %v1549, 7
      %v1551 = vsub.s32 1, %v1550
      %v1552 = vrot.slane %v1544, %v1551
      %v1553 = vlaneseq
      %v1554 = vshrl.u32 %v1553, 7
      %v1555 = vsub.s32 2, %v1554
      %v1556 = vrot.slane %v1544, %v1555
      %v1557 = vlaneseq
      %v1558 = vshrl.u32 %v1557, 7
      %v1559 = vsub.s32 3, %v1558
      %v1560 = vrot.slane %v1544, %v1559
      %vm1561 = vcmp.eq.s32.totalorder %v1548, 1
      %vm1562 = vcmp.eq.s32.totalorder %v1552, 1
      %vm1563 = vcmp.eq.s32.totalorder %v1556, 1
      %vm1564 = vcmp.eq.s32.totalorder %v1560, 1
      %v1568 = vcombine.high %v1538, %v1538
      %v1569 = vcombine.high %v1539, %v1539
      %1570 = vrot.lane.b32.xlu0 %v1538, 65
      %v1571 = vpop.permute.xlu0 %1570
      %1572 = vrot.lane.b32.xlu0 %v1568, 65
      %v1573 = vpop.permute.xlu0 %1572
      %1574 = vrot.lane.b32.xlu0 %v1539, 65
      %v1575 = vpop.permute.xlu0 %1574
      %1576 = vrot.lane.b32.xlu0 %v1569, 65
      %v1577 = vpop.permute.xlu0 %1576
      %1578 = vrot.lane.b32.xlu0 %v1540, 65
      %v1579 = vpop.permute.xlu0 %1578
      %v1580 = vsel %vm432, %v1571, %v1573
      %v1581 = vsel %vm432, %v1573, %v1575
      %v1582 = vsel %vm432, %v1575, %v1577
      %v1583 = vsel %vm432, %v1577, %v1579
      %v1588 = vsel %vm1561, %v1580, 0.0
      %v1589 = vsel %vm1562, %v1581, 0.0
      %v1590 = vsel %vm1563, %v1582, 0.0
      %v1591 = vsel %vm1564, %v1583, 0.0
      %v1596 = vrot.slane %v1588, 4
      %v1597 = vrot.slane %v1589, 4
      %v1598 = vrot.slane %v1590, 4
      %v1599 = vrot.slane %v1591, 4
      %1604 = vst [vmem:[#allocation4 + $0x140] sm:$0xf0] %v1596
      %1605 = vst [vmem:[#allocation4 + $0x148] sm:$0xf0] %v1597
      %1606 = vst [vmem:[#allocation4 + $0x150] sm:$0xf0] %v1598
      %1607 = vst [vmem:[#allocation4 + $0x158] sm:$0xf0] %v1599
      %v1608 = vld [vmem:[#allocation2 + $0x4] sm:$0xff]
      %v1609 = vld [vmem:[#allocation2 + $0xc] sm:$0xff]
      %v1610 = vld [vmem:[#allocation2 + $0x14] sm:$0xf]
      %s1611 = scalar_lea.vmem %s3, 70
      %v1612 = vld [vmem:[%s1611] ss:$8 sm:$0xf]
      %vm1613 = vcmp.gt.f32.partialorder %v1612, 0.0
      %v1614 = vsel %vm1613, 1, 0
      %v1615 = vlaneseq
      %v1616 = vshrl.u32 %v1615, 7
      %v1617 = vsub.s32 0, %v1616
      %v1618 = vrot.slane %v1614, %v1617
      %v1619 = vlaneseq
      %v1620 = vshrl.u32 %v1619, 7
      %v1621 = vsub.s32 1, %v1620
      %v1622 = vrot.slane %v1614, %v1621
      %v1623 = vlaneseq
      %v1624 = vshrl.u32 %v1623, 7
      %v1625 = vsub.s32 2, %v1624
      %v1626 = vrot.slane %v1614, %v1625
      %v1627 = vlaneseq
      %v1628 = vshrl.u32 %v1627, 7
      %v1629 = vsub.s32 3, %v1628
      %v1630 = vrot.slane %v1614, %v1629
      %vm1631 = vcmp.eq.s32.totalorder %v1618, 1
      %vm1632 = vcmp.eq.s32.totalorder %v1622, 1
      %vm1633 = vcmp.eq.s32.totalorder %v1626, 1
      %vm1634 = vcmp.eq.s32.totalorder %v1630, 1
      %v1638 = vcombine.high %v1608, %v1608
      %v1639 = vcombine.high %v1609, %v1609
      %1640 = vrot.lane.b32.xlu0 %v1608, 64
      %v1641 = vpop.permute.xlu0 %1640
      %1642 = vrot.lane.b32.xlu0 %v1638, 64
      %v1643 = vpop.permute.xlu0 %1642
      %1644 = vrot.lane.b32.xlu0 %v1609, 64
      %v1645 = vpop.permute.xlu0 %1644
      %1646 = vrot.lane.b32.xlu0 %v1639, 64
      %v1647 = vpop.permute.xlu0 %1646
      %1648 = vrot.lane.b32.xlu0 %v1610, 64
      %v1649 = vpop.permute.xlu0 %1648
      %v1650 = vsel %vm503, %v1641, %v1643
      %v1651 = vsel %vm503, %v1643, %v1645
      %v1652 = vsel %vm503, %v1645, %v1647
      %v1653 = vsel %vm503, %v1647, %v1649
      %v1658 = vsel %vm1631, %v1650, 0.0
      %v1659 = vsel %vm1632, %v1651, 0.0
      %v1660 = vsel %vm1633, %v1652, 0.0
      %v1661 = vsel %vm1634, %v1653, 0.0
      %1662 = vst [vmem:[#allocation4 + $0x160] sm:$0xf] %v1658
      %1663 = vst [vmem:[#allocation4 + $0x168] sm:$0xf] %v1659
      %1664 = vst [vmem:[#allocation4 + $0x170] sm:$0xf] %v1660
      %1665 = vst [vmem:[#allocation4 + $0x178] sm:$0xf] %v1661
      %v1666 = vld [vmem:[#allocation2 + $0x4] sm:$0xff]
      %v1667 = vld [vmem:[#allocation2 + $0xc] sm:$0xff]
      %v1668 = vld [vmem:[#allocation2 + $0x14] sm:$0xf]
      %s1669 = scalar_lea.vmem %s3, 71
      %v1670 = vld [vmem:[%s1669] ss:$8 sm:$0xf]
      %vm1671 = vcmp.gt.f32.partialorder %v1670, 0.0
      %v1672 = vsel %vm1671, 1, 0
      %v1673 = vlaneseq
      %v1674 = vshrl.u32 %v1673, 7
      %v1675 = vsub.s32 0, %v1674
      %v1676 = vrot.slane %v1672, %v1675
      %v1677 = vlaneseq
      %v1678 = vshrl.u32 %v1677, 7
      %v1679 = vsub.s32 1, %v1678
      %v1680 = vrot.slane %v1672, %v1679
      %v1681 = vlaneseq
      %v1682 = vshrl.u32 %v1681, 7
      %v1683 = vsub.s32 2, %v1682
      %v1684 = vrot.slane %v1672, %v1683
      %v1685 = vlaneseq
      %v1686 = vshrl.u32 %v1685, 7
      %v1687 = vsub.s32 3, %v1686
      %v1688 = vrot.slane %v1672, %v1687
      %vm1689 = vcmp.eq.s32.totalorder %v1676, 1
      %vm1690 = vcmp.eq.s32.totalorder %v1680, 1
      %vm1691 = vcmp.eq.s32.totalorder %v1684, 1
      %vm1692 = vcmp.eq.s32.totalorder %v1688, 1
      %v1696 = vcombine.high %v1666, %v1666
      %v1697 = vcombine.high %v1667, %v1667
      %1698 = vrot.lane.b32.xlu0 %v1666, 63
      %v1699 = vpop.permute.xlu0 %1698
      %1700 = vrot.lane.b32.xlu0 %v1696, 63
      %v1701 = vpop.permute.xlu0 %1700
      %1702 = vrot.lane.b32.xlu0 %v1667, 63
      %v1703 = vpop.permute.xlu0 %1702
      %1704 = vrot.lane.b32.xlu0 %v1697, 63
      %v1705 = vpop.permute.xlu0 %1704
      %1706 = vrot.lane.b32.xlu0 %v1668, 63
      %v1707 = vpop.permute.xlu0 %1706
      %v1708 = vsel %vm562, %v1699, %v1701
      %v1709 = vsel %vm562, %v1701, %v1703
      %v1710 = vsel %vm562, %v1703, %v1705
      %v1711 = vsel %vm562, %v1705, %v1707
      %v1716 = vsel %vm1689, %v1708, 0.0
      %v1717 = vsel %vm1690, %v1709, 0.0
      %v1718 = vsel %vm1691, %v1710, 0.0
      %v1719 = vsel %vm1692, %v1711, 0.0
      %v1724 = vrot.slane %v1716, 4
      %v1725 = vrot.slane %v1717, 4
      %v1726 = vrot.slane %v1718, 4
      %v1727 = vrot.slane %v1719, 4
      %1732 = vst [vmem:[#allocation4 + $0x160] sm:$0xf0] %v1724
      %1733 = vst [vmem:[#allocation4 + $0x168] sm:$0xf0] %v1725
      %1734 = vst [vmem:[#allocation4 + $0x170] sm:$0xf0] %v1726
      %1735 = vst [vmem:[#allocation4 + $0x178] sm:$0xf0] %v1727
      %v1736 = vld [vmem:[#allocation2 + $0x4] sm:$0xff]
      %v1737 = vld [vmem:[#allocation2 + $0xc] sm:$0xff]
      %v1738 = vld [vmem:[#allocation2 + $0x14] sm:$0xf]
      %s1739 = scalar_lea.vmem %s3, 96
      %v1740 = vld [vmem:[%s1739] ss:$8 sm:$0xf]
      %vm1741 = vcmp.gt.f32.partialorder %v1740, 0.0
      %v1742 = vsel %vm1741, 1, 0
      %v1743 = vlaneseq
      %v1744 = vshrl.u32 %v1743, 7
      %v1745 = vsub.s32 0, %v1744
      %v1746 = vrot.slane %v1742, %v1745
      %v1747 = vlaneseq
      %v1748 = vshrl.u32 %v1747, 7
      %v1749 = vsub.s32 1, %v1748
      %v1750 = vrot.slane %v1742, %v1749
      %v1751 = vlaneseq
      %v1752 = vshrl.u32 %v1751, 7
      %v1753 = vsub.s32 2, %v1752
      %v1754 = vrot.slane %v1742, %v1753
      %v1755 = vlaneseq
      %v1756 = vshrl.u32 %v1755, 7
      %v1757 = vsub.s32 3, %v1756
      %v1758 = vrot.slane %v1742, %v1757
      %vm1759 = vcmp.eq.s32.totalorder %v1746, 1
      %vm1760 = vcmp.eq.s32.totalorder %v1750, 1
      %vm1761 = vcmp.eq.s32.totalorder %v1754, 1
      %vm1762 = vcmp.eq.s32.totalorder %v1758, 1
      %v1766 = vcombine.high %v1736, %v1736
      %v1767 = vcombine.high %v1737, %v1737
      %1768 = vrot.lane.b32.xlu0 %v1736, 57
      %v1769 = vpop.permute.xlu0 %1768
      %1770 = vrot.lane.b32.xlu0 %v1766, 57
      %v1771 = vpop.permute.xlu0 %1770
      %1772 = vrot.lane.b32.xlu0 %v1737, 57
      %v1773 = vpop.permute.xlu0 %1772
      %1774 = vrot.lane.b32.xlu0 %v1767, 57
      %v1775 = vpop.permute.xlu0 %1774
      %1776 = vrot.lane.b32.xlu0 %v1738, 57
      %v1777 = vpop.permute.xlu0 %1776
      %v1778 = vsel %vm633, %v1769, %v1771
      %v1779 = vsel %vm633, %v1771, %v1773
      %v1780 = vsel %vm633, %v1773, %v1775
      %v1781 = vsel %vm633, %v1775, %v1777
      %v1786 = vsel %vm1759, %v1778, 0.0
      %v1787 = vsel %vm1760, %v1779, 0.0
      %v1788 = vsel %vm1761, %v1780, 0.0
      %v1789 = vsel %vm1762, %v1781, 0.0
      %1790 = vst [vmem:[#allocation4 + $0x180] sm:$0xf] %v1786
      %1791 = vst [vmem:[#allocation4 + $0x188] sm:$0xf] %v1787
      %1792 = vst [vmem:[#allocation4 + $0x190] sm:$0xf] %v1788
      %1793 = vst [vmem:[#allocation4 + $0x198] sm:$0xf] %v1789
      %v1794 = vld [vmem:[#allocation2 + $0x4] sm:$0xff]
      %v1795 = vld [vmem:[#allocation2 + $0xc] sm:$0xff]
      %v1796 = vld [vmem:[#allocation2 + $0x14] sm:$0xf]
      %s1797 = scalar_lea.vmem %s3, 97
      %v1798 = vld [vmem:[%s1797] ss:$8 sm:$0xf]
      %vm1799 = vcmp.gt.f32.partialorder %v1798, 0.0
      %v1800 = vsel %vm1799, 1, 0
      %v1801 = vlaneseq
      %v1802 = vshrl.u32 %v1801, 7
      %v1803 = vsub.s32 0, %v1802
      %v1804 = vrot.slane %v1800, %v1803
      %v1805 = vlaneseq
      %v1806 = vshrl.u32 %v1805, 7
      %v1807 = vsub.s32 1, %v1806
      %v1808 = vrot.slane %v1800, %v1807
      %v1809 = vlaneseq
      %v1810 = vshrl.u32 %v1809, 7
      %v1811 = vsub.s32 2, %v1810
      %v1812 = vrot.slane %v1800, %v1811
      %v1813 = vlaneseq
      %v1814 = vshrl.u32 %v1813, 7
      %v1815 = vsub.s32 3, %v1814
      %v1816 = vrot.slane %v1800, %v1815
      %vm1817 = vcmp.eq.s32.totalorder %v1804, 1
      %vm1818 = vcmp.eq.s32.totalorder %v1808, 1
      %vm1819 = vcmp.eq.s32.totalorder %v1812, 1
      %vm1820 = vcmp.eq.s32.totalorder %v1816, 1
      %v1824 = vcombine.high %v1794, %v1794
      %v1825 = vcombine.high %v1795, %v1795
      %1826 = vrot.lane.b32.xlu0 %v1794, 56
      %v1827 = vpop.permute.xlu0 %1826
      %1828 = vrot.lane.b32.xlu0 %v1824, 56
      %v1829 = vpop.permute.xlu0 %1828
      %1830 = vrot.lane.b32.xlu0 %v1795, 56
      %v1831 = vpop.permute.xlu0 %1830
      %1832 = vrot.lane.b32.xlu0 %v1825, 56
      %v1833 = vpop.permute.xlu0 %1832
      %1834 = vrot.lane.b32.xlu0 %v1796, 56
      %v1835 = vpop.permute.xlu0 %1834
      %v1836 = vsel %vm692, %v1827, %v1829
      %v1837 = vsel %vm692, %v1829, %v1831
      %v1838 = vsel %vm692, %v1831, %v1833
      %v1839 = vsel %vm692, %v1833, %v1835
      %v1844 = vsel %vm1817, %v1836, 0.0
      %v1845 = vsel %vm1818, %v1837, 0.0
      %v1846 = vsel %vm1819, %v1838, 0.0
      %v1847 = vsel %vm1820, %v1839, 0.0
      %v1852 = vrot.slane %v1844, 4
      %v1853 = vrot.slane %v1845, 4
      %v1854 = vrot.slane %v1846, 4
      %v1855 = vrot.slane %v1847, 4
      %1860 = vst [vmem:[#allocation4 + $0x180] sm:$0xf0] %v1852
      %1861 = vst [vmem:[#allocation4 + $0x188] sm:$0xf0] %v1853
      %1862 = vst [vmem:[#allocation4 + $0x190] sm:$0xf0] %v1854
      %1863 = vst [vmem:[#allocation4 + $0x198] sm:$0xf0] %v1855
      %v1864 = vld [vmem:[#allocation2 + $0x4] sm:$0xff]
      %v1865 = vld [vmem:[#allocation2 + $0xc] sm:$0xff]
      %v1866 = vld [vmem:[#allocation2 + $0x14] sm:$0xf]
      %s1867 = scalar_lea.vmem %s3, 98
      %v1868 = vld [vmem:[%s1867] ss:$8 sm:$0xf]
      %vm1869 = vcmp.gt.f32.partialorder %v1868, 0.0
      %v1870 = vsel %vm1869, 1, 0
      %v1871 = vlaneseq
      %v1872 = vshrl.u32 %v1871, 7
      %v1873 = vsub.s32 0, %v1872
      %v1874 = vrot.slane %v1870, %v1873
      %v1875 = vlaneseq
      %v1876 = vshrl.u32 %v1875, 7
      %v1877 = vsub.s32 1, %v1876
      %v1878 = vrot.slane %v1870, %v1877
      %v1879 = vlaneseq
      %v1880 = vshrl.u32 %v1879, 7
      %v1881 = vsub.s32 2, %v1880
      %v1882 = vrot.slane %v1870, %v1881
      %v1883 = vlaneseq
      %v1884 = vshrl.u32 %v1883, 7
      %v1885 = vsub.s32 3, %v1884
      %v1886 = vrot.slane %v1870, %v1885
      %vm1887 = vcmp.eq.s32.totalorder %v1874, 1
      %vm1888 = vcmp.eq.s32.totalorder %v1878, 1
      %vm1889 = vcmp.eq.s32.totalorder %v1882, 1
      %vm1890 = vcmp.eq.s32.totalorder %v1886, 1
      %v1894 = vcombine.high %v1864, %v1864
      %v1895 = vcombine.high %v1865, %v1865
      %1896 = vrot.lane.b32.xlu0 %v1864, 55
      %v1897 = vpop.permute.xlu0 %1896
      %1898 = vrot.lane.b32.xlu0 %v1894, 55
      %v1899 = vpop.permute.xlu0 %1898
      %1900 = vrot.lane.b32.xlu0 %v1865, 55
      %v1901 = vpop.permute.xlu0 %1900
      %1902 = vrot.lane.b32.xlu0 %v1895, 55
      %v1903 = vpop.permute.xlu0 %1902
      %1904 = vrot.lane.b32.xlu0 %v1866, 55
      %v1905 = vpop.permute.xlu0 %1904
      %v1906 = vsel %vm763, %v1897, %v1899
      %v1907 = vsel %vm763, %v1899, %v1901
      %v1908 = vsel %vm763, %v1901, %v1903
      %v1909 = vsel %vm763, %v1903, %v1905
      %v1914 = vsel %vm1887, %v1906, 0.0
      %v1915 = vsel %vm1888, %v1907, 0.0
      %v1916 = vsel %vm1889, %v1908, 0.0
      %v1917 = vsel %vm1890, %v1909, 0.0
      %1918 = vst [vmem:[#allocation4 + $0x1a0] sm:$0xf] %v1914
      %1919 = vst [vmem:[#allocation4 + $0x1a8] sm:$0xf] %v1915
      %1920 = vst [vmem:[#allocation4 + $0x1b0] sm:$0xf] %v1916
      %1921 = vst [vmem:[#allocation4 + $0x1b8] sm:$0xf] %v1917
      %1922 = vst [vmem:[#allocation4 + $0x1a0] sm:$0xf0] 0.0
      %1923 = vst [vmem:[#allocation4 + $0x1a8] sm:$0xf0] 0.0
      %1924 = vst [vmem:[#allocation4 + $0x1b0] sm:$0xf0] 0.0
      %1925 = vst [vmem:[#allocation4 + $0x1b8] sm:$0xf0] 0.0
      %v1926 = vld [vmem:[%s1] sm:$0xff]
      %v1927 = vld [vmem:[#allocation4] sm:$0xff]
      %v1928 = vld [vmem:[#allocation4 + $0x8] sm:$0xff]
      %v1929 = vld [vmem:[#allocation4 + $0x10] sm:$0xff]
      %v1930 = vld [vmem:[#allocation4 + $0x18] sm:$0xff]
      %v1931 = vld [vmem:[#allocation4 + $0x20] sm:$0xff]
      %v1932 = vld [vmem:[#allocation4 + $0x28] sm:$0xff]
      %v1933 = vld [vmem:[#allocation4 + $0x30] sm:$0xff]
      %v1934 = vld [vmem:[#allocation4 + $0x38] sm:$0xff]
      %v1935 = vld [vmem:[#allocation4 + $0x40] sm:$0xff]
      %v1936 = vld [vmem:[#allocation4 + $0x48] sm:$0xff]
      %v1937 = vld [vmem:[#allocation4 + $0x50] sm:$0xff]
      %v1938 = vld [vmem:[#allocation4 + $0x58] sm:$0xff]
      %v1939 = vld [vmem:[#allocation4 + $0x60] sm:$0xff]
      %v1940 = vld [vmem:[#allocation4 + $0x68] sm:$0xff]
      %v1941 = vld [vmem:[#allocation4 + $0x70] sm:$0xff]
      %v1942 = vld [vmem:[#allocation4 + $0x78] sm:$0xff]
      %v1943 = vld [vmem:[#allocation4 + $0x80] sm:$0xff]
      %v1944 = vld [vmem:[#allocation4 + $0x88] sm:$0xff]
      %v1945 = vld [vmem:[#allocation4 + $0x90] sm:$0xff]
      %v1946 = vld [vmem:[#allocation4 + $0x98] sm:$0xff]
      %v1947 = vld [vmem:[#allocation4 + $0xa0] sm:$0xff]
      %v1948 = vld [vmem:[#allocation4 + $0xa8] sm:$0xff]
      %v1949 = vld [vmem:[#allocation4 + $0xb0] sm:$0xff]
      %v1950 = vld [vmem:[#allocation4 + $0xb8] sm:$0xff]
      %v1951 = vld [vmem:[#allocation4 + $0xc0] sm:$0xff]
      %v1952 = vld [vmem:[#allocation4 + $0xc8] sm:$0xff]
      %v1953 = vld [vmem:[#allocation4 + $0xd0] sm:$0xff]
      %v1954 = vld [vmem:[#allocation4 + $0xd8] sm:$0xff]
      %v1955 = vld [vmem:[#allocation4 + $0xe0] sm:$0xff]
      %v1956 = vld [vmem:[#allocation4 + $0xe8] sm:$0xff]
      %v1957 = vld [vmem:[#allocation4 + $0xf0] sm:$0xff]
      %v1958 = vld [vmem:[#allocation4 + $0xf8] sm:$0xff]
      %v1959 = vld [vmem:[#allocation4 + $0x100] sm:$0xff]
      %v1960 = vld [vmem:[#allocation4 + $0x108] sm:$0xff]
      %v1961 = vld [vmem:[#allocation4 + $0x110] sm:$0xff]
      %v1962 = vld [vmem:[#allocation4 + $0x118] sm:$0xff]
      %v1963 = vld [vmem:[#allocation4 + $0x120] sm:$0xff]
      %v1964 = vld [vmem:[#allocation4 + $0x128] sm:$0xff]
      %v1965 = vld [vmem:[#allocation4 + $0x130] sm:$0xff]
      %v1966 = vld [vmem:[#allocation4 + $0x138] sm:$0xff]
      %v1967 = vld [vmem:[#allocation4 + $0x140] sm:$0xff]
      %v1968 = vld [vmem:[#allocation4 + $0x148] sm:$0xff]
      %v1969 = vld [vmem:[#allocation4 + $0x150] sm:$0xff]
      %v1970 = vld [vmem:[#allocation4 + $0x158] sm:$0xff]
      %v1971 = vld [vmem:[#allocation4 + $0x160] sm:$0xff]
      %v1972 = vld [vmem:[#allocation4 + $0x168] sm:$0xff]
      %v1973 = vld [vmem:[#allocation4 + $0x170] sm:$0xff]
      %v1974 = vld [vmem:[#allocation4 + $0x178] sm:$0xff]
      %v1975 = vld [vmem:[#allocation4 + $0x180] sm:$0xff]
      %v1976 = vld [vmem:[#allocation4 + $0x188] sm:$0xff]
      %v1977 = vld [vmem:[#allocation4 + $0x190] sm:$0xff]
      %v1978 = vld [vmem:[#allocation4 + $0x198] sm:$0xff]
      %v1979 = vld [vmem:[#allocation4 + $0x1a0] sm:$0xff]
      %v1980 = vld [vmem:[#allocation4 + $0x1a8] sm:$0xff]
      %v1981 = vld [vmem:[#allocation4 + $0x1b0] sm:$0xff]
      %v1982 = vld [vmem:[#allocation4 + $0x1b8] sm:$0xff]
      %vm1983 = vcmask 916480
      %v1985 = vsel %vm1983, %v1926, 0
      %1987 = vmatprep.subr.mxu0 %v1928
      %1988 = vmatpush1.msra.mxu0 %v1927
      %1989 = vmatprep.subr.mxu0 %v1932
      %1990 = vmatpush1.msra.mxu0 %v1931
      %1991 = vmatprep.subr.mxu0 %v1936
      %1992 = vmatpush1.msra.mxu0 %v1935
      %1993 = vmatprep.subr.mxu0 %v1940
      %1994 = vmatpush1.msra.mxu0 %v1939
      %1995 = vmatprep.subr.mxu0 %v1944
      %1996 = vmatpush1.msra.mxu0 %v1943
      %1997 = vmatprep.subr.mxu0 %v1948
      %1998 = vmatpush1.msra.mxu0 %v1947
      %1999 = vmatprep.subr.mxu0 %v1952
      %2000 = vmatpush1.msra.mxu0 %v1951
      %2001 = vmatprep.subr.mxu0 %v1956
      %2002 = vmatpush1.msra.mxu0 %v1955
      %2003 = vmatprep.subr.mxu0 %v1960
      %2004 = vmatpush1.msra.mxu0 %v1959
      %2005 = vmatprep.subr.mxu0 %v1964
      %2006 = vmatpush1.msra.mxu0 %v1963
      %2007 = vmatprep.subr.mxu0 %v1968
      %2008 = vmatpush1.msra.mxu0 %v1967
      %2009 = vmatprep.subr.mxu0 %v1972
      %2010 = vmatpush1.msra.mxu0 %v1971
      %2011 = vmatprep.subr.mxu0 %v1976
      %2012 = vmatpush1.msra.mxu0 %v1975
      %2013 = vmatprep.subr.mxu0 %v1980
      %2014 = vmatpush1.msra.mxu0 %v1979
      %2015 = vmatprep.subr.mxu0 0.0
      %2016 = vmatpush1.msra.mxu0 0.0
      %2017 = vmatprep.subr.mxu0 0.0
      %2018 = vmatpush1.msra.mxu0 0.0
      %2019 = vmatprep.subr.mxu0 0.0
      %2020 = vmatpush1.msra.mxu0 0.0
      %2021 = vmatprep.subr.mxu0 0.0
      %2022 = vmatpush1.msra.mxu0 0.0
      %2023 = vmatprep.subr.mxu0 0.0
      %2024 = vmatpush1.msra.mxu0 0.0
      %2025 = vmatprep.subr.mxu0 0.0
      %2026 = vmatpush1.msra.mxu0 0.0
      %2027 = vmatprep.subr.mxu0 0.0
      %2028 = vmatpush1.msra.mxu0 0.0
      %2029 = vmatprep.subr.mxu0 0.0
      %2030 = vmatpush1.msra.mxu0 0.0
      %2031 = vmatprep.subr.mxu0 0.0
      %2032 = vmatpush1.msra.mxu0 0.0
      %2033 = vmatprep.subr.mxu0 0.0
      %2034 = vmatpush1.msra.mxu0 0.0
      %2035 = vmatprep.subr.mxu0 0.0
      %2036 = vmatpush1.msra.mxu0 0.0
      %2037 = vmatprep.subr.mxu0 0.0
      %2038 = vmatpush1.msra.mxu0 0.0
      %2039 = vmatprep.subr.mxu0 0.0
      %2040 = vmatpush1.msra.mxu0 0.0
      %2041 = vmatprep.subr.mxu0 0.0
      %2042 = vmatpush1.msra.mxu0 0.0
      %2043 = vmatprep.subr.mxu0 0.0
      %2044 = vmatpush1.msra.mxu0 0.0
      %2045 = vmatprep.subr.mxu0 0.0
      %2046 = vmatpush1.msra.mxu0 0.0
      %2047 = vmatprep.subr.mxu0 0.0
      %2048 = vmatpush1.msra.mxu0 0.0
      %2049 = vmatprep.subr.mxu0 0.0
      %2050 = vmatpush1.msra.mxu0 0.0
      %2051 = vmatprep.mubr.f32.mxu0 0.0
      %2052 = vmatmul.mubr.f32.gmra.mrb[0].mxu0 %v1985
      %v2053 = vpop.f32.mrb[0].mxu0
      %v2054 = vadd.f32 0.0, %v2053
      %v2055 = vpop.f32.mrb[0].mxu0
      %v2056 = vadd.f32 0.0, %v2055
      %2057 = vdwg.mxu0
      %2058 = vmatprep.subr.mxu0 %v1930
      %2059 = vmatpush1.msra.mxu0 %v1929
      %2060 = vmatprep.subr.mxu0 %v1934
      %2061 = vmatpush1.msra.mxu0 %v1933
      %2062 = vmatprep.subr.mxu0 %v1938
      %2063 = vmatpush1.msra.mxu0 %v1937
      %2064 = vmatprep.subr.mxu0 %v1942
      %2065 = vmatpush1.msra.mxu0 %v1941
      %2066 = vmatprep.subr.mxu0 %v1946
      %2067 = vmatpush1.msra.mxu0 %v1945
      %2068 = vmatprep.subr.mxu0 %v1950
      %2069 = vmatpush1.msra.mxu0 %v1949
      %2070 = vmatprep.subr.mxu0 %v1954
      %2071 = vmatpush1.msra.mxu0 %v1953
      %2072 = vmatprep.subr.mxu0 %v1958
      %2073 = vmatpush1.msra.mxu0 %v1957
      %2074 = vmatprep.subr.mxu0 %v1962
      %2075 = vmatpush1.msra.mxu0 %v1961
      %2076 = vmatprep.subr.mxu0 %v1966
      %2077 = vmatpush1.msra.mxu0 %v1965
      %2078 = vmatprep.subr.mxu0 %v1970
      %2079 = vmatpush1.msra.mxu0 %v1969
      %2080 = vmatprep.subr.mxu0 %v1974
      %2081 = vmatpush1.msra.mxu0 %v1973
      %2082 = vmatprep.subr.mxu0 %v1978
      %2083 = vmatpush1.msra.mxu0 %v1977
      %2084 = vmatprep.subr.mxu0 %v1982
      %2085 = vmatpush1.msra.mxu0 %v1981
      %2086 = vmatprep.subr.mxu0 0.0
      %2087 = vmatpush1.msra.mxu0 0.0
      %2088 = vmatprep.subr.mxu0 0.0
      %2089 = vmatpush1.msra.mxu0 0.0
      %2090 = vmatprep.subr.mxu0 0.0
      %2091 = vmatpush1.msra.mxu0 0.0
      %2092 = vmatprep.subr.mxu0 0.0
      %2093 = vmatpush1.msra.mxu0 0.0
      %2094 = vmatprep.subr.mxu0 0.0
      %2095 = vmatpush1.msra.mxu0 0.0
      %2096 = vmatprep.subr.mxu0 0.0
      %2097 = vmatpush1.msra.mxu0 0.0
      %2098 = vmatprep.subr.mxu0 0.0
      %2099 = vmatpush1.msra.mxu0 0.0
      %2100 = vmatprep.subr.mxu0 0.0
      %2101 = vmatpush1.msra.mxu0 0.0
      %2102 = vmatprep.subr.mxu0 0.0
      %2103 = vmatpush1.msra.mxu0 0.0
      %2104 = vmatprep.subr.mxu0 0.0
      %2105 = vmatpush1.msra.mxu0 0.0
      %2106 = vmatprep.subr.mxu0 0.0
      %2107 = vmatpush1.msra.mxu0 0.0
      %2108 = vmatprep.subr.mxu0 0.0
      %2109 = vmatpush1.msra.mxu0 0.0
      %2110 = vmatprep.subr.mxu0 0.0
      %2111 = vmatpush1.msra.mxu0 0.0
      %2112 = vmatprep.subr.mxu0 0.0
      %2113 = vmatpush1.msra.mxu0 0.0
      %2114 = vmatprep.subr.mxu0 0.0
      %2115 = vmatpush1.msra.mxu0 0.0
      %2116 = vmatprep.subr.mxu0 0.0
      %2117 = vmatpush1.msra.mxu0 0.0
      %2118 = vmatprep.subr.mxu0 0.0
      %2119 = vmatpush1.msra.mxu0 0.0
      %2120 = vmatprep.subr.mxu0 0.0
      %2121 = vmatpush1.msra.mxu0 0.0
      %2122 = vmatprep.mubr.f32.mxu0 0.0
      %2123 = vmatmul.mubr.f32.gmra.mrb[0].mxu0 %v1985
      %v2124 = vpop.f32.mrb[0].mxu0
      %v2125 = vadd.f32 0.0, %v2124
      %v2126 = vpop.f32.mrb[0].mxu0
      %v2127 = vadd.f32 0.0, %v2126
      %2128 = vdwg.mxu0
      %v2129 = vadd.f32 %v2054, %v2056
      %v2130 = vadd.f32 %v2129, %v2125
      %v2131 = vadd.f32 %v2130, %v2127
      %2132 = vadd.xlane.f32.xlu0 %v2131
      %v2133 = vpop.xlane.xlu0 %2132
      %v2134 = vmul.f32 %v2133, 0.001953125
      %v2135 = vmul.f32 %v2054, %v2054
      %v2136 = vmul.f32 %v2056, %v2056
      %v2137 = vmul.f32 %v2125, %v2125
      %v2138 = vmul.f32 %v2127, %v2127
      %v2139 = vadd.f32 %v2135, %v2136
      %v2140 = vadd.f32 %v2139, %v2137
      %v2141 = vadd.f32 %v2140, %v2138
      %2142 = vadd.xlane.f32.xlu0 %v2141
      %v2143 = vpop.xlane.xlu0 %2142
      %v2144 = vmul.f32 %v2143, 0.001953125
      %v2145 = vmul.f32 %v2134, %v2134
      %v2146 = vsub.f32 %v2144, %v2145
      %v2147 = vsub.f32 %v2054, %v2134
      %v2148 = vsub.f32 %v2056, %v2134
      %v2149 = vsub.f32 %v2125, %v2134
      %v2150 = vsub.f32 %v2127, %v2134
      %v2151 = vadd.f32 %v2146, 1e-05
      %v2152 = vrsqrt.pop %v2151
      %v2153 = vmul.f32 %v2147, %v2152
      %v2154 = vmul.f32 %v2148, %v2152
      %v2155 = vmul.f32 %v2149, %v2152
      %v2156 = vmul.f32 %v2150, %v2152
      %vm2157 = vcmp.ge.f32.partialorder %v2153, 0.0
      %vm2158 = vcmp.ge.f32.partialorder %v2154, 0.0
      %vm2159 = vcmp.ge.f32.partialorder %v2155, 0.0
      %vm2160 = vcmp.ge.f32.partialorder %v2156, 0.0
      %v2161 = vmul.f32 %v2153, 0.01
      %v2162 = vmul.f32 %v2154, 0.01
      %v2163 = vmul.f32 %v2155, 0.01
      %v2164 = vmul.f32 %v2156, 0.01
      %v2165 = vsel %vm2157, %v2153, %v2161
      %v2166 = vsel %vm2158, %v2154, %v2162
      %v2167 = vsel %vm2159, %v2155, %v2163
      %v2168 = vsel %vm2160, %v2156, %v2164
      %2169 = vst [vmem:[#allocation3 + $0x8] sm:$0xff] %v2165
      %2170 = vst [vmem:[#allocation3 + $0x10] sm:$0xff] %v2166
      %2171 = vst [vmem:[#allocation3 + $0x18] sm:$0xff] %v2167
      %2172 = vst [vmem:[#allocation3 + $0x20] sm:$0xff] %v2168
      %v2173 = vld [vmem:[#allocation3] sm:$0xff]
      %v2174 = vld [vmem:[#allocation3 + $0x8] sm:$0xff]
      %v2175 = vld [vmem:[#allocation3 + $0x10] sm:$0xff]
      %v2176 = vld [vmem:[#allocation3 + $0x18] sm:$0xff]
      %v2177 = vld [vmem:[#allocation3 + $0x20] sm:$0xff]
      %v2178 = vld [vmem:[%s3] ss:$8 sm:$0xf]
      %vm2179 = vcmp.gt.f32.partialorder %v2178, 0.0
      %v2180 = vsel %vm2179, 1, 0
      %v2181 = vlaneseq
      %v2182 = vshrl.u32 %v2181, 7
      %v2183 = vsub.s32 0, %v2182
      %v2184 = vrot.slane %v2180, %v2183
      %v2185 = vlaneseq
      %v2186 = vshrl.u32 %v2185, 7
      %v2187 = vsub.s32 1, %v2186
      %v2188 = vrot.slane %v2180, %v2187
      %v2189 = vlaneseq
      %v2190 = vshrl.u32 %v2189, 7
      %v2191 = vsub.s32 2, %v2190
      %v2192 = vrot.slane %v2180, %v2191
      %v2193 = vlaneseq
      %v2194 = vshrl.u32 %v2193, 7
      %v2195 = vsub.s32 3, %v2194
      %v2196 = vrot.slane %v2180, %v2195
      %vm2197 = vcmp.eq.s32.totalorder %v2184, 1
      %vm2198 = vcmp.eq.s32.totalorder %v2188, 1
      %vm2199 = vcmp.eq.s32.totalorder %v2192, 1
      %vm2200 = vcmp.eq.s32.totalorder %v2196, 1
      %2206 = vrot.lane.b32.xlu0 %v2173, 73
      %v2207 = vpop.permute.xlu0 %2206
      %2208 = vrot.lane.b32.xlu0 %v2174, 73
      %v2209 = vpop.permute.xlu0 %2208
      %2210 = vrot.lane.b32.xlu0 %v2175, 73
      %v2211 = vpop.permute.xlu0 %2210
      %2212 = vrot.lane.b32.xlu0 %v2176, 73
      %v2213 = vpop.permute.xlu0 %2212
      %2214 = vrot.lane.b32.xlu0 %v2177, 73
      %v2215 = vpop.permute.xlu0 %2214
      %v2216 = vsel %vm243, %v2207, %v2209
      %v2217 = vsel %vm243, %v2209, %v2211
      %v2218 = vsel %vm243, %v2211, %v2213
      %v2219 = vsel %vm243, %v2213, %v2215
      %v2224 = vsel %vm2197, %v2216, 0.0
      %v2225 = vsel %vm2198, %v2217, 0.0
      %v2226 = vsel %vm2199, %v2218, 0.0
      %v2227 = vsel %vm2200, %v2219, 0.0
      %2228 = vst [vmem:[#allocation5] sm:$0xff] %v2224
      %2229 = vst [vmem:[#allocation5 + $0x8] sm:$0xff] %v2225
      %2230 = vst [vmem:[#allocation5 + $0x10] sm:$0xff] %v2226
      %2231 = vst [vmem:[#allocation5 + $0x18] sm:$0xff] %v2227
      %v2232 = vld [vmem:[#allocation3] sm:$0xff]
      %v2233 = vld [vmem:[#allocation3 + $0x8] sm:$0xff]
      %v2234 = vld [vmem:[#allocation3 + $0x10] sm:$0xff]
      %v2235 = vld [vmem:[#allocation3 + $0x18] sm:$0xff]
      %v2236 = vld [vmem:[#allocation3 + $0x20] sm:$0xff]
      %v2237 = vld [vmem:[%s263] ss:$8 sm:$0xf]
      %vm2238 = vcmp.gt.f32.partialorder %v2237, 0.0
      %v2239 = vsel %vm2238, 1, 0
      %v2240 = vlaneseq
      %v2241 = vshrl.u32 %v2240, 7
      %v2242 = vsub.s32 0, %v2241
      %v2243 = vrot.slane %v2239, %v2242
      %v2244 = vlaneseq
      %v2245 = vshrl.u32 %v2244, 7
      %v2246 = vsub.s32 1, %v2245
      %v2247 = vrot.slane %v2239, %v2246
      %v2248 = vlaneseq
      %v2249 = vshrl.u32 %v2248, 7
      %v2250 = vsub.s32 2, %v2249
      %v2251 = vrot.slane %v2239, %v2250
      %v2252 = vlaneseq
      %v2253 = vshrl.u32 %v2252, 7
      %v2254 = vsub.s32 3, %v2253
      %v2255 = vrot.slane %v2239, %v2254
      %vm2256 = vcmp.eq.s32.totalorder %v2243, 1
      %vm2257 = vcmp.eq.s32.totalorder %v2247, 1
      %vm2258 = vcmp.eq.s32.totalorder %v2251, 1
      %vm2259 = vcmp.eq.s32.totalorder %v2255, 1
      %2265 = vrot.lane.b32.xlu0 %v2232, 72
      %v2266 = vpop.permute.xlu0 %2265
      %2267 = vrot.lane.b32.xlu0 %v2233, 72
      %v2268 = vpop.permute.xlu0 %2267
      %2269 = vrot.lane.b32.xlu0 %v2234, 72
      %v2270 = vpop.permute.xlu0 %2269
      %2271 = vrot.lane.b32.xlu0 %v2235, 72
      %v2272 = vpop.permute.xlu0 %2271
      %2273 = vrot.lane.b32.xlu0 %v2236, 72
      %v2274 = vpop.permute.xlu0 %2273
      %v2275 = vsel %vm302, %v2266, %v2268
      %v2276 = vsel %vm302, %v2268, %v2270
      %v2277 = vsel %vm302, %v2270, %v2272
      %v2278 = vsel %vm302, %v2272, %v2274
      %v2283 = vsel %vm2256, %v2275, 0.0
      %v2284 = vsel %vm2257, %v2276, 0.0
      %v2285 = vsel %vm2258, %v2277, 0.0
      %v2286 = vsel %vm2259, %v2278, 0.0
      %2287 = vst [vmem:[#allocation5 + $0x20] sm:$0xff] %v2283
      %2288 = vst [vmem:[#allocation5 + $0x28] sm:$0xff] %v2284
      %2289 = vst [vmem:[#allocation5 + $0x30] sm:$0xff] %v2285
      %2290 = vst [vmem:[#allocation5 + $0x38] sm:$0xff] %v2286
      %v2291 = vld [vmem:[#allocation3] sm:$0xff]
      %v2292 = vld [vmem:[#allocation3 + $0x8] sm:$0xff]
      %v2293 = vld [vmem:[#allocation3 + $0x10] sm:$0xff]
      %v2294 = vld [vmem:[#allocation3 + $0x18] sm:$0xff]
      %v2295 = vld [vmem:[#allocation3 + $0x20] sm:$0xff]
      %v2296 = vld [vmem:[%s334] ss:$8 sm:$0xf]
      %vm2297 = vcmp.gt.f32.partialorder %v2296, 0.0
      %v2298 = vsel %vm2297, 1, 0
      %v2299 = vlaneseq
      %v2300 = vshrl.u32 %v2299, 7
      %v2301 = vsub.s32 0, %v2300
      %v2302 = vrot.slane %v2298, %v2301
      %v2303 = vlaneseq
      %v2304 = vshrl.u32 %v2303, 7
      %v2305 = vsub.s32 1, %v2304
      %v2306 = vrot.slane %v2298, %v2305
      %v2307 = vlaneseq
      %v2308 = vshrl.u32 %v2307, 7
      %v2309 = vsub.s32 2, %v2308
      %v2310 = vrot.slane %v2298, %v2309
      %v2311 = vlaneseq
      %v2312 = vshrl.u32 %v2311, 7
      %v2313 = vsub.s32 3, %v2312
      %v2314 = vrot.slane %v2298, %v2313
      %vm2315 = vcmp.eq.s32.totalorder %v2302, 1
      %vm2316 = vcmp.eq.s32.totalorder %v2306, 1
      %vm2317 = vcmp.eq.s32.totalorder %v2310, 1
      %vm2318 = vcmp.eq.s32.totalorder %v2314, 1
      %2324 = vrot.lane.b32.xlu0 %v2291, 71
      %v2325 = vpop.permute.xlu0 %2324
      %2326 = vrot.lane.b32.xlu0 %v2292, 71
      %v2327 = vpop.permute.xlu0 %2326
      %2328 = vrot.lane.b32.xlu0 %v2293, 71
      %v2329 = vpop.permute.xlu0 %2328
      %2330 = vrot.lane.b32.xlu0 %v2294, 71
      %v2331 = vpop.permute.xlu0 %2330
      %2332 = vrot.lane.b32.xlu0 %v2295, 71
      %v2333 = vpop.permute.xlu0 %2332
      %v2334 = vsel %vm373, %v2325, %v2327
      %v2335 = vsel %vm373, %v2327, %v2329
      %v2336 = vsel %vm373, %v2329, %v2331
      %v2337 = vsel %vm373, %v2331, %v2333
      %v2342 = vsel %vm2315, %v2334, 0.0
      %v2343 = vsel %vm2316, %v2335, 0.0
      %v2344 = vsel %vm2317, %v2336, 0.0
      %v2345 = vsel %vm2318, %v2337, 0.0
      %2346 = vst [vmem:[#allocation5 + $0x40] sm:$0xff] %v2342
      %2347 = vst [vmem:[#allocation5 + $0x48] sm:$0xff] %v2343
      %2348 = vst [vmem:[#allocation5 + $0x50] sm:$0xff] %v2344
      %2349 = vst [vmem:[#allocation5 + $0x58] sm:$0xff] %v2345
      %v2350 = vld [vmem:[#allocation3] sm:$0xff]
      %v2351 = vld [vmem:[#allocation3 + $0x8] sm:$0xff]
      %v2352 = vld [vmem:[#allocation3 + $0x10] sm:$0xff]
      %v2353 = vld [vmem:[#allocation3 + $0x18] sm:$0xff]
      %v2354 = vld [vmem:[#allocation3 + $0x20] sm:$0xff]
      %v2355 = vld [vmem:[%s393] ss:$8 sm:$0xf]
      %vm2356 = vcmp.gt.f32.partialorder %v2355, 0.0
      %v2357 = vsel %vm2356, 1, 0
      %v2358 = vlaneseq
      %v2359 = vshrl.u32 %v2358, 7
      %v2360 = vsub.s32 0, %v2359
      %v2361 = vrot.slane %v2357, %v2360
      %v2362 = vlaneseq
      %v2363 = vshrl.u32 %v2362, 7
      %v2364 = vsub.s32 1, %v2363
      %v2365 = vrot.slane %v2357, %v2364
      %v2366 = vlaneseq
      %v2367 = vshrl.u32 %v2366, 7
      %v2368 = vsub.s32 2, %v2367
      %v2369 = vrot.slane %v2357, %v2368
      %v2370 = vlaneseq
      %v2371 = vshrl.u32 %v2370, 7
      %v2372 = vsub.s32 3, %v2371
      %v2373 = vrot.slane %v2357, %v2372
      %vm2374 = vcmp.eq.s32.totalorder %v2361, 1
      %vm2375 = vcmp.eq.s32.totalorder %v2365, 1
      %vm2376 = vcmp.eq.s32.totalorder %v2369, 1
      %vm2377 = vcmp.eq.s32.totalorder %v2373, 1
      %2383 = vrot.lane.b32.xlu0 %v2350, 65
      %v2384 = vpop.permute.xlu0 %2383
      %2385 = vrot.lane.b32.xlu0 %v2351, 65
      %v2386 = vpop.permute.xlu0 %2385
      %2387 = vrot.lane.b32.xlu0 %v2352, 65
      %v2388 = vpop.permute.xlu0 %2387
      %2389 = vrot.lane.b32.xlu0 %v2353, 65
      %v2390 = vpop.permute.xlu0 %2389
      %2391 = vrot.lane.b32.xlu0 %v2354, 65
      %v2392 = vpop.permute.xlu0 %2391
      %v2393 = vsel %vm432, %v2384, %v2386
      %v2394 = vsel %vm432, %v2386, %v2388
      %v2395 = vsel %vm432, %v2388, %v2390
      %v2396 = vsel %vm432, %v2390, %v2392
      %v2401 = vsel %vm2374, %v2393, 0.0
      %v2402 = vsel %vm2375, %v2394, 0.0
      %v2403 = vsel %vm2376, %v2395, 0.0
      %v2404 = vsel %vm2377, %v2396, 0.0
      %2405 = vst [vmem:[#allocation5 + $0x60] sm:$0xff] %v2401
      %2406 = vst [vmem:[#allocation5 + $0x68] sm:$0xff] %v2402
      %2407 = vst [vmem:[#allocation5 + $0x70] sm:$0xff] %v2403
      %2408 = vst [vmem:[#allocation5 + $0x78] sm:$0xff] %v2404
      %v2409 = vld [vmem:[#allocation3] sm:$0xff]
      %v2410 = vld [vmem:[#allocation3 + $0x8] sm:$0xff]
      %v2411 = vld [vmem:[#allocation3 + $0x10] sm:$0xff]
      %v2412 = vld [vmem:[#allocation3 + $0x18] sm:$0xff]
      %v2413 = vld [vmem:[#allocation3 + $0x20] sm:$0xff]
      %v2414 = vld [vmem:[%s464] ss:$8 sm:$0xf]
      %vm2415 = vcmp.gt.f32.partialorder %v2414, 0.0
      %v2416 = vsel %vm2415, 1, 0
      %v2417 = vlaneseq
      %v2418 = vshrl.u32 %v2417, 7
      %v2419 = vsub.s32 0, %v2418
      %v2420 = vrot.slane %v2416, %v2419
      %v2421 = vlaneseq
      %v2422 = vshrl.u32 %v2421, 7
      %v2423 = vsub.s32 1, %v2422
      %v2424 = vrot.slane %v2416, %v2423
      %v2425 = vlaneseq
      %v2426 = vshrl.u32 %v2425, 7
      %v2427 = vsub.s32 2, %v2426
      %v2428 = vrot.slane %v2416, %v2427
      %v2429 = vlaneseq
      %v2430 = vshrl.u32 %v2429, 7
      %v2431 = vsub.s32 3, %v2430
      %v2432 = vrot.slane %v2416, %v2431
      %vm2433 = vcmp.eq.s32.totalorder %v2420, 1
      %vm2434 = vcmp.eq.s32.totalorder %v2424, 1
      %vm2435 = vcmp.eq.s32.totalorder %v2428, 1
      %vm2436 = vcmp.eq.s32.totalorder %v2432, 1
      %2442 = vrot.lane.b32.xlu0 %v2409, 64
      %v2443 = vpop.permute.xlu0 %2442
      %2444 = vrot.lane.b32.xlu0 %v2410, 64
      %v2445 = vpop.permute.xlu0 %2444
      %2446 = vrot.lane.b32.xlu0 %v2411, 64
      %v2447 = vpop.permute.xlu0 %2446
      %2448 = vrot.lane.b32.xlu0 %v2412, 64
      %v2449 = vpop.permute.xlu0 %2448
      %2450 = vrot.lane.b32.xlu0 %v2413, 64
      %v2451 = vpop.permute.xlu0 %2450
      %v2452 = vsel %vm503, %v2443, %v2445
      %v2453 = vsel %vm503, %v2445, %v2447
      %v2454 = vsel %vm503, %v2447, %v2449
      %v2455 = vsel %vm503, %v2449, %v2451
      %v2460 = vsel %vm2433, %v2452, 0.0
      %v2461 = vsel %vm2434, %v2453, 0.0
      %v2462 = vsel %vm2435, %v2454, 0.0
      %v2463 = vsel %vm2436, %v2455, 0.0
      %2464 = vst [vmem:[#allocation5 + $0x80] sm:$0xff] %v2460
      %2465 = vst [vmem:[#allocation5 + $0x88] sm:$0xff] %v2461
      %2466 = vst [vmem:[#allocation5 + $0x90] sm:$0xff] %v2462
      %2467 = vst [vmem:[#allocation5 + $0x98] sm:$0xff] %v2463
      %v2468 = vld [vmem:[#allocation3] sm:$0xff]
      %v2469 = vld [vmem:[#allocation3 + $0x8] sm:$0xff]
      %v2470 = vld [vmem:[#allocation3 + $0x10] sm:$0xff]
      %v2471 = vld [vmem:[#allocation3 + $0x18] sm:$0xff]
      %v2472 = vld [vmem:[#allocation3 + $0x20] sm:$0xff]
      %v2473 = vld [vmem:[%s523] ss:$8 sm:$0xf]
      %vm2474 = vcmp.gt.f32.partialorder %v2473, 0.0
      %v2475 = vsel %vm2474, 1, 0
      %v2476 = vlaneseq
      %v2477 = vshrl.u32 %v2476, 7
      %v2478 = vsub.s32 0, %v2477
      %v2479 = vrot.slane %v2475, %v2478
      %v2480 = vlaneseq
      %v2481 = vshrl.u32 %v2480, 7
      %v2482 = vsub.s32 1, %v2481
      %v2483 = vrot.slane %v2475, %v2482
      %v2484 = vlaneseq
      %v2485 = vshrl.u32 %v2484, 7
      %v2486 = vsub.s32 2, %v2485
      %v2487 = vrot.slane %v2475, %v2486
      %v2488 = vlaneseq
      %v2489 = vshrl.u32 %v2488, 7
      %v2490 = vsub.s32 3, %v2489
      %v2491 = vrot.slane %v2475, %v2490
      %vm2492 = vcmp.eq.s32.totalorder %v2479, 1
      %vm2493 = vcmp.eq.s32.totalorder %v2483, 1
      %vm2494 = vcmp.eq.s32.totalorder %v2487, 1
      %vm2495 = vcmp.eq.s32.totalorder %v2491, 1
      %2501 = vrot.lane.b32.xlu0 %v2468, 63
      %v2502 = vpop.permute.xlu0 %2501
      %2503 = vrot.lane.b32.xlu0 %v2469, 63
      %v2504 = vpop.permute.xlu0 %2503
      %2505 = vrot.lane.b32.xlu0 %v2470, 63
      %v2506 = vpop.permute.xlu0 %2505
      %2507 = vrot.lane.b32.xlu0 %v2471, 63
      %v2508 = vpop.permute.xlu0 %2507
      %2509 = vrot.lane.b32.xlu0 %v2472, 63
      %v2510 = vpop.permute.xlu0 %2509
      %v2511 = vsel %vm562, %v2502, %v2504
      %v2512 = vsel %vm562, %v2504, %v2506
      %v2513 = vsel %vm562, %v2506, %v2508
      %v2514 = vsel %vm562, %v2508, %v2510
      %v2519 = vsel %vm2492, %v2511, 0.0
      %v2520 = vsel %vm2493, %v2512, 0.0
      %v2521 = vsel %vm2494, %v2513, 0.0
      %v2522 = vsel %vm2495, %v2514, 0.0
      %2523 = vst [vmem:[#allocation5 + $0xa0] sm:$0xff] %v2519
      %2524 = vst [vmem:[#allocation5 + $0xa8] sm:$0xff] %v2520
      %2525 = vst [vmem:[#allocation5 + $0xb0] sm:$0xff] %v2521
      %2526 = vst [vmem:[#allocation5 + $0xb8] sm:$0xff] %v2522
      %v2527 = vld [vmem:[#allocation3] sm:$0xff]
      %v2528 = vld [vmem:[#allocation3 + $0x8] sm:$0xff]
      %v2529 = vld [vmem:[#allocation3 + $0x10] sm:$0xff]
      %v2530 = vld [vmem:[#allocation3 + $0x18] sm:$0xff]
      %v2531 = vld [vmem:[#allocation3 + $0x20] sm:$0xff]
      %v2532 = vld [vmem:[%s594] ss:$8 sm:$0xf]
      %vm2533 = vcmp.gt.f32.partialorder %v2532, 0.0
      %v2534 = vsel %vm2533, 1, 0
      %v2535 = vlaneseq
      %v2536 = vshrl.u32 %v2535, 7
      %v2537 = vsub.s32 0, %v2536
      %v2538 = vrot.slane %v2534, %v2537
      %v2539 = vlaneseq
      %v2540 = vshrl.u32 %v2539, 7
      %v2541 = vsub.s32 1, %v2540
      %v2542 = vrot.slane %v2534, %v2541
      %v2543 = vlaneseq
      %v2544 = vshrl.u32 %v2543, 7
      %v2545 = vsub.s32 2, %v2544
      %v2546 = vrot.slane %v2534, %v2545
      %v2547 = vlaneseq
      %v2548 = vshrl.u32 %v2547, 7
      %v2549 = vsub.s32 3, %v2548
      %v2550 = vrot.slane %v2534, %v2549
      %vm2551 = vcmp.eq.s32.totalorder %v2538, 1
      %vm2552 = vcmp.eq.s32.totalorder %v2542, 1
      %vm2553 = vcmp.eq.s32.totalorder %v2546, 1
      %vm2554 = vcmp.eq.s32.totalorder %v2550, 1
      %2560 = vrot.lane.b32.xlu0 %v2527, 57
      %v2561 = vpop.permute.xlu0 %2560
      %2562 = vrot.lane.b32.xlu0 %v2528, 57
      %v2563 = vpop.permute.xlu0 %2562
      %2564 = vrot.lane.b32.xlu0 %v2529, 57
      %v2565 = vpop.permute.xlu0 %2564
      %2566 = vrot.lane.b32.xlu0 %v2530, 57
      %v2567 = vpop.permute.xlu0 %2566
      %2568 = vrot.lane.b32.xlu0 %v2531, 57
      %v2569 = vpop.permute.xlu0 %2568
      %v2570 = vsel %vm633, %v2561, %v2563
      %v2571 = vsel %vm633, %v2563, %v2565
      %v2572 = vsel %vm633, %v2565, %v2567
      %v2573 = vsel %vm633, %v2567, %v2569
      %v2578 = vsel %vm2551, %v2570, 0.0
      %v2579 = vsel %vm2552, %v2571, 0.0
      %v2580 = vsel %vm2553, %v2572, 0.0
      %v2581 = vsel %vm2554, %v2573, 0.0
      %2582 = vst [vmem:[#allocation5 + $0xc0] sm:$0xff] %v2578
      %2583 = vst [vmem:[#allocation5 + $0xc8] sm:$0xff] %v2579
      %2584 = vst [vmem:[#allocation5 + $0xd0] sm:$0xff] %v2580
      %2585 = vst [vmem:[#allocation5 + $0xd8] sm:$0xff] %v2581
      %v2586 = vld [vmem:[#allocation3] sm:$0xff]
      %v2587 = vld [vmem:[#allocation3 + $0x8] sm:$0xff]
      %v2588 = vld [vmem:[#allocation3 + $0x10] sm:$0xff]
      %v2589 = vld [vmem:[#allocation3 + $0x18] sm:$0xff]
      %v2590 = vld [vmem:[#allocation3 + $0x20] sm:$0xff]
      %v2591 = vld [vmem:[%s653] ss:$8 sm:$0xf]
      %vm2592 = vcmp.gt.f32.partialorder %v2591, 0.0
      %v2593 = vsel %vm2592, 1, 0
      %v2594 = vlaneseq
      %v2595 = vshrl.u32 %v2594, 7
      %v2596 = vsub.s32 0, %v2595
      %v2597 = vrot.slane %v2593, %v2596
      %v2598 = vlaneseq
      %v2599 = vshrl.u32 %v2598, 7
      %v2600 = vsub.s32 1, %v2599
      %v2601 = vrot.slane %v2593, %v2600
      %v2602 = vlaneseq
      %v2603 = vshrl.u32 %v2602, 7
      %v2604 = vsub.s32 2, %v2603
      %v2605 = vrot.slane %v2593, %v2604
      %v2606 = vlaneseq
      %v2607 = vshrl.u32 %v2606, 7
      %v2608 = vsub.s32 3, %v2607
      %v2609 = vrot.slane %v2593, %v2608
      %vm2610 = vcmp.eq.s32.totalorder %v2597, 1
      %vm2611 = vcmp.eq.s32.totalorder %v2601, 1
      %vm2612 = vcmp.eq.s32.totalorder %v2605, 1
      %vm2613 = vcmp.eq.s32.totalorder %v2609, 1
      %2619 = vrot.lane.b32.xlu0 %v2586, 56
      %v2620 = vpop.permute.xlu0 %2619
      %2621 = vrot.lane.b32.xlu0 %v2587, 56
      %v2622 = vpop.permute.xlu0 %2621
      %2623 = vrot.lane.b32.xlu0 %v2588, 56
      %v2624 = vpop.permute.xlu0 %2623
      %2625 = vrot.lane.b32.xlu0 %v2589, 56
      %v2626 = vpop.permute.xlu0 %2625
      %2627 = vrot.lane.b32.xlu0 %v2590, 56
      %v2628 = vpop.permute.xlu0 %2627
      %v2629 = vsel %vm692, %v2620, %v2622
      %v2630 = vsel %vm692, %v2622, %v2624
      %v2631 = vsel %vm692, %v2624, %v2626
      %v2632 = vsel %vm692, %v2626, %v2628
      %v2637 = vsel %vm2610, %v2629, 0.0
      %v2638 = vsel %vm2611, %v2630, 0.0
      %v2639 = vsel %vm2612, %v2631, 0.0
      %v2640 = vsel %vm2613, %v2632, 0.0
      %2641 = vst [vmem:[#allocation5 + $0xe0] sm:$0xff] %v2637
      %2642 = vst [vmem:[#allocation5 + $0xe8] sm:$0xff] %v2638
      %2643 = vst [vmem:[#allocation5 + $0xf0] sm:$0xff] %v2639
      %2644 = vst [vmem:[#allocation5 + $0xf8] sm:$0xff] %v2640
      %v2645 = vld [vmem:[#allocation3] sm:$0xff]
      %v2646 = vld [vmem:[#allocation3 + $0x8] sm:$0xff]
      %v2647 = vld [vmem:[#allocation3 + $0x10] sm:$0xff]
      %v2648 = vld [vmem:[#allocation3 + $0x18] sm:$0xff]
      %v2649 = vld [vmem:[#allocation3 + $0x20] sm:$0xff]
      %v2650 = vld [vmem:[%s724] ss:$8 sm:$0xf]
      %vm2651 = vcmp.gt.f32.partialorder %v2650, 0.0
      %v2652 = vsel %vm2651, 1, 0
      %v2653 = vlaneseq
      %v2654 = vshrl.u32 %v2653, 7
      %v2655 = vsub.s32 0, %v2654
      %v2656 = vrot.slane %v2652, %v2655
      %v2657 = vlaneseq
      %v2658 = vshrl.u32 %v2657, 7
      %v2659 = vsub.s32 1, %v2658
      %v2660 = vrot.slane %v2652, %v2659
      %v2661 = vlaneseq
      %v2662 = vshrl.u32 %v2661, 7
      %v2663 = vsub.s32 2, %v2662
      %v2664 = vrot.slane %v2652, %v2663
      %v2665 = vlaneseq
      %v2666 = vshrl.u32 %v2665, 7
      %v2667 = vsub.s32 3, %v2666
      %v2668 = vrot.slane %v2652, %v2667
      %vm2669 = vcmp.eq.s32.totalorder %v2656, 1
      %vm2670 = vcmp.eq.s32.totalorder %v2660, 1
      %vm2671 = vcmp.eq.s32.totalorder %v2664, 1
      %vm2672 = vcmp.eq.s32.totalorder %v2668, 1
      %2678 = vrot.lane.b32.xlu0 %v2645, 55
      %v2679 = vpop.permute.xlu0 %2678
      %2680 = vrot.lane.b32.xlu0 %v2646, 55
      %v2681 = vpop.permute.xlu0 %2680
      %2682 = vrot.lane.b32.xlu0 %v2647, 55
      %v2683 = vpop.permute.xlu0 %2682
      %2684 = vrot.lane.b32.xlu0 %v2648, 55
      %v2685 = vpop.permute.xlu0 %2684
      %2686 = vrot.lane.b32.xlu0 %v2649, 55
      %v2687 = vpop.permute.xlu0 %2686
      %v2688 = vsel %vm763, %v2679, %v2681
      %v2689 = vsel %vm763, %v2681, %v2683
      %v2690 = vsel %vm763, %v2683, %v2685
      %v2691 = vsel %vm763, %v2685, %v2687
      %v2696 = vsel %vm2669, %v2688, 0.0
      %v2697 = vsel %vm2670, %v2689, 0.0
      %v2698 = vsel %vm2671, %v2690, 0.0
      %v2699 = vsel %vm2672, %v2691, 0.0
      %2700 = vst [vmem:[#allocation5 + $0x100] sm:$0xff] %v2696
      %2701 = vst [vmem:[#allocation5 + $0x108] sm:$0xff] %v2697
      %2702 = vst [vmem:[#allocation5 + $0x110] sm:$0xff] %v2698
      %2703 = vst [vmem:[#allocation5 + $0x118] sm:$0xff] %v2699
      %v2704 = vld [vmem:[#allocation3] sm:$0xff]
      %v2705 = vld [vmem:[#allocation3 + $0x8] sm:$0xff]
      %v2706 = vld [vmem:[#allocation3 + $0x10] sm:$0xff]
      %v2707 = vld [vmem:[#allocation3 + $0x18] sm:$0xff]
      %v2708 = vld [vmem:[#allocation3 + $0x20] sm:$0xff]
      %v2709 = vld [vmem:[%s783] ss:$8 sm:$0xf]
      %vm2710 = vcmp.gt.f32.partialorder %v2709, 0.0
      %v2711 = vsel %vm2710, 1, 0
      %v2712 = vlaneseq
      %v2713 = vshrl.u32 %v2712, 7
      %v2714 = vsub.s32 0, %v2713
      %v2715 = vrot.slane %v2711, %v2714
      %v2716 = vlaneseq
      %v2717 = vshrl.u32 %v2716, 7
      %v2718 = vsub.s32 1, %v2717
      %v2719 = vrot.slane %v2711, %v2718
      %v2720 = vlaneseq
      %v2721 = vshrl.u32 %v2720, 7
      %v2722 = vsub.s32 2, %v2721
      %v2723 = vrot.slane %v2711, %v2722
      %v2724 = vlaneseq
      %v2725 = vshrl.u32 %v2724, 7
      %v2726 = vsub.s32 3, %v2725
      %v2727 = vrot.slane %v2711, %v2726
      %vm2728 = vcmp.eq.s32.totalorder %v2715, 1
      %vm2729 = vcmp.eq.s32.totalorder %v2719, 1
      %vm2730 = vcmp.eq.s32.totalorder %v2723, 1
      %vm2731 = vcmp.eq.s32.totalorder %v2727, 1
      %2737 = vrot.lane.b32.xlu0 %v2704, 9
      %v2738 = vpop.permute.xlu0 %2737
      %2739 = vrot.lane.b32.xlu0 %v2705, 9
      %v2740 = vpop.permute.xlu0 %2739
      %2741 = vrot.lane.b32.xlu0 %v2706, 9
      %v2742 = vpop.permute.xlu0 %2741
      %2743 = vrot.lane.b32.xlu0 %v2707, 9
      %v2744 = vpop.permute.xlu0 %2743
      %2745 = vrot.lane.b32.xlu0 %v2708, 9
      %v2746 = vpop.permute.xlu0 %2745
      %v2747 = vsel %vm822, %v2738, %v2740
      %v2748 = vsel %vm822, %v2740, %v2742
      %v2749 = vsel %vm822, %v2742, %v2744
      %v2750 = vsel %vm822, %v2744, %v2746
      %v2755 = vsel %vm2728, %v2747, 0.0
      %v2756 = vsel %vm2729, %v2748, 0.0
      %v2757 = vsel %vm2730, %v2749, 0.0
      %v2758 = vsel %vm2731, %v2750, 0.0
      %2759 = vst [vmem:[#allocation5 + $0x120] sm:$0xff] %v2755
      %2760 = vst [vmem:[#allocation5 + $0x128] sm:$0xff] %v2756
      %2761 = vst [vmem:[#allocation5 + $0x130] sm:$0xff] %v2757
      %2762 = vst [vmem:[#allocation5 + $0x138] sm:$0xff] %v2758
      %v2763 = vld [vmem:[#allocation3] sm:$0xff]
      %v2764 = vld [vmem:[#allocation3 + $0x8] sm:$0xff]
      %v2765 = vld [vmem:[#allocation3 + $0x10] sm:$0xff]
      %v2766 = vld [vmem:[#allocation3 + $0x18] sm:$0xff]
      %v2767 = vld [vmem:[#allocation3 + $0x20] sm:$0xff]
      %v2768 = vld [vmem:[%s854] ss:$8 sm:$0xf]
      %vm2769 = vcmp.gt.f32.partialorder %v2768, 0.0
      %v2770 = vsel %vm2769, 1, 0
      %v2771 = vlaneseq
      %v2772 = vshrl.u32 %v2771, 7
      %v2773 = vsub.s32 0, %v2772
      %v2774 = vrot.slane %v2770, %v2773
      %v2775 = vlaneseq
      %v2776 = vshrl.u32 %v2775, 7
      %v2777 = vsub.s32 1, %v2776
      %v2778 = vrot.slane %v2770, %v2777
      %v2779 = vlaneseq
      %v2780 = vshrl.u32 %v2779, 7
      %v2781 = vsub.s32 2, %v2780
      %v2782 = vrot.slane %v2770, %v2781
      %v2783 = vlaneseq
      %v2784 = vshrl.u32 %v2783, 7
      %v2785 = vsub.s32 3, %v2784
      %v2786 = vrot.slane %v2770, %v2785
      %vm2787 = vcmp.eq.s32.totalorder %v2774, 1
      %vm2788 = vcmp.eq.s32.totalorder %v2778, 1
      %vm2789 = vcmp.eq.s32.totalorder %v2782, 1
      %vm2790 = vcmp.eq.s32.totalorder %v2786, 1
      %2796 = vrot.lane.b32.xlu0 %v2763, 8
      %v2797 = vpop.permute.xlu0 %2796
      %2798 = vrot.lane.b32.xlu0 %v2764, 8
      %v2799 = vpop.permute.xlu0 %2798
      %2800 = vrot.lane.b32.xlu0 %v2765, 8
      %v2801 = vpop.permute.xlu0 %2800
      %2802 = vrot.lane.b32.xlu0 %v2766, 8
      %v2803 = vpop.permute.xlu0 %2802
      %2804 = vrot.lane.b32.xlu0 %v2767, 8
      %v2805 = vpop.permute.xlu0 %2804
      %v2806 = vsel %vm893, %v2797, %v2799
      %v2807 = vsel %vm893, %v2799, %v2801
      %v2808 = vsel %vm893, %v2801, %v2803
      %v2809 = vsel %vm893, %v2803, %v2805
      %v2814 = vsel %vm2787, %v2806, 0.0
      %v2815 = vsel %vm2788, %v2807, 0.0
      %v2816 = vsel %vm2789, %v2808, 0.0
      %v2817 = vsel %vm2790, %v2809, 0.0
      %2818 = vst [vmem:[#allocation5 + $0x140] sm:$0xff] %v2814
      %2819 = vst [vmem:[#allocation5 + $0x148] sm:$0xff] %v2815
      %2820 = vst [vmem:[#allocation5 + $0x150] sm:$0xff] %v2816
      %2821 = vst [vmem:[#allocation5 + $0x158] sm:$0xff] %v2817
      %v2822 = vld [vmem:[#allocation3] sm:$0xff]
      %v2823 = vld [vmem:[#allocation3 + $0x8] sm:$0xff]
      %v2824 = vld [vmem:[#allocation3 + $0x10] sm:$0xff]
      %v2825 = vld [vmem:[#allocation3 + $0x18] sm:$0xff]
      %v2826 = vld [vmem:[#allocation3 + $0x20] sm:$0xff]
      %v2827 = vld [vmem:[%s913] ss:$8 sm:$0xf]
      %vm2828 = vcmp.gt.f32.partialorder %v2827, 0.0
      %v2829 = vsel %vm2828, 1, 0
      %v2830 = vlaneseq
      %v2831 = vshrl.u32 %v2830, 7
      %v2832 = vsub.s32 0, %v2831
      %v2833 = vrot.slane %v2829, %v2832
      %v2834 = vlaneseq
      %v2835 = vshrl.u32 %v2834, 7
      %v2836 = vsub.s32 1, %v2835
      %v2837 = vrot.slane %v2829, %v2836
      %v2838 = vlaneseq
      %v2839 = vshrl.u32 %v2838, 7
      %v2840 = vsub.s32 2, %v2839
      %v2841 = vrot.slane %v2829, %v2840
      %v2842 = vlaneseq
      %v2843 = vshrl.u32 %v2842, 7
      %v2844 = vsub.s32 3, %v2843
      %v2845 = vrot.slane %v2829, %v2844
      %vm2846 = vcmp.eq.s32.totalorder %v2833, 1
      %vm2847 = vcmp.eq.s32.totalorder %v2837, 1
      %vm2848 = vcmp.eq.s32.totalorder %v2841, 1
      %vm2849 = vcmp.eq.s32.totalorder %v2845, 1
      %2855 = vrot.lane.b32.xlu0 %v2822, 7
      %v2856 = vpop.permute.xlu0 %2855
      %2857 = vrot.lane.b32.xlu0 %v2823, 7
      %v2858 = vpop.permute.xlu0 %2857
      %2859 = vrot.lane.b32.xlu0 %v2824, 7
      %v2860 = vpop.permute.xlu0 %2859
      %2861 = vrot.lane.b32.xlu0 %v2825, 7
      %v2862 = vpop.permute.xlu0 %2861
      %2863 = vrot.lane.b32.xlu0 %v2826, 7
      %v2864 = vpop.permute.xlu0 %2863
      %v2865 = vsel %vm952, %v2856, %v2858
      %v2866 = vsel %vm952, %v2858, %v2860
      %v2867 = vsel %vm952, %v2860, %v2862
      %v2868 = vsel %vm952, %v2862, %v2864
      %v2873 = vsel %vm2846, %v2865, 0.0
      %v2874 = vsel %vm2847, %v2866, 0.0
      %v2875 = vsel %vm2848, %v2867, 0.0
      %v2876 = vsel %vm2849, %v2868, 0.0
      %2877 = vst [vmem:[#allocation5 + $0x160] sm:$0xff] %v2873
      %2878 = vst [vmem:[#allocation5 + $0x168] sm:$0xff] %v2874
      %2879 = vst [vmem:[#allocation5 + $0x170] sm:$0xff] %v2875
      %2880 = vst [vmem:[#allocation5 + $0x178] sm:$0xff] %v2876
      %v2881 = vld [vmem:[#allocation3] sm:$0xff]
      %v2882 = vld [vmem:[#allocation3 + $0x8] sm:$0xff]
      %v2883 = vld [vmem:[#allocation3 + $0x10] sm:$0xff]
      %v2884 = vld [vmem:[#allocation3 + $0x18] sm:$0xff]
      %v2885 = vld [vmem:[#allocation3 + $0x20] sm:$0xff]
      %v2886 = vld [vmem:[%s984] ss:$8 sm:$0xf]
      %vm2887 = vcmp.gt.f32.partialorder %v2886, 0.0
      %v2888 = vsel %vm2887, 1, 0
      %v2889 = vlaneseq
      %v2890 = vshrl.u32 %v2889, 7
      %v2891 = vsub.s32 0, %v2890
      %v2892 = vrot.slane %v2888, %v2891
      %v2893 = vlaneseq
      %v2894 = vshrl.u32 %v2893, 7
      %v2895 = vsub.s32 1, %v2894
      %v2896 = vrot.slane %v2888, %v2895
      %v2897 = vlaneseq
      %v2898 = vshrl.u32 %v2897, 7
      %v2899 = vsub.s32 2, %v2898
      %v2900 = vrot.slane %v2888, %v2899
      %v2901 = vlaneseq
      %v2902 = vshrl.u32 %v2901, 7
      %v2903 = vsub.s32 3, %v2902
      %v2904 = vrot.slane %v2888, %v2903
      %vm2905 = vcmp.eq.s32.totalorder %v2892, 1
      %vm2906 = vcmp.eq.s32.totalorder %v2896, 1
      %vm2907 = vcmp.eq.s32.totalorder %v2900, 1
      %vm2908 = vcmp.eq.s32.totalorder %v2904, 1
      %2914 = vrot.lane.b32.xlu0 %v2881, 1
      %v2915 = vpop.permute.xlu0 %2914
      %2916 = vrot.lane.b32.xlu0 %v2882, 1
      %v2917 = vpop.permute.xlu0 %2916
      %2918 = vrot.lane.b32.xlu0 %v2883, 1
      %v2919 = vpop.permute.xlu0 %2918
      %2920 = vrot.lane.b32.xlu0 %v2884, 1
      %v2921 = vpop.permute.xlu0 %2920
      %2922 = vrot.lane.b32.xlu0 %v2885, 1
      %v2923 = vpop.permute.xlu0 %2922
      %v2924 = vsel %vm1023, %v2915, %v2917
      %v2925 = vsel %vm1023, %v2917, %v2919
      %v2926 = vsel %vm1023, %v2919, %v2921
      %v2927 = vsel %vm1023, %v2921, %v2923
      %v2932 = vsel %vm2905, %v2924, 0.0
      %v2933 = vsel %vm2906, %v2925, 0.0
      %v2934 = vsel %vm2907, %v2926, 0.0
      %v2935 = vsel %vm2908, %v2927, 0.0
      %2936 = vst [vmem:[#allocation5 + $0x180] sm:$0xff] %v2932
      %2937 = vst [vmem:[#allocation5 + $0x188] sm:$0xff] %v2933
      %2938 = vst [vmem:[#allocation5 + $0x190] sm:$0xff] %v2934
      %2939 = vst [vmem:[#allocation5 + $0x198] sm:$0xff] %v2935
      %v2940 = vld [vmem:[#allocation3 + $0x8] sm:$0xff]
      %v2941 = vld [vmem:[#allocation3 + $0x10] sm:$0xff]
      %v2942 = vld [vmem:[#allocation3 + $0x18] sm:$0xff]
      %v2943 = vld [vmem:[#allocation3 + $0x20] sm:$0xff]
      %v2944 = vld [vmem:[%s1042] ss:$8 sm:$0xf]
      %vm2945 = vcmp.gt.f32.partialorder %v2944, 0.0
      %v2946 = vsel %vm2945, 1, 0
      %v2947 = vlaneseq
      %v2948 = vshrl.u32 %v2947, 7
      %v2949 = vsub.s32 0, %v2948
      %v2950 = vrot.slane %v2946, %v2949
      %v2951 = vlaneseq
      %v2952 = vshrl.u32 %v2951, 7
      %v2953 = vsub.s32 1, %v2952
      %v2954 = vrot.slane %v2946, %v2953
      %v2955 = vlaneseq
      %v2956 = vshrl.u32 %v2955, 7
      %v2957 = vsub.s32 2, %v2956
      %v2958 = vrot.slane %v2946, %v2957
      %v2959 = vlaneseq
      %v2960 = vshrl.u32 %v2959, 7
      %v2961 = vsub.s32 3, %v2960
      %v2962 = vrot.slane %v2946, %v2961
      %vm2963 = vcmp.eq.s32.totalorder %v2950, 1
      %vm2964 = vcmp.eq.s32.totalorder %v2954, 1
      %vm2965 = vcmp.eq.s32.totalorder %v2958, 1
      %vm2966 = vcmp.eq.s32.totalorder %v2962, 1
      %v2967 = vsel %vm2963, %v2940, 0.0
      %v2968 = vsel %vm2964, %v2941, 0.0
      %v2969 = vsel %vm2965, %v2942, 0.0
      %v2970 = vsel %vm2966, %v2943, 0.0
      %2971 = vst [vmem:[#allocation5 + $0x1a0] sm:$0xff] %v2967
      %2972 = vst [vmem:[#allocation5 + $0x1a8] sm:$0xff] %v2968
      %2973 = vst [vmem:[#allocation5 + $0x1b0] sm:$0xff] %v2969
      %2974 = vst [vmem:[#allocation5 + $0x1b8] sm:$0xff] %v2970
      %v2975 = vld [vmem:[#allocation3 + $0x8] sm:$0xff]
      %v2976 = vld [vmem:[#allocation3 + $0x10] sm:$0xff]
      %v2977 = vld [vmem:[#allocation3 + $0x18] sm:$0xff]
      %v2978 = vld [vmem:[#allocation3 + $0x20] sm:$0xff]
      %v2979 = vld [vmem:[#allocation3 + $0x28] sm:$0xff]
      %v2980 = vld [vmem:[%s1095] ss:$8 sm:$0xf]
      %vm2981 = vcmp.gt.f32.partialorder %v2980, 0.0
      %v2982 = vsel %vm2981, 1, 0
      %v2983 = vlaneseq
      %v2984 = vshrl.u32 %v2983, 7
      %v2985 = vsub.s32 0, %v2984
      %v2986 = vrot.slane %v2982, %v2985
      %v2987 = vlaneseq
      %v2988 = vshrl.u32 %v2987, 7
      %v2989 = vsub.s32 1, %v2988
      %v2990 = vrot.slane %v2982, %v2989
      %v2991 = vlaneseq
      %v2992 = vshrl.u32 %v2991, 7
      %v2993 = vsub.s32 2, %v2992
      %v2994 = vrot.slane %v2982, %v2993
      %v2995 = vlaneseq
      %v2996 = vshrl.u32 %v2995, 7
      %v2997 = vsub.s32 3, %v2996
      %v2998 = vrot.slane %v2982, %v2997
      %vm2999 = vcmp.eq.s32.totalorder %v2986, 1
      %vm3000 = vcmp.eq.s32.totalorder %v2990, 1
      %vm3001 = vcmp.eq.s32.totalorder %v2994, 1
      %vm3002 = vcmp.eq.s32.totalorder %v2998, 1
      %3008 = vrot.lane.b32.xlu0 %v2975, 127
      %v3009 = vpop.permute.xlu0 %3008
      %3010 = vrot.lane.b32.xlu0 %v2976, 127
      %v3011 = vpop.permute.xlu0 %3010
      %3012 = vrot.lane.b32.xlu0 %v2977, 127
      %v3013 = vpop.permute.xlu0 %3012
      %3014 = vrot.lane.b32.xlu0 %v2978, 127
      %v3015 = vpop.permute.xlu0 %3014
      %3016 = vrot.lane.b32.xlu0 %v2979, 127
      %v3017 = vpop.permute.xlu0 %3016
      %v3018 = vsel %vm1134, %v3009, %v3011
      %v3019 = vsel %vm1134, %v3011, %v3013
      %v3020 = vsel %vm1134, %v3013, %v3015
      %v3021 = vsel %vm1134, %v3015, %v3017
      %v3026 = vsel %vm2999, %v3018, 0.0
      %v3027 = vsel %vm3000, %v3019, 0.0
      %v3028 = vsel %vm3001, %v3020, 0.0
      %v3029 = vsel %vm3002, %v3021, 0.0
      %3030 = vst [vmem:[#allocation5 + $0x1c0] sm:$0xff] %v3026
      %3031 = vst [vmem:[#allocation5 + $0x1c8] sm:$0xff] %v3027
      %3032 = vst [vmem:[#allocation5 + $0x1d0] sm:$0xff] %v3028
      %3033 = vst [vmem:[#allocation5 + $0x1d8] sm:$0xff] %v3029
      %v3034 = vld [vmem:[#allocation3 + $0x8] sm:$0xff]
      %v3035 = vld [vmem:[#allocation3 + $0x10] sm:$0xff]
      %v3036 = vld [vmem:[#allocation3 + $0x18] sm:$0xff]
      %v3037 = vld [vmem:[#allocation3 + $0x20] sm:$0xff]
      %v3038 = vld [vmem:[#allocation3 + $0x28] sm:$0xff]
      %v3039 = vld [vmem:[%s1154] ss:$8 sm:$0xf]
      %vm3040 = vcmp.gt.f32.partialorder %v3039, 0.0
      %v3041 = vsel %vm3040, 1, 0
      %v3042 = vlaneseq
      %v3043 = vshrl.u32 %v3042, 7
      %v3044 = vsub.s32 0, %v3043
      %v3045 = vrot.slane %v3041, %v3044
      %v3046 = vlaneseq
      %v3047 = vshrl.u32 %v3046, 7
      %v3048 = vsub.s32 1, %v3047
      %v3049 = vrot.slane %v3041, %v3048
      %v3050 = vlaneseq
      %v3051 = vshrl.u32 %v3050, 7
      %v3052 = vsub.s32 2, %v3051
      %v3053 = vrot.slane %v3041, %v3052
      %v3054 = vlaneseq
      %v3055 = vshrl.u32 %v3054, 7
      %v3056 = vsub.s32 3, %v3055
      %v3057 = vrot.slane %v3041, %v3056
      %vm3058 = vcmp.eq.s32.totalorder %v3045, 1
      %vm3059 = vcmp.eq.s32.totalorder %v3049, 1
      %vm3060 = vcmp.eq.s32.totalorder %v3053, 1
      %vm3061 = vcmp.eq.s32.totalorder %v3057, 1
      %3067 = vrot.lane.b32.xlu0 %v3034, 121
      %v3068 = vpop.permute.xlu0 %3067
      %3069 = vrot.lane.b32.xlu0 %v3035, 121
      %v3070 = vpop.permute.xlu0 %3069
      %3071 = vrot.lane.b32.xlu0 %v3036, 121
      %v3072 = vpop.permute.xlu0 %3071
      %3073 = vrot.lane.b32.xlu0 %v3037, 121
      %v3074 = vpop.permute.xlu0 %3073
      %3075 = vrot.lane.b32.xlu0 %v3038, 121
      %v3076 = vpop.permute.xlu0 %3075
      %v3077 = vsel %vm1193, %v3068, %v3070
      %v3078 = vsel %vm1193, %v3070, %v3072
      %v3079 = vsel %vm1193, %v3072, %v3074
      %v3080 = vsel %vm1193, %v3074, %v3076
      %v3085 = vsel %vm3058, %v3077, 0.0
      %v3086 = vsel %vm3059, %v3078, 0.0
      %v3087 = vsel %vm3060, %v3079, 0.0
      %v3088 = vsel %vm3061, %v3080, 0.0
      %3089 = vst [vmem:[#allocation5 + $0x1e0] sm:$0xff] %v3085
      %3090 = vst [vmem:[#allocation5 + $0x1e8] sm:$0xff] %v3086
      %3091 = vst [vmem:[#allocation5 + $0x1f0] sm:$0xff] %v3087
      %3092 = vst [vmem:[#allocation5 + $0x1f8] sm:$0xff] %v3088
      %v3093 = vld [vmem:[#allocation3 + $0x8] sm:$0xff]
      %v3094 = vld [vmem:[#allocation3 + $0x10] sm:$0xff]
      %v3095 = vld [vmem:[#allocation3 + $0x18] sm:$0xff]
      %v3096 = vld [vmem:[#allocation3 + $0x20] sm:$0xff]
      %v3097 = vld [vmem:[#allocation3 + $0x28] sm:$0xff]
      %v3098 = vld [vmem:[%s1225] ss:$8 sm:$0xf]
      %vm3099 = vcmp.gt.f32.partialorder %v3098, 0.0
      %v3100 = vsel %vm3099, 1, 0
      %v3101 = vlaneseq
      %v3102 = vshrl.u32 %v3101, 7
      %v3103 = vsub.s32 0, %v3102
      %v3104 = vrot.slane %v3100, %v3103
      %v3105 = vlaneseq
      %v3106 = vshrl.u32 %v3105, 7
      %v3107 = vsub.s32 1, %v3106
      %v3108 = vrot.slane %v3100, %v3107
      %v3109 = vlaneseq
      %v3110 = vshrl.u32 %v3109, 7
      %v3111 = vsub.s32 2, %v3110
      %v3112 = vrot.slane %v3100, %v3111
      %v3113 = vlaneseq
      %v3114 = vshrl.u32 %v3113, 7
      %v3115 = vsub.s32 3, %v3114
      %v3116 = vrot.slane %v3100, %v3115
      %vm3117 = vcmp.eq.s32.totalorder %v3104, 1
      %vm3118 = vcmp.eq.s32.totalorder %v3108, 1
      %vm3119 = vcmp.eq.s32.totalorder %v3112, 1
      %vm3120 = vcmp.eq.s32.totalorder %v3116, 1
      %3126 = vrot.lane.b32.xlu0 %v3093, 120
      %v3127 = vpop.permute.xlu0 %3126
      %3128 = vrot.lane.b32.xlu0 %v3094, 120
      %v3129 = vpop.permute.xlu0 %3128
      %3130 = vrot.lane.b32.xlu0 %v3095, 120
      %v3131 = vpop.permute.xlu0 %3130
      %3132 = vrot.lane.b32.xlu0 %v3096, 120
      %v3133 = vpop.permute.xlu0 %3132
      %3134 = vrot.lane.b32.xlu0 %v3097, 120
      %v3135 = vpop.permute.xlu0 %3134
      %v3136 = vsel %vm1264, %v3127, %v3129
      %v3137 = vsel %vm1264, %v3129, %v3131
      %v3138 = vsel %vm1264, %v3131, %v3133
      %v3139 = vsel %vm1264, %v3133, %v3135
      %v3144 = vsel %vm3117, %v3136, 0.0
      %v3145 = vsel %vm3118, %v3137, 0.0
      %v3146 = vsel %vm3119, %v3138, 0.0
      %v3147 = vsel %vm3120, %v3139, 0.0
      %3148 = vst [vmem:[#allocation5 + $0x200] sm:$0xff] %v3144
      %3149 = vst [vmem:[#allocation5 + $0x208] sm:$0xff] %v3145
      %3150 = vst [vmem:[#allocation5 + $0x210] sm:$0xff] %v3146
      %3151 = vst [vmem:[#allocation5 + $0x218] sm:$0xff] %v3147
      %v3152 = vld [vmem:[#allocation3 + $0x8] sm:$0xff]
      %v3153 = vld [vmem:[#allocation3 + $0x10] sm:$0xff]
      %v3154 = vld [vmem:[#allocation3 + $0x18] sm:$0xff]
      %v3155 = vld [vmem:[#allocation3 + $0x20] sm:$0xff]
      %v3156 = vld [vmem:[#allocation3 + $0x28] sm:$0xff]
      %v3157 = vld [vmem:[%s1284] ss:$8 sm:$0xf]
      %vm3158 = vcmp.gt.f32.partialorder %v3157, 0.0
      %v3159 = vsel %vm3158, 1, 0
      %v3160 = vlaneseq
      %v3161 = vshrl.u32 %v3160, 7
      %v3162 = vsub.s32 0, %v3161
      %v3163 = vrot.slane %v3159, %v3162
      %v3164 = vlaneseq
      %v3165 = vshrl.u32 %v3164, 7
      %v3166 = vsub.s32 1, %v3165
      %v3167 = vrot.slane %v3159, %v3166
      %v3168 = vlaneseq
      %v3169 = vshrl.u32 %v3168, 7
      %v3170 = vsub.s32 2, %v3169
      %v3171 = vrot.slane %v3159, %v3170
      %v3172 = vlaneseq
      %v3173 = vshrl.u32 %v3172, 7
      %v3174 = vsub.s32 3, %v3173
      %v3175 = vrot.slane %v3159, %v3174
      %vm3176 = vcmp.eq.s32.totalorder %v3163, 1
      %vm3177 = vcmp.eq.s32.totalorder %v3167, 1
      %vm3178 = vcmp.eq.s32.totalorder %v3171, 1
      %vm3179 = vcmp.eq.s32.totalorder %v3175, 1
      %3185 = vrot.lane.b32.xlu0 %v3152, 119
      %v3186 = vpop.permute.xlu0 %3185
      %3187 = vrot.lane.b32.xlu0 %v3153, 119
      %v3188 = vpop.permute.xlu0 %3187
      %3189 = vrot.lane.b32.xlu0 %v3154, 119
      %v3190 = vpop.permute.xlu0 %3189
      %3191 = vrot.lane.b32.xlu0 %v3155, 119
      %v3192 = vpop.permute.xlu0 %3191
      %3193 = vrot.lane.b32.xlu0 %v3156, 119
      %v3194 = vpop.permute.xlu0 %3193
      %v3195 = vsel %vm1323, %v3186, %v3188
      %v3196 = vsel %vm1323, %v3188, %v3190
      %v3197 = vsel %vm1323, %v3190, %v3192
      %v3198 = vsel %vm1323, %v3192, %v3194
      %v3203 = vsel %vm3176, %v3195, 0.0
      %v3204 = vsel %vm3177, %v3196, 0.0
      %v3205 = vsel %vm3178, %v3197, 0.0
      %v3206 = vsel %vm3179, %v3198, 0.0
      %3207 = vst [vmem:[#allocation5 + $0x220] sm:$0xff] %v3203
      %3208 = vst [vmem:[#allocation5 + $0x228] sm:$0xff] %v3204
      %3209 = vst [vmem:[#allocation5 + $0x230] sm:$0xff] %v3205
      %3210 = vst [vmem:[#allocation5 + $0x238] sm:$0xff] %v3206
      %v3211 = vld [vmem:[#allocation3 + $0x8] sm:$0xff]
      %v3212 = vld [vmem:[#allocation3 + $0x10] sm:$0xff]
      %v3213 = vld [vmem:[#allocation3 + $0x18] sm:$0xff]
      %v3214 = vld [vmem:[#allocation3 + $0x20] sm:$0xff]
      %v3215 = vld [vmem:[#allocation3 + $0x28] sm:$0xff]
      %v3216 = vld [vmem:[%s1355] ss:$8 sm:$0xf]
      %vm3217 = vcmp.gt.f32.partialorder %v3216, 0.0
      %v3218 = vsel %vm3217, 1, 0
      %v3219 = vlaneseq
      %v3220 = vshrl.u32 %v3219, 7
      %v3221 = vsub.s32 0, %v3220
      %v3222 = vrot.slane %v3218, %v3221
      %v3223 = vlaneseq
      %v3224 = vshrl.u32 %v3223, 7
      %v3225 = vsub.s32 1, %v3224
      %v3226 = vrot.slane %v3218, %v3225
      %v3227 = vlaneseq
      %v3228 = vshrl.u32 %v3227, 7
      %v3229 = vsub.s32 2, %v3228
      %v3230 = vrot.slane %v3218, %v3229
      %v3231 = vlaneseq
      %v3232 = vshrl.u32 %v3231, 7
      %v3233 = vsub.s32 3, %v3232
      %v3234 = vrot.slane %v3218, %v3233
      %vm3235 = vcmp.eq.s32.totalorder %v3222, 1
      %vm3236 = vcmp.eq.s32.totalorder %v3226, 1
      %vm3237 = vcmp.eq.s32.totalorder %v3230, 1
      %vm3238 = vcmp.eq.s32.totalorder %v3234, 1
      %3244 = vrot.lane.b32.xlu0 %v3211, 73
      %v3245 = vpop.permute.xlu0 %3244
      %3246 = vrot.lane.b32.xlu0 %v3212, 73
      %v3247 = vpop.permute.xlu0 %3246
      %3248 = vrot.lane.b32.xlu0 %v3213, 73
      %v3249 = vpop.permute.xlu0 %3248
      %3250 = vrot.lane.b32.xlu0 %v3214, 73
      %v3251 = vpop.permute.xlu0 %3250
      %3252 = vrot.lane.b32.xlu0 %v3215, 73
      %v3253 = vpop.permute.xlu0 %3252
      %v3254 = vsel %vm243, %v3245, %v3247
      %v3255 = vsel %vm243, %v3247, %v3249
      %v3256 = vsel %vm243, %v3249, %v3251
      %v3257 = vsel %vm243, %v3251, %v3253
      %v3262 = vsel %vm3235, %v3254, 0.0
      %v3263 = vsel %vm3236, %v3255, 0.0
      %v3264 = vsel %vm3237, %v3256, 0.0
      %v3265 = vsel %vm3238, %v3257, 0.0
      %3266 = vst [vmem:[#allocation5 + $0x240] sm:$0xff] %v3262
      %3267 = vst [vmem:[#allocation5 + $0x248] sm:$0xff] %v3263
      %3268 = vst [vmem:[#allocation5 + $0x250] sm:$0xff] %v3264
      %3269 = vst [vmem:[#allocation5 + $0x258] sm:$0xff] %v3265
      %v3270 = vld [vmem:[#allocation3 + $0x8] sm:$0xff]
      %v3271 = vld [vmem:[#allocation3 + $0x10] sm:$0xff]
      %v3272 = vld [vmem:[#allocation3 + $0x18] sm:$0xff]
      %v3273 = vld [vmem:[#allocation3 + $0x20] sm:$0xff]
      %v3274 = vld [vmem:[#allocation3 + $0x28] sm:$0xff]
      %v3275 = vld [vmem:[%s1413] ss:$8 sm:$0xf]
      %vm3276 = vcmp.gt.f32.partialorder %v3275, 0.0
      %v3277 = vsel %vm3276, 1, 0
      %v3278 = vlaneseq
      %v3279 = vshrl.u32 %v3278, 7
      %v3280 = vsub.s32 0, %v3279
      %v3281 = vrot.slane %v3277, %v3280
      %v3282 = vlaneseq
      %v3283 = vshrl.u32 %v3282, 7
      %v3284 = vsub.s32 1, %v3283
      %v3285 = vrot.slane %v3277, %v3284
      %v3286 = vlaneseq
      %v3287 = vshrl.u32 %v3286, 7
      %v3288 = vsub.s32 2, %v3287
      %v3289 = vrot.slane %v3277, %v3288
      %v3290 = vlaneseq
      %v3291 = vshrl.u32 %v3290, 7
      %v3292 = vsub.s32 3, %v3291
      %v3293 = vrot.slane %v3277, %v3292
      %vm3294 = vcmp.eq.s32.totalorder %v3281, 1
      %vm3295 = vcmp.eq.s32.totalorder %v3285, 1
      %vm3296 = vcmp.eq.s32.totalorder %v3289, 1
      %vm3297 = vcmp.eq.s32.totalorder %v3293, 1
      %3303 = vrot.lane.b32.xlu0 %v3270, 72
      %v3304 = vpop.permute.xlu0 %3303
      %3305 = vrot.lane.b32.xlu0 %v3271, 72
      %v3306 = vpop.permute.xlu0 %3305
      %3307 = vrot.lane.b32.xlu0 %v3272, 72
      %v3308 = vpop.permute.xlu0 %3307
      %3309 = vrot.lane.b32.xlu0 %v3273, 72
      %v3310 = vpop.permute.xlu0 %3309
      %3311 = vrot.lane.b32.xlu0 %v3274, 72
      %v3312 = vpop.permute.xlu0 %3311
      %v3313 = vsel %vm302, %v3304, %v3306
      %v3314 = vsel %vm302, %v3306, %v3308
      %v3315 = vsel %vm302, %v3308, %v3310
      %v3316 = vsel %vm302, %v3310, %v3312
      %v3321 = vsel %vm3294, %v3313, 0.0
      %v3322 = vsel %vm3295, %v3314, 0.0
      %v3323 = vsel %vm3296, %v3315, 0.0
      %v3324 = vsel %vm3297, %v3316, 0.0
      %3325 = vst [vmem:[#allocation5 + $0x260] sm:$0xff] %v3321
      %3326 = vst [vmem:[#allocation5 + $0x268] sm:$0xff] %v3322
      %3327 = vst [vmem:[#allocation5 + $0x270] sm:$0xff] %v3323
      %3328 = vst [vmem:[#allocation5 + $0x278] sm:$0xff] %v3324
      %v3329 = vld [vmem:[#allocation3 + $0x8] sm:$0xff]
      %v3330 = vld [vmem:[#allocation3 + $0x10] sm:$0xff]
      %v3331 = vld [vmem:[#allocation3 + $0x18] sm:$0xff]
      %v3332 = vld [vmem:[#allocation3 + $0x20] sm:$0xff]
      %v3333 = vld [vmem:[#allocation3 + $0x28] sm:$0xff]
      %v3334 = vld [vmem:[%s1483] ss:$8 sm:$0xf]
      %vm3335 = vcmp.gt.f32.partialorder %v3334, 0.0
      %v3336 = vsel %vm3335, 1, 0
      %v3337 = vlaneseq
      %v3338 = vshrl.u32 %v3337, 7
      %v3339 = vsub.s32 0, %v3338
      %v3340 = vrot.slane %v3336, %v3339
      %v3341 = vlaneseq
      %v3342 = vshrl.u32 %v3341, 7
      %v3343 = vsub.s32 1, %v3342
      %v3344 = vrot.slane %v3336, %v3343
      %v3345 = vlaneseq
      %v3346 = vshrl.u32 %v3345, 7
      %v3347 = vsub.s32 2, %v3346
      %v3348 = vrot.slane %v3336, %v3347
      %v3349 = vlaneseq
      %v3350 = vshrl.u32 %v3349, 7
      %v3351 = vsub.s32 3, %v3350
      %v3352 = vrot.slane %v3336, %v3351
      %vm3353 = vcmp.eq.s32.totalorder %v3340, 1
      %vm3354 = vcmp.eq.s32.totalorder %v3344, 1
      %vm3355 = vcmp.eq.s32.totalorder %v3348, 1
      %vm3356 = vcmp.eq.s32.totalorder %v3352, 1
      %3362 = vrot.lane.b32.xlu0 %v3329, 71
      %v3363 = vpop.permute.xlu0 %3362
      %3364 = vrot.lane.b32.xlu0 %v3330, 71
      %v3365 = vpop.permute.xlu0 %3364
      %3366 = vrot.lane.b32.xlu0 %v3331, 71
      %v3367 = vpop.permute.xlu0 %3366
      %3368 = vrot.lane.b32.xlu0 %v3332, 71
      %v3369 = vpop.permute.xlu0 %3368
      %3370 = vrot.lane.b32.xlu0 %v3333, 71
      %v3371 = vpop.permute.xlu0 %3370
      %v3372 = vsel %vm373, %v3363, %v3365
      %v3373 = vsel %vm373, %v3365, %v3367
      %v3374 = vsel %vm373, %v3367, %v3369
      %v3375 = vsel %vm373, %v3369, %v3371
      %v3380 = vsel %vm3353, %v3372, 0.0
      %v3381 = vsel %vm3354, %v3373, 0.0
      %v3382 = vsel %vm3355, %v3374, 0.0
      %v3383 = vsel %vm3356, %v3375, 0.0
      %3384 = vst [vmem:[#allocation5 + $0x280] sm:$0xff] %v3380
      %3385 = vst [vmem:[#allocation5 + $0x288] sm:$0xff] %v3381
      %3386 = vst [vmem:[#allocation5 + $0x290] sm:$0xff] %v3382
      %3387 = vst [vmem:[#allocation5 + $0x298] sm:$0xff] %v3383
      %v3388 = vld [vmem:[#allocation3 + $0x8] sm:$0xff]
      %v3389 = vld [vmem:[#allocation3 + $0x10] sm:$0xff]
      %v3390 = vld [vmem:[#allocation3 + $0x18] sm:$0xff]
      %v3391 = vld [vmem:[#allocation3 + $0x20] sm:$0xff]
      %v3392 = vld [vmem:[#allocation3 + $0x28] sm:$0xff]
      %v3393 = vld [vmem:[%s1541] ss:$8 sm:$0xf]
      %vm3394 = vcmp.gt.f32.partialorder %v3393, 0.0
      %v3395 = vsel %vm3394, 1, 0
      %v3396 = vlaneseq
      %v3397 = vshrl.u32 %v3396, 7
      %v3398 = vsub.s32 0, %v3397
      %v3399 = vrot.slane %v3395, %v3398
      %v3400 = vlaneseq
      %v3401 = vshrl.u32 %v3400, 7
      %v3402 = vsub.s32 1, %v3401
      %v3403 = vrot.slane %v3395, %v3402
      %v3404 = vlaneseq
      %v3405 = vshrl.u32 %v3404, 7
      %v3406 = vsub.s32 2, %v3405
      %v3407 = vrot.slane %v3395, %v3406
      %v3408 = vlaneseq
      %v3409 = vshrl.u32 %v3408, 7
      %v3410 = vsub.s32 3, %v3409
      %v3411 = vrot.slane %v3395, %v3410
      %vm3412 = vcmp.eq.s32.totalorder %v3399, 1
      %vm3413 = vcmp.eq.s32.totalorder %v3403, 1
      %vm3414 = vcmp.eq.s32.totalorder %v3407, 1
      %vm3415 = vcmp.eq.s32.totalorder %v3411, 1
      %3421 = vrot.lane.b32.xlu0 %v3388, 65
      %v3422 = vpop.permute.xlu0 %3421
      %3423 = vrot.lane.b32.xlu0 %v3389, 65
      %v3424 = vpop.permute.xlu0 %3423
      %3425 = vrot.lane.b32.xlu0 %v3390, 65
      %v3426 = vpop.permute.xlu0 %3425
      %3427 = vrot.lane.b32.xlu0 %v3391, 65
      %v3428 = vpop.permute.xlu0 %3427
      %3429 = vrot.lane.b32.xlu0 %v3392, 65
      %v3430 = vpop.permute.xlu0 %3429
      %v3431 = vsel %vm432, %v3422, %v3424
      %v3432 = vsel %vm432, %v3424, %v3426
      %v3433 = vsel %vm432, %v3426, %v3428
      %v3434 = vsel %vm432, %v3428, %v3430
      %v3439 = vsel %vm3412, %v3431, 0.0
      %v3440 = vsel %vm3413, %v3432, 0.0
      %v3441 = vsel %vm3414, %v3433, 0.0
      %v3442 = vsel %vm3415, %v3434, 0.0
      %3443 = vst [vmem:[#allocation5 + $0x2a0] sm:$0xff] %v3439
      %3444 = vst [vmem:[#allocation5 + $0x2a8] sm:$0xff] %v3440
      %3445 = vst [vmem:[#allocation5 + $0x2b0] sm:$0xff] %v3441
      %3446 = vst [vmem:[#allocation5 + $0x2b8] sm:$0xff] %v3442
      %v3447 = vld [vmem:[#allocation3 + $0x8] sm:$0xff]
      %v3448 = vld [vmem:[#allocation3 + $0x10] sm:$0xff]
      %v3449 = vld [vmem:[#allocation3 + $0x18] sm:$0xff]
      %v3450 = vld [vmem:[#allocation3 + $0x20] sm:$0xff]
      %v3451 = vld [vmem:[#allocation3 + $0x28] sm:$0xff]
      %v3452 = vld [vmem:[%s1611] ss:$8 sm:$0xf]
      %vm3453 = vcmp.gt.f32.partialorder %v3452, 0.0
      %v3454 = vsel %vm3453, 1, 0
      %v3455 = vlaneseq
      %v3456 = vshrl.u32 %v3455, 7
      %v3457 = vsub.s32 0, %v3456
      %v3458 = vrot.slane %v3454, %v3457
      %v3459 = vlaneseq
      %v3460 = vshrl.u32 %v3459, 7
      %v3461 = vsub.s32 1, %v3460
      %v3462 = vrot.slane %v3454, %v3461
      %v3463 = vlaneseq
      %v3464 = vshrl.u32 %v3463, 7
      %v3465 = vsub.s32 2, %v3464
      %v3466 = vrot.slane %v3454, %v3465
      %v3467 = vlaneseq
      %v3468 = vshrl.u32 %v3467, 7
      %v3469 = vsub.s32 3, %v3468
      %v3470 = vrot.slane %v3454, %v3469
      %vm3471 = vcmp.eq.s32.totalorder %v3458, 1
      %vm3472 = vcmp.eq.s32.totalorder %v3462, 1
      %vm3473 = vcmp.eq.s32.totalorder %v3466, 1
      %vm3474 = vcmp.eq.s32.totalorder %v3470, 1
      %3480 = vrot.lane.b32.xlu0 %v3447, 64
      %v3481 = vpop.permute.xlu0 %3480
      %3482 = vrot.lane.b32.xlu0 %v3448, 64
      %v3483 = vpop.permute.xlu0 %3482
      %3484 = vrot.lane.b32.xlu0 %v3449, 64
      %v3485 = vpop.permute.xlu0 %3484
      %3486 = vrot.lane.b32.xlu0 %v3450, 64
      %v3487 = vpop.permute.xlu0 %3486
      %3488 = vrot.lane.b32.xlu0 %v3451, 64
      %v3489 = vpop.permute.xlu0 %3488
      %v3490 = vsel %vm503, %v3481, %v3483
      %v3491 = vsel %vm503, %v3483, %v3485
      %v3492 = vsel %vm503, %v3485, %v3487
      %v3493 = vsel %vm503, %v3487, %v3489
      %v3498 = vsel %vm3471, %v3490, 0.0
      %v3499 = vsel %vm3472, %v3491, 0.0
      %v3500 = vsel %vm3473, %v3492, 0.0
      %v3501 = vsel %vm3474, %v3493, 0.0
      %3502 = vst [vmem:[#allocation5 + $0x2c0] sm:$0xff] %v3498
      %3503 = vst [vmem:[#allocation5 + $0x2c8] sm:$0xff] %v3499
      %3504 = vst [vmem:[#allocation5 + $0x2d0] sm:$0xff] %v3500
      %3505 = vst [vmem:[#allocation5 + $0x2d8] sm:$0xff] %v3501
      %v3506 = vld [vmem:[#allocation3 + $0x8] sm:$0xff]
      %v3507 = vld [vmem:[#allocation3 + $0x10] sm:$0xff]
      %v3508 = vld [vmem:[#allocation3 + $0x18] sm:$0xff]
      %v3509 = vld [vmem:[#allocation3 + $0x20] sm:$0xff]
      %v3510 = vld [vmem:[#allocation3 + $0x28] sm:$0xff]
      %v3511 = vld [vmem:[%s1669] ss:$8 sm:$0xf]
      %vm3512 = vcmp.gt.f32.partialorder %v3511, 0.0
      %v3513 = vsel %vm3512, 1, 0
      %v3514 = vlaneseq
      %v3515 = vshrl.u32 %v3514, 7
      %v3516 = vsub.s32 0, %v3515
      %v3517 = vrot.slane %v3513, %v3516
      %v3518 = vlaneseq
      %v3519 = vshrl.u32 %v3518, 7
      %v3520 = vsub.s32 1, %v3519
      %v3521 = vrot.slane %v3513, %v3520
      %v3522 = vlaneseq
      %v3523 = vshrl.u32 %v3522, 7
      %v3524 = vsub.s32 2, %v3523
      %v3525 = vrot.slane %v3513, %v3524
      %v3526 = vlaneseq
      %v3527 = vshrl.u32 %v3526, 7
      %v3528 = vsub.s32 3, %v3527
      %v3529 = vrot.slane %v3513, %v3528
      %vm3530 = vcmp.eq.s32.totalorder %v3517, 1
      %vm3531 = vcmp.eq.s32.totalorder %v3521, 1
      %vm3532 = vcmp.eq.s32.totalorder %v3525, 1
      %vm3533 = vcmp.eq.s32.totalorder %v3529, 1
      %3539 = vrot.lane.b32.xlu0 %v3506, 63
      %v3540 = vpop.permute.xlu0 %3539
      %3541 = vrot.lane.b32.xlu0 %v3507, 63
      %v3542 = vpop.permute.xlu0 %3541
      %3543 = vrot.lane.b32.xlu0 %v3508, 63
      %v3544 = vpop.permute.xlu0 %3543
      %3545 = vrot.lane.b32.xlu0 %v3509, 63
      %v3546 = vpop.permute.xlu0 %3545
      %3547 = vrot.lane.b32.xlu0 %v3510, 63
      %v3548 = vpop.permute.xlu0 %3547
      %v3549 = vsel %vm562, %v3540, %v3542
      %v3550 = vsel %vm562, %v3542, %v3544
      %v3551 = vsel %vm562, %v3544, %v3546
      %v3552 = vsel %vm562, %v3546, %v3548
      %v3557 = vsel %vm3530, %v3549, 0.0
      %v3558 = vsel %vm3531, %v3550, 0.0
      %v3559 = vsel %vm3532, %v3551, 0.0
      %v3560 = vsel %vm3533, %v3552, 0.0
      %3561 = vst [vmem:[#allocation5 + $0x2e0] sm:$0xff] %v3557
      %3562 = vst [vmem:[#allocation5 + $0x2e8] sm:$0xff] %v3558
      %3563 = vst [vmem:[#allocation5 + $0x2f0] sm:$0xff] %v3559
      %3564 = vst [vmem:[#allocation5 + $0x2f8] sm:$0xff] %v3560
      %v3565 = vld [vmem:[#allocation3 + $0x8] sm:$0xff]
      %v3566 = vld [vmem:[#allocation3 + $0x10] sm:$0xff]
      %v3567 = vld [vmem:[#allocation3 + $0x18] sm:$0xff]
      %v3568 = vld [vmem:[#allocation3 + $0x20] sm:$0xff]
      %v3569 = vld [vmem:[#allocation3 + $0x28] sm:$0xff]
      %v3570 = vld [vmem:[%s1739] ss:$8 sm:$0xf]
      %vm3571 = vcmp.gt.f32.partialorder %v3570, 0.0
      %v3572 = vsel %vm3571, 1, 0
      %v3573 = vlaneseq
      %v3574 = vshrl.u32 %v3573, 7
      %v3575 = vsub.s32 0, %v3574
      %v3576 = vrot.slane %v3572, %v3575
      %v3577 = vlaneseq
      %v3578 = vshrl.u32 %v3577, 7
      %v3579 = vsub.s32 1, %v3578
      %v3580 = vrot.slane %v3572, %v3579
      %v3581 = vlaneseq
      %v3582 = vshrl.u32 %v3581, 7
      %v3583 = vsub.s32 2, %v3582
      %v3584 = vrot.slane %v3572, %v3583
      %v3585 = vlaneseq
      %v3586 = vshrl.u32 %v3585, 7
      %v3587 = vsub.s32 3, %v3586
      %v3588 = vrot.slane %v3572, %v3587
      %vm3589 = vcmp.eq.s32.totalorder %v3576, 1
      %vm3590 = vcmp.eq.s32.totalorder %v3580, 1
      %vm3591 = vcmp.eq.s32.totalorder %v3584, 1
      %vm3592 = vcmp.eq.s32.totalorder %v3588, 1
      %3598 = vrot.lane.b32.xlu0 %v3565, 57
      %v3599 = vpop.permute.xlu0 %3598
      %3600 = vrot.lane.b32.xlu0 %v3566, 57
      %v3601 = vpop.permute.xlu0 %3600
      %3602 = vrot.lane.b32.xlu0 %v3567, 57
      %v3603 = vpop.permute.xlu0 %3602
      %3604 = vrot.lane.b32.xlu0 %v3568, 57
      %v3605 = vpop.permute.xlu0 %3604
      %3606 = vrot.lane.b32.xlu0 %v3569, 57
      %v3607 = vpop.permute.xlu0 %3606
      %v3608 = vsel %vm633, %v3599, %v3601
      %v3609 = vsel %vm633, %v3601, %v3603
      %v3610 = vsel %vm633, %v3603, %v3605
      %v3611 = vsel %vm633, %v3605, %v3607
      %v3616 = vsel %vm3589, %v3608, 0.0
      %v3617 = vsel %vm3590, %v3609, 0.0
      %v3618 = vsel %vm3591, %v3610, 0.0
      %v3619 = vsel %vm3592, %v3611, 0.0
      %3620 = vst [vmem:[#allocation5 + $0x300] sm:$0xff] %v3616
      %3621 = vst [vmem:[#allocation5 + $0x308] sm:$0xff] %v3617
      %3622 = vst [vmem:[#allocation5 + $0x310] sm:$0xff] %v3618
      %3623 = vst [vmem:[#allocation5 + $0x318] sm:$0xff] %v3619
      %v3624 = vld [vmem:[#allocation3 + $0x8] sm:$0xff]
      %v3625 = vld [vmem:[#allocation3 + $0x10] sm:$0xff]
      %v3626 = vld [vmem:[#allocation3 + $0x18] sm:$0xff]
      %v3627 = vld [vmem:[#allocation3 + $0x20] sm:$0xff]
      %v3628 = vld [vmem:[#allocation3 + $0x28] sm:$0xff]
      %v3629 = vld [vmem:[%s1797] ss:$8 sm:$0xf]
      %vm3630 = vcmp.gt.f32.partialorder %v3629, 0.0
      %v3631 = vsel %vm3630, 1, 0
      %v3632 = vlaneseq
      %v3633 = vshrl.u32 %v3632, 7
      %v3634 = vsub.s32 0, %v3633
      %v3635 = vrot.slane %v3631, %v3634
      %v3636 = vlaneseq
      %v3637 = vshrl.u32 %v3636, 7
      %v3638 = vsub.s32 1, %v3637
      %v3639 = vrot.slane %v3631, %v3638
      %v3640 = vlaneseq
      %v3641 = vshrl.u32 %v3640, 7
      %v3642 = vsub.s32 2, %v3641
      %v3643 = vrot.slane %v3631, %v3642
      %v3644 = vlaneseq
      %v3645 = vshrl.u32 %v3644, 7
      %v3646 = vsub.s32 3, %v3645
      %v3647 = vrot.slane %v3631, %v3646
      %vm3648 = vcmp.eq.s32.totalorder %v3635, 1
      %vm3649 = vcmp.eq.s32.totalorder %v3639, 1
      %vm3650 = vcmp.eq.s32.totalorder %v3643, 1
      %vm3651 = vcmp.eq.s32.totalorder %v3647, 1
      %3657 = vrot.lane.b32.xlu0 %v3624, 56
      %v3658 = vpop.permute.xlu0 %3657
      %3659 = vrot.lane.b32.xlu0 %v3625, 56
      %v3660 = vpop.permute.xlu0 %3659
      %3661 = vrot.lane.b32.xlu0 %v3626, 56
      %v3662 = vpop.permute.xlu0 %3661
      %3663 = vrot.lane.b32.xlu0 %v3627, 56
      %v3664 = vpop.permute.xlu0 %3663
      %3665 = vrot.lane.b32.xlu0 %v3628, 56
      %v3666 = vpop.permute.xlu0 %3665
      %v3667 = vsel %vm692, %v3658, %v3660
      %v3668 = vsel %vm692, %v3660, %v3662
      %v3669 = vsel %vm692, %v3662, %v3664
      %v3670 = vsel %vm692, %v3664, %v3666
      %v3675 = vsel %vm3648, %v3667, 0.0
      %v3676 = vsel %vm3649, %v3668, 0.0
      %v3677 = vsel %vm3650, %v3669, 0.0
      %v3678 = vsel %vm3651, %v3670, 0.0
      %3679 = vst [vmem:[#allocation5 + $0x320] sm:$0xff] %v3675
      %3680 = vst [vmem:[#allocation5 + $0x328] sm:$0xff] %v3676
      %3681 = vst [vmem:[#allocation5 + $0x330] sm:$0xff] %v3677
      %3682 = vst [vmem:[#allocation5 + $0x338] sm:$0xff] %v3678
      %v3683 = vld [vmem:[#allocation3 + $0x8] sm:$0xff]
      %v3684 = vld [vmem:[#allocation3 + $0x10] sm:$0xff]
      %v3685 = vld [vmem:[#allocation3 + $0x18] sm:$0xff]
      %v3686 = vld [vmem:[#allocation3 + $0x20] sm:$0xff]
      %v3687 = vld [vmem:[#allocation3 + $0x28] sm:$0xff]
      %v3688 = vld [vmem:[%s1867] ss:$8 sm:$0xf]
      %vm3689 = vcmp.gt.f32.partialorder %v3688, 0.0
      %v3690 = vsel %vm3689, 1, 0
      %v3691 = vlaneseq
      %v3692 = vshrl.u32 %v3691, 7
      %v3693 = vsub.s32 0, %v3692
      %v3694 = vrot.slane %v3690, %v3693
      %v3695 = vlaneseq
      %v3696 = vshrl.u32 %v3695, 7
      %v3697 = vsub.s32 1, %v3696
      %v3698 = vrot.slane %v3690, %v3697
      %v3699 = vlaneseq
      %v3700 = vshrl.u32 %v3699, 7
      %v3701 = vsub.s32 2, %v3700
      %v3702 = vrot.slane %v3690, %v3701
      %v3703 = vlaneseq
      %v3704 = vshrl.u32 %v3703, 7
      %v3705 = vsub.s32 3, %v3704
      %v3706 = vrot.slane %v3690, %v3705
      %vm3707 = vcmp.eq.s32.totalorder %v3694, 1
      %vm3708 = vcmp.eq.s32.totalorder %v3698, 1
      %vm3709 = vcmp.eq.s32.totalorder %v3702, 1
      %vm3710 = vcmp.eq.s32.totalorder %v3706, 1
      %3716 = vrot.lane.b32.xlu0 %v3683, 55
      %v3717 = vpop.permute.xlu0 %3716
      %3718 = vrot.lane.b32.xlu0 %v3684, 55
      %v3719 = vpop.permute.xlu0 %3718
      %3720 = vrot.lane.b32.xlu0 %v3685, 55
      %v3721 = vpop.permute.xlu0 %3720
      %3722 = vrot.lane.b32.xlu0 %v3686, 55
      %v3723 = vpop.permute.xlu0 %3722
      %3724 = vrot.lane.b32.xlu0 %v3687, 55
      %v3725 = vpop.permute.xlu0 %3724
      %v3726 = vsel %vm763, %v3717, %v3719
      %v3727 = vsel %vm763, %v3719, %v3721
      %v3728 = vsel %vm763, %v3721, %v3723
      %v3729 = vsel %vm763, %v3723, %v3725
      %v3734 = vsel %vm3707, %v3726, 0.0
      %v3735 = vsel %vm3708, %v3727, 0.0
      %v3736 = vsel %vm3709, %v3728, 0.0
      %v3737 = vsel %vm3710, %v3729, 0.0
      %3738 = vst [vmem:[#allocation5 + $0x340] sm:$0xff] %v3734
      %3739 = vst [vmem:[#allocation5 + $0x348] sm:$0xff] %v3735
      %3740 = vst [vmem:[#allocation5 + $0x350] sm:$0xff] %v3736
      %3741 = vst [vmem:[#allocation5 + $0x358] sm:$0xff] %v3737
      %v3742 = vld [vmem:[%s2] sm:$0xff]
      %v3743 = vld [vmem:[#allocation5] sm:$0xff]
      %v3744 = vld [vmem:[#allocation5 + $0x8] sm:$0xff]
      %v3745 = vld [vmem:[#allocation5 + $0x10] sm:$0xff]
      %v3746 = vld [vmem:[#allocation5 + $0x18] sm:$0xff]
      %v3747 = vld [vmem:[#allocation5 + $0x20] sm:$0xff]
      %v3748 = vld [vmem:[#allocation5 + $0x28] sm:$0xff]
      %v3749 = vld [vmem:[#allocation5 + $0x30] sm:$0xff]
      %v3750 = vld [vmem:[#allocation5 + $0x38] sm:$0xff]
      %v3751 = vld [vmem:[#allocation5 + $0x40] sm:$0xff]
      %v3752 = vld [vmem:[#allocation5 + $0x48] sm:$0xff]
      %v3753 = vld [vmem:[#allocation5 + $0x50] sm:$0xff]
      %v3754 = vld [vmem:[#allocation5 + $0x58] sm:$0xff]
      %v3755 = vld [vmem:[#allocation5 + $0x60] sm:$0xff]
      %v3756 = vld [vmem:[#allocation5 + $0x68] sm:$0xff]
      %v3757 = vld [vmem:[#allocation5 + $0x70] sm:$0xff]
      %v3758 = vld [vmem:[#allocation5 + $0x78] sm:$0xff]
      %v3759 = vld [vmem:[#allocation5 + $0x80] sm:$0xff]
      %v3760 = vld [vmem:[#allocation5 + $0x88] sm:$0xff]
      %v3761 = vld [vmem:[#allocation5 + $0x90] sm:$0xff]
      %v3762 = vld [vmem:[#allocation5 + $0x98] sm:$0xff]
      %v3763 = vld [vmem:[#allocation5 + $0xa0] sm:$0xff]
      %v3764 = vld [vmem:[#allocation5 + $0xa8] sm:$0xff]
      %v3765 = vld [vmem:[#allocation5 + $0xb0] sm:$0xff]
      %v3766 = vld [vmem:[#allocation5 + $0xb8] sm:$0xff]
      %v3767 = vld [vmem:[#allocation5 + $0xc0] sm:$0xff]
      %v3768 = vld [vmem:[#allocation5 + $0xc8] sm:$0xff]
      %v3769 = vld [vmem:[#allocation5 + $0xd0] sm:$0xff]
      %v3770 = vld [vmem:[#allocation5 + $0xd8] sm:$0xff]
      %v3771 = vld [vmem:[#allocation5 + $0xe0] sm:$0xff]
      %v3772 = vld [vmem:[#allocation5 + $0xe8] sm:$0xff]
      %v3773 = vld [vmem:[#allocation5 + $0xf0] sm:$0xff]
      %v3774 = vld [vmem:[#allocation5 + $0xf8] sm:$0xff]
      %v3775 = vld [vmem:[#allocation5 + $0x100] sm:$0xff]
      %v3776 = vld [vmem:[#allocation5 + $0x108] sm:$0xff]
      %v3777 = vld [vmem:[#allocation5 + $0x110] sm:$0xff]
      %v3778 = vld [vmem:[#allocation5 + $0x118] sm:$0xff]
      %v3779 = vld [vmem:[#allocation5 + $0x120] sm:$0xff]
      %v3780 = vld [vmem:[#allocation5 + $0x128] sm:$0xff]
      %v3781 = vld [vmem:[#allocation5 + $0x130] sm:$0xff]
      %v3782 = vld [vmem:[#allocation5 + $0x138] sm:$0xff]
      %v3783 = vld [vmem:[#allocation5 + $0x140] sm:$0xff]
      %v3784 = vld [vmem:[#allocation5 + $0x148] sm:$0xff]
      %v3785 = vld [vmem:[#allocation5 + $0x150] sm:$0xff]
      %v3786 = vld [vmem:[#allocation5 + $0x158] sm:$0xff]
      %v3787 = vld [vmem:[#allocation5 + $0x160] sm:$0xff]
      %v3788 = vld [vmem:[#allocation5 + $0x168] sm:$0xff]
      %v3789 = vld [vmem:[#allocation5 + $0x170] sm:$0xff]
      %v3790 = vld [vmem:[#allocation5 + $0x178] sm:$0xff]
      %v3791 = vld [vmem:[#allocation5 + $0x180] sm:$0xff]
      %v3792 = vld [vmem:[#allocation5 + $0x188] sm:$0xff]
      %v3793 = vld [vmem:[#allocation5 + $0x190] sm:$0xff]
      %v3794 = vld [vmem:[#allocation5 + $0x198] sm:$0xff]
      %v3795 = vld [vmem:[#allocation5 + $0x1a0] sm:$0xff]
      %v3796 = vld [vmem:[#allocation5 + $0x1a8] sm:$0xff]
      %v3797 = vld [vmem:[#allocation5 + $0x1b0] sm:$0xff]
      %v3798 = vld [vmem:[#allocation5 + $0x1b8] sm:$0xff]
      %v3799 = vld [vmem:[#allocation5 + $0x1c0] sm:$0xff]
      %v3800 = vld [vmem:[#allocation5 + $0x1c8] sm:$0xff]
      %v3801 = vld [vmem:[#allocation5 + $0x1d0] sm:$0xff]
      %v3802 = vld [vmem:[#allocation5 + $0x1d8] sm:$0xff]
      %v3803 = vld [vmem:[#allocation5 + $0x1e0] sm:$0xff]
      %v3804 = vld [vmem:[#allocation5 + $0x1e8] sm:$0xff]
      %v3805 = vld [vmem:[#allocation5 + $0x1f0] sm:$0xff]
      %v3806 = vld [vmem:[#allocation5 + $0x1f8] sm:$0xff]
      %v3807 = vld [vmem:[#allocation5 + $0x200] sm:$0xff]
      %v3808 = vld [vmem:[#allocation5 + $0x208] sm:$0xff]
      %v3809 = vld [vmem:[#allocation5 + $0x210] sm:$0xff]
      %v3810 = vld [vmem:[#allocation5 + $0x218] sm:$0xff]
      %v3811 = vld [vmem:[#allocation5 + $0x220] sm:$0xff]
      %v3812 = vld [vmem:[#allocation5 + $0x228] sm:$0xff]
      %v3813 = vld [vmem:[#allocation5 + $0x230] sm:$0xff]
      %v3814 = vld [vmem:[#allocation5 + $0x238] sm:$0xff]
      %v3815 = vld [vmem:[#allocation5 + $0x240] sm:$0xff]
      %v3816 = vld [vmem:[#allocation5 + $0x248] sm:$0xff]
      %v3817 = vld [vmem:[#allocation5 + $0x250] sm:$0xff]
      %v3818 = vld [vmem:[#allocation5 + $0x258] sm:$0xff]
      %v3819 = vld [vmem:[#allocation5 + $0x260] sm:$0xff]
      %v3820 = vld [vmem:[#allocation5 + $0x268] sm:$0xff]
      %v3821 = vld [vmem:[#allocation5 + $0x270] sm:$0xff]
      %v3822 = vld [vmem:[#allocation5 + $0x278] sm:$0xff]
      %v3823 = vld [vmem:[#allocation5 + $0x280] sm:$0xff]
      %v3824 = vld [vmem:[#allocation5 + $0x288] sm:$0xff]
      %v3825 = vld [vmem:[#allocation5 + $0x290] sm:$0xff]
      %v3826 = vld [vmem:[#allocation5 + $0x298] sm:$0xff]
      %v3827 = vld [vmem:[#allocation5 + $0x2a0] sm:$0xff]
      %v3828 = vld [vmem:[#allocation5 + $0x2a8] sm:$0xff]
      %v3829 = vld [vmem:[#allocation5 + $0x2b0] sm:$0xff]
      %v3830 = vld [vmem:[#allocation5 + $0x2b8] sm:$0xff]
      %v3831 = vld [vmem:[#allocation5 + $0x2c0] sm:$0xff]
      %v3832 = vld [vmem:[#allocation5 + $0x2c8] sm:$0xff]
      %v3833 = vld [vmem:[#allocation5 + $0x2d0] sm:$0xff]
      %v3834 = vld [vmem:[#allocation5 + $0x2d8] sm:$0xff]
      %v3835 = vld [vmem:[#allocation5 + $0x2e0] sm:$0xff]
      %v3836 = vld [vmem:[#allocation5 + $0x2e8] sm:$0xff]
      %v3837 = vld [vmem:[#allocation5 + $0x2f0] sm:$0xff]
      %v3838 = vld [vmem:[#allocation5 + $0x2f8] sm:$0xff]
      %v3839 = vld [vmem:[#allocation5 + $0x300] sm:$0xff]
      %v3840 = vld [vmem:[#allocation5 + $0x308] sm:$0xff]
      %v3841 = vld [vmem:[#allocation5 + $0x310] sm:$0xff]
      %v3842 = vld [vmem:[#allocation5 + $0x318] sm:$0xff]
      %v3843 = vld [vmem:[#allocation5 + $0x320] sm:$0xff]
      %v3844 = vld [vmem:[#allocation5 + $0x328] sm:$0xff]
      %v3845 = vld [vmem:[#allocation5 + $0x330] sm:$0xff]
      %v3846 = vld [vmem:[#allocation5 + $0x338] sm:$0xff]
      %v3847 = vld [vmem:[#allocation5 + $0x340] sm:$0xff]
      %v3848 = vld [vmem:[#allocation5 + $0x348] sm:$0xff]
      %v3849 = vld [vmem:[#allocation5 + $0x350] sm:$0xff]
      %v3850 = vld [vmem:[#allocation5 + $0x358] sm:$0xff]
      %v3852 = vcombine.high %v3742, %v3742
      %vm3853 = vcmask 719872
      %v3854 = vsel %vm3853, %v3852, 0
      %3856 = vmatprep.subr.mxu0 %v3744
      %3857 = vmatpush1.msra.mxu0 %v3743
      %3858 = vmatprep.subr.mxu0 %v3748
      %3859 = vmatpush1.msra.mxu0 %v3747
      %3860 = vmatprep.subr.mxu0 %v3752
      %3861 = vmatpush1.msra.mxu0 %v3751
      %3862 = vmatprep.subr.mxu0 %v3756
      %3863 = vmatpush1.msra.mxu0 %v3755
      %3864 = vmatprep.subr.mxu0 %v3760
      %3865 = vmatpush1.msra.mxu0 %v3759
      %3866 = vmatprep.subr.mxu0 %v3764
      %3867 = vmatpush1.msra.mxu0 %v3763
      %3868 = vmatprep.subr.mxu0 %v3768
      %3869 = vmatpush1.msra.mxu0 %v3767
      %3870 = vmatprep.subr.mxu0 %v3772
      %3871 = vmatpush1.msra.mxu0 %v3771
      %3872 = vmatprep.subr.mxu0 %v3776
      %3873 = vmatpush1.msra.mxu0 %v3775
      %3874 = vmatprep.subr.mxu0 %v3780
      %3875 = vmatpush1.msra.mxu0 %v3779
      %3876 = vmatprep.subr.mxu0 %v3784
      %3877 = vmatpush1.msra.mxu0 %v3783
      %3878 = vmatprep.subr.mxu0 %v3788
      %3879 = vmatpush1.msra.mxu0 %v3787
      %3880 = vmatprep.subr.mxu0 %v3792
      %3881 = vmatpush1.msra.mxu0 %v3791
      %3882 = vmatprep.subr.mxu0 %v3796
      %3883 = vmatpush1.msra.mxu0 %v3795
      %3884 = vmatprep.subr.mxu0 %v3800
      %3885 = vmatpush1.msra.mxu0 %v3799
      %3886 = vmatprep.subr.mxu0 %v3804
      %3887 = vmatpush1.msra.mxu0 %v3803
      %3888 = vmatprep.subr.mxu0 %v3808
      %3889 = vmatpush1.msra.mxu0 %v3807
      %3890 = vmatprep.subr.mxu0 %v3812
      %3891 = vmatpush1.msra.mxu0 %v3811
      %3892 = vmatprep.subr.mxu0 %v3816
      %3893 = vmatpush1.msra.mxu0 %v3815
      %3894 = vmatprep.subr.mxu0 %v3820
      %3895 = vmatpush1.msra.mxu0 %v3819
      %3896 = vmatprep.subr.mxu0 %v3824
      %3897 = vmatpush1.msra.mxu0 %v3823
      %3898 = vmatprep.subr.mxu0 %v3828
      %3899 = vmatpush1.msra.mxu0 %v3827
      %3900 = vmatprep.subr.mxu0 %v3832
      %3901 = vmatpush1.msra.mxu0 %v3831
      %3902 = vmatprep.subr.mxu0 %v3836
      %3903 = vmatpush1.msra.mxu0 %v3835
      %3904 = vmatprep.subr.mxu0 %v3840
      %3905 = vmatpush1.msra.mxu0 %v3839
      %3906 = vmatprep.subr.mxu0 %v3844
      %3907 = vmatpush1.msra.mxu0 %v3843
      %3908 = vmatprep.subr.mxu0 %v3848
      %3909 = vmatpush1.msra.mxu0 %v3847
      %3910 = vmatprep.subr.mxu0 0.0
      %3911 = vmatpush1.msra.mxu0 0.0
      %3912 = vmatprep.subr.mxu0 0.0
      %3913 = vmatpush1.msra.mxu0 0.0
      %3914 = vmatprep.subr.mxu0 0.0
      %3915 = vmatpush1.msra.mxu0 0.0
      %3916 = vmatprep.subr.mxu0 0.0
      %3917 = vmatpush1.msra.mxu0 0.0
      %3918 = vmatprep.subr.mxu0 0.0
      %3919 = vmatpush1.msra.mxu0 0.0
      %3920 = vmatprep.mubr.f32.mxu0 %v3854
      %3921 = vmatmul.mubr.f32.gmra.mrb[0].mxu0 %v3742
      %v3922 = vpop.f32.mrb[0].mxu0
      %v3923 = vadd.f32 0.0, %v3922
      %v3924 = vpop.f32.mrb[0].mxu0
      %v3925 = vadd.f32 0.0, %v3924
      %3926 = vdwg.mxu0
      %3927 = vmatprep.subr.mxu0 %v3746
      %3928 = vmatpush1.msra.mxu0 %v3745
      %3929 = vmatprep.subr.mxu0 %v3750
      %3930 = vmatpush1.msra.mxu0 %v3749
      %3931 = vmatprep.subr.mxu0 %v3754
      %3932 = vmatpush1.msra.mxu0 %v3753
      %3933 = vmatprep.subr.mxu0 %v3758
      %3934 = vmatpush1.msra.mxu0 %v3757
      %3935 = vmatprep.subr.mxu0 %v3762
      %3936 = vmatpush1.msra.mxu0 %v3761
      %3937 = vmatprep.subr.mxu0 %v3766
      %3938 = vmatpush1.msra.mxu0 %v3765
      %3939 = vmatprep.subr.mxu0 %v3770
      %3940 = vmatpush1.msra.mxu0 %v3769
      %3941 = vmatprep.subr.mxu0 %v3774
      %3942 = vmatpush1.msra.mxu0 %v3773
      %3943 = vmatprep.subr.mxu0 %v3778
      %3944 = vmatpush1.msra.mxu0 %v3777
      %3945 = vmatprep.subr.mxu0 %v3782
      %3946 = vmatpush1.msra.mxu0 %v3781
      %3947 = vmatprep.subr.mxu0 %v3786
      %3948 = vmatpush1.msra.mxu0 %v3785
      %3949 = vmatprep.subr.mxu0 %v3790
      %3950 = vmatpush1.msra.mxu0 %v3789
      %3951 = vmatprep.subr.mxu0 %v3794
      %3952 = vmatpush1.msra.mxu0 %v3793
      %3953 = vmatprep.subr.mxu0 %v3798
      %3954 = vmatpush1.msra.mxu0 %v3797
      %3955 = vmatprep.subr.mxu0 %v3802
      %3956 = vmatpush1.msra.mxu0 %v3801
      %3957 = vmatprep.subr.mxu0 %v3806
      %3958 = vmatpush1.msra.mxu0 %v3805
      %3959 = vmatprep.subr.mxu0 %v3810
      %3960 = vmatpush1.msra.mxu0 %v3809
      %3961 = vmatprep.subr.mxu0 %v3814
      %3962 = vmatpush1.msra.mxu0 %v3813
      %3963 = vmatprep.subr.mxu0 %v3818
      %3964 = vmatpush1.msra.mxu0 %v3817
      %3965 = vmatprep.subr.mxu0 %v3822
      %3966 = vmatpush1.msra.mxu0 %v3821
      %3967 = vmatprep.subr.mxu0 %v3826
      %3968 = vmatpush1.msra.mxu0 %v3825
      %3969 = vmatprep.subr.mxu0 %v3830
      %3970 = vmatpush1.msra.mxu0 %v3829
      %3971 = vmatprep.subr.mxu0 %v3834
      %3972 = vmatpush1.msra.mxu0 %v3833
      %3973 = vmatprep.subr.mxu0 %v3838
      %3974 = vmatpush1.msra.mxu0 %v3837
      %3975 = vmatprep.subr.mxu0 %v3842
      %3976 = vmatpush1.msra.mxu0 %v3841
      %3977 = vmatprep.subr.mxu0 %v3846
      %3978 = vmatpush1.msra.mxu0 %v3845
      %3979 = vmatprep.subr.mxu0 %v3850
      %3980 = vmatpush1.msra.mxu0 %v3849
      %3981 = vmatprep.subr.mxu0 0.0
      %3982 = vmatpush1.msra.mxu0 0.0
      %3983 = vmatprep.subr.mxu0 0.0
      %3984 = vmatpush1.msra.mxu0 0.0
      %3985 = vmatprep.subr.mxu0 0.0
      %3986 = vmatpush1.msra.mxu0 0.0
      %3987 = vmatprep.subr.mxu0 0.0
      %3988 = vmatpush1.msra.mxu0 0.0
      %3989 = vmatprep.subr.mxu0 0.0
      %3990 = vmatpush1.msra.mxu0 0.0
      %3991 = vmatprep.mubr.f32.mxu0 %v3854
      %3992 = vmatmul.mubr.f32.gmra.mrb[0].mxu0 %v3742
      %v3993 = vpop.f32.mrb[0].mxu0
      %v3994 = vadd.f32 0.0, %v3993
      %v3995 = vpop.f32.mrb[0].mxu0
      %v3996 = vadd.f32 0.0, %v3995
      %3997 = vdwg.mxu0
      %vm3998 = vcmask 1043456
      %v3999 = vsel %vm3998, %v3923, 0.0
      %v4000 = vsel %vm3998, %v3925, 0.0
      %v4001 = vadd.f32 %v3999, %v4000
      %v4002 = vsel %vm3998, %v3994, 0.0
      %v4003 = vadd.f32 %v4001, %v4002
      %v4004 = vsel %vm3998, %v3996, 0.0
      %v4005 = vadd.f32 %v4003, %v4004
      %4006 = vadd.xlane.f32.xlu0 %v4005
      %v4007 = vpop.xlane.xlu0 %4006
      %v4008 = vmul.f32 %v4007, 0.001953125
      %v4009 = vmul.f32 %v3923, %v3923
      %v4010 = vmul.f32 %v3925, %v3925
      %v4011 = vmul.f32 %v3994, %v3994
      %v4012 = vmul.f32 %v3996, %v3996
      %v4013 = vsel %vm3998, %v4009, 0.0
      %v4014 = vsel %vm3998, %v4010, 0.0
      %v4015 = vadd.f32 %v4013, %v4014
      %v4016 = vsel %vm3998, %v4011, 0.0
      %v4017 = vadd.f32 %v4015, %v4016
      %v4018 = vsel %vm3998, %v4012, 0.0
      %v4019 = vadd.f32 %v4017, %v4018
      %4020 = vadd.xlane.f32.xlu0 %v4019
      %v4021 = vpop.xlane.xlu0 %4020
      %v4022 = vmul.f32 %v4021, 0.001953125
      %v4023 = vmul.f32 %v4008, %v4008
      %v4024 = vsub.f32 %v4022, %v4023
      %v4025 = vsub.f32 %v3923, %v4008
      %v4026 = vsub.f32 %v3925, %v4008
      %v4027 = vsub.f32 %v3994, %v4008
      %v4028 = vsub.f32 %v3996, %v4008
      %v4029 = vadd.f32 %v4024, 1e-05
      %v4030 = vrsqrt.pop %v4029
      %v4031 = vmul.f32 %v4025, %v4030
      %v4032 = vmul.f32 %v4026, %v4030
      %v4033 = vmul.f32 %v4027, %v4030
      %v4034 = vmul.f32 %v4028, %v4030
      %vm4035 = vcmp.ge.f32.partialorder %v4031, 0.0
      %vm4036 = vcmp.ge.f32.partialorder %v4032, 0.0
      %vm4037 = vcmp.ge.f32.partialorder %v4033, 0.0
      %vm4038 = vcmp.ge.f32.partialorder %v4034, 0.0
      %v4039 = vmul.f32 %v4031, 0.01
      %v4040 = vmul.f32 %v4032, 0.01
      %v4041 = vmul.f32 %v4033, 0.01
      %v4042 = vmul.f32 %v4034, 0.01
      %v4043 = vsel %vm4035, %v4031, %v4039
      %v4044 = vsel %vm4036, %v4032, %v4040
      %v4045 = vsel %vm4037, %v4033, %v4041
      %v4046 = vsel %vm4038, %v4034, %v4042
      %v4051 = vcombine.low %v4043, %v4044
      %v4052 = vcombine.low %v4045, %v4046
      %4055 = vst [vmem:[%s197] sm:$0xff] %v4051
      %4056 = vst [vmem:[%s197 + $0x8] sm:$0xff] %v4052
      %p4057 = scmp.lt.s32.totalorder %s15, 1
      %s4058 = scalar_select %p4057, %s15, 1
      %s4059 = smul.addr %s4058, 4
      %s4060 = smul.addr %s4059, 4
      %s4061 = scalar_lea.vmem %s4, %s4060
      // Predicated region
      $region37: #{bottleneck_forward.1} parent=35 // pred_check
        %p4062 = pneg %p122
      $region38: #{bottleneck_forward.1} parent=35 // pred_check_branch
        %4064 = sbr.rel (%p4062) target = $region40
      $region39: #{bottleneck_forward.1} parent=35 // pred_region
        _
      $region40: #{bottleneck_forward.1} parent=35 // pred_fallthru
        _
    $region36: #{bottleneck_forward.1} parent=5 // pred_fallthru
      _
    %p4065 = scmp.le.s32.totalorder 2, %s10
    // Predicated region
    $region41: #{bottleneck_forward.1} parent=5 // pred_check
      %p4066 = pneg %p4065
    $region42: #{bottleneck_forward.1} parent=5 // pred_check_branch
      %4068 = sbr.rel (%p4066) target = $region44
    $region43: #{bottleneck_forward.1} parent=5 // pred_region
      %s4069 = ssub.s32 %s10, 2
      // Predicated region
      $region45: #{bottleneck_forward.1} parent=43 // pred_check
        %p4070 = pneg %p128
      $region46: #{bottleneck_forward.1} parent=43 // pred_check_branch
        %4072 = sbr.rel (%p4070) target = $region48
      $region47: #{bottleneck_forward.1} parent=43 // pred_region
        %p4073 = scmp.lt.s32.totalorder %s16, 1
        %s4074 = scalar_select %p4073, %s16, 1
        %s4075 = smul.addr %s4074, 4
        %s4076 = smul.addr %s4075, 4
        %s4077 = scalar_lea.vmem %s4, %s4076
      $region48: #{bottleneck_forward.1} parent=43 // pred_fallthru
        _
    $region44: #{bottleneck_forward.1} parent=5 // pred_fallthru
      _
  $region6: #{bottleneck_forward.1} parent=0 // loop_footer
    %s14 = sadd.s32 1, %s10
  $region7: #{bottleneck_forward.1} parent=0 // loop_footer_branch
    %9 = sbr.rel target = $region3
  $region8: #{bottleneck_forward.1} parent=0 // loop_exit
    _

</llo_original>
